<compile_context>
chip_gen: v6e
topology: v6e:2x2x1
jax: 0.10.0
libtpu: 0.0.40
codegen_flags: <defaults>
</compile_context>

<pallas_src>
import functools

import jax
import jax.numpy as jnp
from jax import lax
from jax.experimental import pallas as pl
from jax.experimental.pallas import tpu as pltpu

NHIDDEN = 128   # hidden width of ElaIN's shared MLP (SPADE convention)
EPS = 1e-5      # nn.InstanceNorm1d default eps


# ----------------------------- kernel -------------------------------------- #

def _lrelu(v):  # F.leaky_relu(v, 0.2)
    return jnp.where(v >= 0.0, v, 0.2 * v)


def _instance_norm(x):
    # parameter-free InstanceNorm1d over L (biased variance), per channel.
    # One-pass form: both reductions (sum x, sum x^2) are independent.
    mean = jnp.mean(x, axis=-1, keepdims=True)
    meansq = jnp.mean(x * x, axis=-1, keepdims=True)
    var = meansq - mean * mean
    return (x - mean) * lax.rsqrt(var + EPS)


def _modulate(xn, actv_bf16, wgb, bgb, c):
    # fused gamma/beta head: wgb is (2C, H) bf16, actv is (H, L) bf16.
    # bgb already contains (+1) folded into the gamma rows.
    gb = jnp.dot(wgb, actv_bf16, preferred_element_type=jnp.float32) + bgb
    gamma1 = gb[:c]        # == 1 + gamma
    beta = gb[c:]
    return xn * gamma1 + beta


def elain_resblock_kernel(
    x_ref, a_ref,
    wsh_ref, bsh_ref,                 # fused MLP trunk (3H, ic) / (3H, 1)
    wgb_s_ref, bgb_s_ref,             # fused gamma|beta head of norm_s
    wgb_0_ref, bgb_0_ref,             # fused gamma|beta head of norm_0
    wgb_1_ref, bgb_1_ref,             # fused gamma|beta head of norm_1
    w0_ref, b0_ref, w1_ref, b1_ref, ws_ref,   # spectrally-normalized 1x1 convs
    out_ref,
    *, fin, fmid, nh, nb):
    bf16 = jnp.bfloat16

    # weights loaded once per grid step (hoisted out of the nb unroll)
    wsh = wsh_ref[...]
    bsh = bsh_ref[...]
    wgb_s = wgb_s_ref[...]
    bgb_s = bgb_s_ref[...]
    wgb_0 = wgb_0_ref[...]
    bgb_0 = bgb_0_ref[...]
    wgb_1 = wgb_1_ref[...]
    bgb_1 = bgb_1_ref[...]
    w0 = w0_ref[...]
    b0 = b0_ref[...]
    w1 = w1_ref[...]
    b1 = b1_ref[...]
    ws = ws_ref[...]

    for i in range(nb):                     # static unroll over the batch block
        x = x_ref[i]                        # (fin, L) f32
        a = a_ref[i]                        # (ic,  L) bf16 (cast in wrapper)

        # one fused MLP trunk matmul serving all three ElaIN norms
        actv = jnp.maximum(
            jnp.dot(wsh, a, preferred_element_type=jnp.float32) + bsh, 0.0)
        actv_s = actv[0 * nh:1 * nh].astype(bf16)
        actv_0 = actv[1 * nh:2 * nh].astype(bf16)
        actv_1 = actv[2 * nh:3 * nh].astype(bf16)

        # InstanceNorm stats of x computed once, shared by norm_s and norm_0
        xn = _instance_norm(x)

        # shortcut branch: x_s = conv_s(actvn(norm_s(x, addition)))
        h_s = _lrelu(_modulate(xn, actv_s, wgb_s, bgb_s, fin)).astype(bf16)
        x_s = jnp.dot(ws, h_s, preferred_element_type=jnp.float32)

        # main branch: dx = conv_1(actvn(norm_1(conv_0(actvn(norm_0(x, a))), a)))
        h0 = _lrelu(_modulate(xn, actv_0, wgb_0, bgb_0, fin)).astype(bf16)
        dx = jnp.dot(w0, h0, preferred_element_type=jnp.float32) + b0

        h1 = _lrelu(
            _modulate(_instance_norm(dx), actv_1, wgb_1, bgb_1, fmid)
        ).astype(bf16)
        dx = jnp.dot(w1, h1, preferred_element_type=jnp.float32) + b1

        out_ref[i] = x_s + dx


# ----------------------------- wrapper -------------------------------------- #

PACKED_ORDER = (
    "wsh_all", "bsh_all",
    "wgb_s", "bgb_s", "wgb_0", "bgb_0", "wgb_1", "bgb_1",
    "w0", "b0", "w1", "b1", "ws")


def pack_params(p):
    """Fuse ElaIN weights, fold '+1' into the gamma bias, cast matmul operands
    to bf16 (biases stay f32)."""
    b16 = lambda w: w.astype(jnp.bfloat16)
    one = jnp.float32(1.0)
    return {
        "wsh_all": b16(jnp.concatenate([p["wsh_s"], p["wsh_0"], p["wsh_1"]], 0)),
        "bsh_all": jnp.concatenate([p["bsh_s"], p["bsh_0"], p["bsh_1"]], 0),
        "wgb_s": b16(jnp.concatenate([p["wg_s"], p["wb_s"]], 0)),
        "bgb_s": jnp.concatenate([p["bg_s"] + one, p["bb_s"]], 0),
        "wgb_0": b16(jnp.concatenate([p["wg_0"], p["wb_0"]], 0)),
        "bgb_0": jnp.concatenate([p["bg_0"] + one, p["bb_0"]], 0),
        "wgb_1": b16(jnp.concatenate([p["wg_1"], p["wb_1"]], 0)),
        "bgb_1": jnp.concatenate([p["bg_1"] + one, p["bb_1"]], 0),
        "w0": b16(p["w0"]), "b0": p["b0"],
        "w1": b16(p["w1"]), "b1": p["b1"],
        "ws": b16(p["ws"]),
    }


def elain_resnet_block(x, addition, params, *, batch_block=None):
    """Pallas wrapper. x: (N, fin, L), addition: (N, ic, L)."""
    N, fin, L = x.shape
    ic = addition.shape[1]
    packed = pack_params(params)
    fout = packed["ws"].shape[0]
    fmid = packed["w0"].shape[0]
    nh = packed["wsh_all"].shape[0] // 3

    assert L % 128 == 0, "L must be lane-aligned (multiple of 128)"
    assert fin % 8 == 0 and fmid % 8 == 0 and fout % 8 == 0

    if batch_block is None:
        # Amortize per-grid-step overhead (several elements per step) while
        # keeping >= 2 parallel grid points (v7x has 2 TensorCores).
        batch_block = 2 if (N % 2 == 0 and N >= 4) else 1
    nb = batch_block
    assert N % nb == 0
    grid = (N // nb,)

    # Halve addition's HBM->VMEM traffic: it only feeds bf16 MXU matmuls.
    addition_bf16 = addition.astype(jnp.bfloat16)

    weight_args = [packed[k] for k in PACKED_ORDER]

    def const_spec(arr):
        nd = arr.ndim
        return pl.BlockSpec(arr.shape, lambda n, _nd=nd: (0,) * _nd)

    in_specs = [
        pl.BlockSpec((nb, fin, L), lambda n: (n, 0, 0)),
        pl.BlockSpec((nb, ic, L), lambda n: (n, 0, 0)),
    ] + [const_spec(w) for w in weight_args]

    out_spec = pl.BlockSpec((nb, fout, L), lambda n: (n, 0, 0))

    kernel = functools.partial(
        elain_resblock_kernel, fin=fin, fmid=fmid, nh=nh, nb=nb)

    return pl.pallas_call(
        kernel,
        out_shape=jax.ShapeDtypeStruct((N, fout, L), jnp.float32),
        grid_spec=pltpu.PrefetchScalarGridSpec(
            num_scalar_prefetch=0,
            grid=grid,
            in_specs=in_specs,
            out_specs=out_spec),
        compiler_params=pltpu.CompilerParams(
            dimension_semantics=("parallel",)),
    )(x, addition_bf16, *weight_args)


# ------------------------- parameter setup (glue) --------------------------- #

def spectral_normalize(w, n_iter=50):
    """w: (out, in). Divide by the largest singular value (spectral_norm fixed point)."""
    v = jnp.ones((w.shape[1],), w.dtype) / jnp.sqrt(float(w.shape[1]))
    u = jnp.ones((w.shape[0],), w.dtype) / jnp.sqrt(float(w.shape[0]))
    for _ in range(n_iter):
        u = w @ v
        u = u / (jnp.linalg.norm(u) + 1e-12)
        v = w.T @ u
        v = v / (jnp.linalg.norm(v) + 1e-12)
    sigma = u @ (w @ v)
    return w / sigma


def init_params(key, fin, fout, ic, nhidden=NHIDDEN):
    fmiddle = min(fin, fout)
    keys = iter(jax.random.split(key, 32))

    def nrm(shape, scale=0.1):
        return scale * jax.random.normal(next(keys), shape, jnp.float32)

    def elain_params(norm_nc, tag):
        return {
            f"wsh_{tag}": nrm((nhidden, ic)),
            f"bsh_{tag}": nrm((nhidden, 1)),
            f"wg_{tag}": nrm((norm_nc, nhidden)),
            f"bg_{tag}": nrm((norm_nc, 1)),
            f"wb_{tag}": nrm((norm_nc, nhidden)),
            f"bb_{tag}": nrm((norm_nc, 1)),
        }

    params = {}
    params.update(elain_params(fin, "s"))       # norm_s = ElaIN(fin, ic)
    params.update(elain_params(fin, "0"))       # norm_0 = ElaIN(fin, ic)
    params.update(elain_params(fmiddle, "1"))   # norm_1 = ElaIN(fmiddle, ic)
    params["w0"] = spectral_normalize(nrm((fmiddle, fin)))   # conv_0 (1x1)
    params["b0"] = nrm((fmiddle, 1))
    params["w1"] = spectral_normalize(nrm((fout, fmiddle)))  # conv_1 (1x1)
    params["b1"] = nrm((fout, 1))
    params["ws"] = spectral_normalize(nrm((fout, fin)))      # conv_s (1x1, no bias)
    return params


# ------------------------- plain-JAX reference ------------------------------ #

def ref_forward(x, a, p):
    """Unfused reference; matmul operands cast to bf16 (f32 accumulate) to match
    the kernel's MXU precision."""
    b16 = jnp.bfloat16

    def mm(w, v):
        return jnp.einsum("oc,ncl->nol", w.astype(b16), v.astype(b16),
                          preferred_element_type=jnp.float32)

    def elain(xx, tag):
        mean = jnp.mean(xx, -1, keepdims=True)
        var = jnp.mean((xx - mean) ** 2, -1, keepdims=True)
        normed = (xx - mean) * lax.rsqrt(var + EPS)
        actv = jnp.maximum(mm(p[f"wsh_{tag}"], a) + p[f"bsh_{tag}"][None], 0.0)
        gamma = mm(p[f"wg_{tag}"], actv) + p[f"bg_{tag}"][None]
        beta = mm(p[f"wb_{tag}"], actv) + p[f"bb_{tag}"][None]
        return normed * (1.0 + gamma) + beta

    lr = lambda v: jnp.where(v >= 0.0, v, 0.2 * v)
    h_s = lr(elain(x, "s"))
    x_s = mm(p["ws"], h_s)
    h0 = lr(elain(x, "0"))
    dx = mm(p["w0"], h0) + p["b0"][None]
    h1 = lr(elain(dx, "1"))
    dx = mm(p["w1"], h1) + p["b1"][None]
    return x_s + dx


# --------------------------------- main ------------------------------------- #

if __name__ == "__main__":
    N, fin, fout, ic, L = 4, 32, 64, 16, 128     # fmiddle = min(fin, fout) = 32

    root = jax.random.PRNGKey(0)
    kp, kx, ka = jax.random.split(root, 3)

    params = init_params(kp, fin, fout, ic)
    x = jax.random.normal(kx, (N, fin, L), jnp.float32)
    addition = jax.random.normal(ka, (N, ic, L), jnp.float32)

    out = elain_resnet_block(x, addition, params)
    out = jax.block_until_ready(out)

    ref = ref_forward(x, addition, params)
    assert out.shape == (N, fout, L)
    assert jnp.allclose(out, ref, atol=2e-2, rtol=2e-2), "mismatch vs JAX reference"

    print("KERNEL_OK")
</pallas_src>

<mosaic_0001>
module attributes {stable_mosaic.version = 11 : i64} {
  func.func @elain_resblock_kernel(%arg0: i32, %arg1: memref<2x32x128xf32, #tpu.memory_space<vmem>>, %arg2: memref<2x16x128xbf16, #tpu.memory_space<vmem>>, %arg3: memref<384x16xbf16, #tpu.memory_space<vmem>>, %arg4: memref<384x1xf32, #tpu.memory_space<vmem>>, %arg5: memref<64x128xbf16, #tpu.memory_space<vmem>>, %arg6: memref<64x1xf32, #tpu.memory_space<vmem>>, %arg7: memref<64x128xbf16, #tpu.memory_space<vmem>>, %arg8: memref<64x1xf32, #tpu.memory_space<vmem>>, %arg9: memref<64x128xbf16, #tpu.memory_space<vmem>>, %arg10: memref<64x1xf32, #tpu.memory_space<vmem>>, %arg11: memref<32x32xbf16, #tpu.memory_space<vmem>>, %arg12: memref<32x1xf32, #tpu.memory_space<vmem>>, %arg13: memref<64x32xbf16, #tpu.memory_space<vmem>>, %arg14: memref<64x1xf32, #tpu.memory_space<vmem>>, %arg15: memref<64x32xbf16, #tpu.memory_space<vmem>>, %arg16: memref<2x64x128xf32, #tpu.memory_space<vmem>>) attributes {dimension_semantics = [#tpu.dimension_semantics<parallel>], iteration_bounds = array<i64: 2>, scalar_prefetch = 0 : i64, scratch_operands = 0 : i64, tpu.core_type = #tpu.core_type<tc>, window_params = [{transform_indices = @transform_0, window_bounds = array<i64: 2, 32, 128>}, {transform_indices = @transform_1, window_bounds = array<i64: 2, 16, 128>}, {pipeline_mode = #tpu.pipeline_mode<synchronous>, transform_indices = @transform_2, window_bounds = array<i64: 384, 16>}, {pipeline_mode = #tpu.pipeline_mode<synchronous>, transform_indices = @transform_3, window_bounds = array<i64: 384, 1>}, {pipeline_mode = #tpu.pipeline_mode<synchronous>, transform_indices = @transform_4, window_bounds = array<i64: 64, 128>}, {pipeline_mode = #tpu.pipeline_mode<synchronous>, transform_indices = @transform_5, window_bounds = array<i64: 64, 1>}, {pipeline_mode = #tpu.pipeline_mode<synchronous>, transform_indices = @transform_6, window_bounds = array<i64: 64, 128>}, {pipeline_mode = #tpu.pipeline_mode<synchronous>, transform_indices = @transform_7, window_bounds = array<i64: 64, 1>}, {pipeline_mode = #tpu.pipeline_mode<synchronous>, transform_indices = @transform_8, window_bounds = array<i64: 64, 128>}, {pipeline_mode = #tpu.pipeline_mode<synchronous>, transform_indices = @transform_9, window_bounds = array<i64: 64, 1>}, {pipeline_mode = #tpu.pipeline_mode<synchronous>, transform_indices = @transform_10, window_bounds = array<i64: 32, 32>}, {pipeline_mode = #tpu.pipeline_mode<synchronous>, transform_indices = @transform_11, window_bounds = array<i64: 32, 1>}, {pipeline_mode = #tpu.pipeline_mode<synchronous>, transform_indices = @transform_12, window_bounds = array<i64: 64, 32>}, {pipeline_mode = #tpu.pipeline_mode<synchronous>, transform_indices = @transform_13, window_bounds = array<i64: 64, 1>}, {pipeline_mode = #tpu.pipeline_mode<synchronous>, transform_indices = @transform_14, window_bounds = array<i64: 64, 32>}, {transform_indices = @transform_15, window_bounds = array<i64: 2, 64, 128>}]} {
    %c0 = arith.constant 0 : index
    %c0_0 = arith.constant 0 : index
    %0 = vector.load %arg3[%c0, %c0_0] : memref<384x16xbf16, #tpu.memory_space<vmem>>, vector<384x16xbf16>
    %c0_1 = arith.constant 0 : index
    %c0_2 = arith.constant 0 : index
    %1 = vector.load %arg4[%c0_1, %c0_2] : memref<384x1xf32, #tpu.memory_space<vmem>>, vector<384x1xf32>
    %c0_3 = arith.constant 0 : index
    %c0_4 = arith.constant 0 : index
    %2 = vector.load %arg5[%c0_3, %c0_4] : memref<64x128xbf16, #tpu.memory_space<vmem>>, vector<64x128xbf16>
    %c0_5 = arith.constant 0 : index
    %c0_6 = arith.constant 0 : index
    %3 = vector.load %arg6[%c0_5, %c0_6] : memref<64x1xf32, #tpu.memory_space<vmem>>, vector<64x1xf32>
    %c0_7 = arith.constant 0 : index
    %c0_8 = arith.constant 0 : index
    %4 = vector.load %arg7[%c0_7, %c0_8] : memref<64x128xbf16, #tpu.memory_space<vmem>>, vector<64x128xbf16>
    %c0_9 = arith.constant 0 : index
    %c0_10 = arith.constant 0 : index
    %5 = vector.load %arg8[%c0_9, %c0_10] : memref<64x1xf32, #tpu.memory_space<vmem>>, vector<64x1xf32>
    %c0_11 = arith.constant 0 : index
    %c0_12 = arith.constant 0 : index
    %6 = vector.load %arg9[%c0_11, %c0_12] : memref<64x128xbf16, #tpu.memory_space<vmem>>, vector<64x128xbf16>
    %c0_13 = arith.constant 0 : index
    %c0_14 = arith.constant 0 : index
    %7 = vector.load %arg10[%c0_13, %c0_14] : memref<64x1xf32, #tpu.memory_space<vmem>>, vector<64x1xf32>
    %c0_15 = arith.constant 0 : index
    %c0_16 = arith.constant 0 : index
    %8 = vector.load %arg11[%c0_15, %c0_16] : memref<32x32xbf16, #tpu.memory_space<vmem>>, vector<32x32xbf16>
    %c0_17 = arith.constant 0 : index
    %c0_18 = arith.constant 0 : index
    %9 = vector.load %arg12[%c0_17, %c0_18] : memref<32x1xf32, #tpu.memory_space<vmem>>, vector<32x1xf32>
    %c0_19 = arith.constant 0 : index
    %c0_20 = arith.constant 0 : index
    %10 = vector.load %arg13[%c0_19, %c0_20] : memref<64x32xbf16, #tpu.memory_space<vmem>>, vector<64x32xbf16>
    %c0_21 = arith.constant 0 : index
    %c0_22 = arith.constant 0 : index
    %11 = vector.load %arg14[%c0_21, %c0_22] : memref<64x1xf32, #tpu.memory_space<vmem>>, vector<64x1xf32>
    %c0_23 = arith.constant 0 : index
    %c0_24 = arith.constant 0 : index
    %12 = vector.load %arg15[%c0_23, %c0_24] : memref<64x32xbf16, #tpu.memory_space<vmem>>, vector<64x32xbf16>
    %c0_25 = arith.constant 0 : index
    %c0_26 = arith.constant 0 : index
    %c0_27 = arith.constant 0 : index
    %13 = vector.load %arg1[%c0_25, %c0_26, %c0_27] : memref<2x32x128xf32, #tpu.memory_space<vmem>>, vector<1x32x128xf32>
    %14 = vector.shape_cast %13 : vector<1x32x128xf32> to vector<32x128xf32>
    %c0_28 = arith.constant 0 : index
    %c0_29 = arith.constant 0 : index
    %c0_30 = arith.constant 0 : index
    %15 = vector.load %arg2[%c0_28, %c0_29, %c0_30] : memref<2x16x128xbf16, #tpu.memory_space<vmem>>, vector<1x16x128xbf16>
    %16 = vector.shape_cast %15 : vector<1x16x128xbf16> to vector<16x128xbf16>
    %cst = arith.constant dense<0.000000e+00> : vector<384x128xf32>
    %17 = tpu.matmul %0, %16, %cst {dimension_numbers = #tpu.dot_dimension_numbers<[1], [0], [0], [1], [0, 0, 1, 1], [], []>} : vector<384x16xbf16>, vector<16x128xbf16>, vector<384x128xf32> -> vector<384x128xf32>
    %18 = vector.broadcast %1 : vector<384x1xf32> to vector<384x128xf32>
    %19 = arith.addf %17, %18 : vector<384x128xf32>
    %cst_31 = arith.constant 0.000000e+00 : f32
    %20 = vector.broadcast %cst_31 : f32 to vector<384x128xf32>
    %21 = arith.maximumf %19, %20 : vector<384x128xf32>
    %22 = vector.extract_strided_slice %21 {offsets = [0, 0], sizes = [128, 128], strides = [1, 1]} : vector<384x128xf32> to vector<128x128xf32>
    %23 = arith.truncf %22 : vector<128x128xf32> to vector<128x128xbf16>
    %24 = vector.extract_strided_slice %21 {offsets = [128, 0], sizes = [128, 128], strides = [1, 1]} : vector<384x128xf32> to vector<128x128xf32>
    %25 = arith.truncf %24 : vector<128x128xf32> to vector<128x128xbf16>
    %26 = vector.extract_strided_slice %21 {offsets = [256, 0], sizes = [128, 128], strides = [1, 1]} : vector<384x128xf32> to vector<128x128xf32>
    %27 = arith.truncf %26 : vector<128x128xf32> to vector<128x128xbf16>
    %cst_32 = arith.constant dense<0.000000e+00> : vector<32xf32>
    %28 = vector.multi_reduction <add>, %14, %cst_32 [1] : vector<32x128xf32> to vector<32xf32>
    %29 = vector.shape_cast %28 : vector<32xf32> to vector<32x1xf32>
    %cst_33 = arith.constant 1.280000e+02 : f32
    %30 = vector.broadcast %cst_33 : f32 to vector<32x1xf32>
    %31 = arith.divf %29, %30 : vector<32x1xf32>
    %32 = arith.mulf %14, %14 : vector<32x128xf32>
    %cst_34 = arith.constant dense<0.000000e+00> : vector<32xf32>
    %33 = vector.multi_reduction <add>, %32, %cst_34 [1] : vector<32x128xf32> to vector<32xf32>
    %34 = vector.shape_cast %33 : vector<32xf32> to vector<32x1xf32>
    %cst_35 = arith.constant 1.280000e+02 : f32
    %35 = vector.broadcast %cst_35 : f32 to vector<32x1xf32>
    %36 = arith.divf %34, %35 : vector<32x1xf32>
    %37 = arith.mulf %31, %31 : vector<32x1xf32>
    %38 = arith.subf %36, %37 : vector<32x1xf32>
    %39 = vector.broadcast %31 : vector<32x1xf32> to vector<32x128xf32>
    %40 = arith.subf %14, %39 : vector<32x128xf32>
    %cst_36 = arith.constant 9.99999974E-6 : f32
    %41 = vector.broadcast %cst_36 : f32 to vector<32x1xf32>
    %42 = arith.addf %38, %41 : vector<32x1xf32>
    %43 = math.rsqrt %42 : vector<32x1xf32>
    %44 = vector.broadcast %43 : vector<32x1xf32> to vector<32x128xf32>
    %45 = arith.mulf %40, %44 : vector<32x128xf32>
    %cst_37 = arith.constant dense<0.000000e+00> : vector<64x128xf32>
    %46 = tpu.matmul %2, %23, %cst_37 {dimension_numbers = #tpu.dot_dimension_numbers<[1], [0], [0], [1], [0, 0, 1, 1], [], []>} : vector<64x128xbf16>, vector<128x128xbf16>, vector<64x128xf32> -> vector<64x128xf32>
    %47 = vector.broadcast %3 : vector<64x1xf32> to vector<64x128xf32>
    %48 = arith.addf %46, %47 : vector<64x128xf32>
    %49 = vector.extract_strided_slice %48 {offsets = [0, 0], sizes = [32, 128], strides = [1, 1]} : vector<64x128xf32> to vector<32x128xf32>
    %50 = vector.extract_strided_slice %48 {offsets = [32, 0], sizes = [32, 128], strides = [1, 1]} : vector<64x128xf32> to vector<32x128xf32>
    %51 = arith.mulf %45, %49 : vector<32x128xf32>
    %52 = arith.addf %51, %50 : vector<32x128xf32>
    %cst_38 = arith.constant 0.000000e+00 : f32
    %53 = vector.broadcast %cst_38 : f32 to vector<32x128xf32>
    %54 = arith.cmpf oge, %52, %53 : vector<32x128xf32>
    %cst_39 = arith.constant 2.000000e-01 : f32
    %55 = vector.broadcast %cst_39 : f32 to vector<32x128xf32>
    %56 = arith.mulf %55, %52 : vector<32x128xf32>
    %57 = arith.select %54, %52, %56 : vector<32x128xi1>, vector<32x128xf32>
    %58 = arith.truncf %57 : vector<32x128xf32> to vector<32x128xbf16>
    %cst_40 = arith.constant dense<0.000000e+00> : vector<64x128xf32>
    %59 = tpu.matmul %12, %58, %cst_40 {dimension_numbers = #tpu.dot_dimension_numbers<[1], [0], [0], [1], [0, 0, 1, 1], [], []>} : vector<64x32xbf16>, vector<32x128xbf16>, vector<64x128xf32> -> vector<64x128xf32>
    %cst_41 = arith.constant dense<0.000000e+00> : vector<64x128xf32>
    %60 = tpu.matmul %4, %25, %cst_41 {dimension_numbers = #tpu.dot_dimension_numbers<[1], [0], [0], [1], [0, 0, 1, 1], [], []>} : vector<64x128xbf16>, vector<128x128xbf16>, vector<64x128xf32> -> vector<64x128xf32>
    %61 = vector.broadcast %5 : vector<64x1xf32> to vector<64x128xf32>
    %62 = arith.addf %60, %61 : vector<64x128xf32>
    %63 = vector.extract_strided_slice %62 {offsets = [0, 0], sizes = [32, 128], strides = [1, 1]} : vector<64x128xf32> to vector<32x128xf32>
    %64 = vector.extract_strided_slice %62 {offsets = [32, 0], sizes = [32, 128], strides = [1, 1]} : vector<64x128xf32> to vector<32x128xf32>
    %65 = arith.mulf %45, %63 : vector<32x128xf32>
    %66 = arith.addf %65, %64 : vector<32x128xf32>
    %cst_42 = arith.constant 0.000000e+00 : f32
    %67 = vector.broadcast %cst_42 : f32 to vector<32x128xf32>
    %68 = arith.cmpf oge, %66, %67 : vector<32x128xf32>
    %cst_43 = arith.constant 2.000000e-01 : f32
    %69 = vector.broadcast %cst_43 : f32 to vector<32x128xf32>
    %70 = arith.mulf %69, %66 : vector<32x128xf32>
    %71 = arith.select %68, %66, %70 : vector<32x128xi1>, vector<32x128xf32>
    %72 = arith.truncf %71 : vector<32x128xf32> to vector<32x128xbf16>
    %cst_44 = arith.constant dense<0.000000e+00> : vector<32x128xf32>
    %73 = tpu.matmul %8, %72, %cst_44 {dimension_numbers = #tpu.dot_dimension_numbers<[1], [0], [0], [1], [0, 0, 1, 1], [], []>} : vector<32x32xbf16>, vector<32x128xbf16>, vector<32x128xf32> -> vector<32x128xf32>
    %74 = vector.broadcast %9 : vector<32x1xf32> to vector<32x128xf32>
    %75 = arith.addf %73, %74 : vector<32x128xf32>
    %cst_45 = arith.constant dense<0.000000e+00> : vector<32xf32>
    %76 = vector.multi_reduction <add>, %75, %cst_45 [1] : vector<32x128xf32> to vector<32xf32>
    %77 = vector.shape_cast %76 : vector<32xf32> to vector<32x1xf32>
    %cst_46 = arith.constant 1.280000e+02 : f32
    %78 = vector.broadcast %cst_46 : f32 to vector<32x1xf32>
    %79 = arith.divf %77, %78 : vector<32x1xf32>
    %80 = arith.mulf %75, %75 : vector<32x128xf32>
    %cst_47 = arith.constant dense<0.000000e+00> : vector<32xf32>
    %81 = vector.multi_reduction <add>, %80, %cst_47 [1] : vector<32x128xf32> to vector<32xf32>
    %82 = vector.shape_cast %81 : vector<32xf32> to vector<32x1xf32>
    %cst_48 = arith.constant 1.280000e+02 : f32
    %83 = vector.broadcast %cst_48 : f32 to vector<32x1xf32>
    %84 = arith.divf %82, %83 : vector<32x1xf32>
    %85 = arith.mulf %79, %79 : vector<32x1xf32>
    %86 = arith.subf %84, %85 : vector<32x1xf32>
    %87 = vector.broadcast %79 : vector<32x1xf32> to vector<32x128xf32>
    %88 = arith.subf %75, %87 : vector<32x128xf32>
    %cst_49 = arith.constant 9.99999974E-6 : f32
    %89 = vector.broadcast %cst_49 : f32 to vector<32x1xf32>
    %90 = arith.addf %86, %89 : vector<32x1xf32>
    %91 = math.rsqrt %90 : vector<32x1xf32>
    %92 = vector.broadcast %91 : vector<32x1xf32> to vector<32x128xf32>
    %93 = arith.mulf %88, %92 : vector<32x128xf32>
    %cst_50 = arith.constant dense<0.000000e+00> : vector<64x128xf32>
    %94 = tpu.matmul %6, %27, %cst_50 {dimension_numbers = #tpu.dot_dimension_numbers<[1], [0], [0], [1], [0, 0, 1, 1], [], []>} : vector<64x128xbf16>, vector<128x128xbf16>, vector<64x128xf32> -> vector<64x128xf32>
    %95 = vector.broadcast %7 : vector<64x1xf32> to vector<64x128xf32>
    %96 = arith.addf %94, %95 : vector<64x128xf32>
    %97 = vector.extract_strided_slice %96 {offsets = [0, 0], sizes = [32, 128], strides = [1, 1]} : vector<64x128xf32> to vector<32x128xf32>
    %98 = vector.extract_strided_slice %96 {offsets = [32, 0], sizes = [32, 128], strides = [1, 1]} : vector<64x128xf32> to vector<32x128xf32>
    %99 = arith.mulf %93, %97 : vector<32x128xf32>
    %100 = arith.addf %99, %98 : vector<32x128xf32>
    %cst_51 = arith.constant 0.000000e+00 : f32
    %101 = vector.broadcast %cst_51 : f32 to vector<32x128xf32>
    %102 = arith.cmpf oge, %100, %101 : vector<32x128xf32>
    %cst_52 = arith.constant 2.000000e-01 : f32
    %103 = vector.broadcast %cst_52 : f32 to vector<32x128xf32>
    %104 = arith.mulf %103, %100 : vector<32x128xf32>
    %105 = arith.select %102, %100, %104 : vector<32x128xi1>, vector<32x128xf32>
    %106 = arith.truncf %105 : vector<32x128xf32> to vector<32x128xbf16>
    %cst_53 = arith.constant dense<0.000000e+00> : vector<64x128xf32>
    %107 = tpu.matmul %10, %106, %cst_53 {dimension_numbers = #tpu.dot_dimension_numbers<[1], [0], [0], [1], [0, 0, 1, 1], [], []>} : vector<64x32xbf16>, vector<32x128xbf16>, vector<64x128xf32> -> vector<64x128xf32>
    %108 = vector.broadcast %11 : vector<64x1xf32> to vector<64x128xf32>
    %109 = arith.addf %107, %108 : vector<64x128xf32>
    %110 = arith.addf %59, %109 : vector<64x128xf32>
    %c0_54 = arith.constant 0 : index
    %c0_55 = arith.constant 0 : index
    %c0_56 = arith.constant 0 : index
    %111 = vector.load %arg16[%c0_54, %c0_55, %c0_56] : memref<2x64x128xf32, #tpu.memory_space<vmem>>, vector<1x64x128xf32>
    %112 = vector.shape_cast %111 : vector<1x64x128xf32> to vector<64x128xf32>
    %113 = vector.shape_cast %110 : vector<64x128xf32> to vector<1x64x128xf32>
    tpu.vector_store %arg16[%c0_54, %c0_55, %c0_56], %113 {strides = array<i32>} : memref<2x64x128xf32, #tpu.memory_space<vmem>>, vector<1x64x128xf32>,
    %c1 = arith.constant 1 : index
    %c0_57 = arith.constant 0 : index
    %c0_58 = arith.constant 0 : index
    %114 = vector.load %arg1[%c1, %c0_57, %c0_58] : memref<2x32x128xf32, #tpu.memory_space<vmem>>, vector<1x32x128xf32>
    %115 = vector.shape_cast %114 : vector<1x32x128xf32> to vector<32x128xf32>
    %c1_59 = arith.constant 1 : index
    %c0_60 = arith.constant 0 : index
    %c0_61 = arith.constant 0 : index
    %116 = vector.load %arg2[%c1_59, %c0_60, %c0_61] : memref<2x16x128xbf16, #tpu.memory_space<vmem>>, vector<1x16x128xbf16>
    %117 = vector.shape_cast %116 : vector<1x16x128xbf16> to vector<16x128xbf16>
    %cst_62 = arith.constant dense<0.000000e+00> : vector<384x128xf32>
    %118 = tpu.matmul %0, %117, %cst_62 {dimension_numbers = #tpu.dot_dimension_numbers<[1], [0], [0], [1], [0, 0, 1, 1], [], []>} : vector<384x16xbf16>, vector<16x128xbf16>, vector<384x128xf32> -> vector<384x128xf32>
    %119 = vector.broadcast %1 : vector<384x1xf32> to vector<384x128xf32>
    %120 = arith.addf %118, %119 : vector<384x128xf32>
    %cst_63 = arith.constant 0.000000e+00 : f32
    %121 = vector.broadcast %cst_63 : f32 to vector<384x128xf32>
    %122 = arith.maximumf %120, %121 : vector<384x128xf32>
    %123 = vector.extract_strided_slice %122 {offsets = [0, 0], sizes = [128, 128], strides = [1, 1]} : vector<384x128xf32> to vector<128x128xf32>
    %124 = arith.truncf %123 : vector<128x128xf32> to vector<128x128xbf16>
    %125 = vector.extract_strided_slice %122 {offsets = [128, 0], sizes = [128, 128], strides = [1, 1]} : vector<384x128xf32> to vector<128x128xf32>
    %126 = arith.truncf %125 : vector<128x128xf32> to vector<128x128xbf16>
    %127 = vector.extract_strided_slice %122 {offsets = [256, 0], sizes = [128, 128], strides = [1, 1]} : vector<384x128xf32> to vector<128x128xf32>
    %128 = arith.truncf %127 : vector<128x128xf32> to vector<128x128xbf16>
    %cst_64 = arith.constant dense<0.000000e+00> : vector<32xf32>
    %129 = vector.multi_reduction <add>, %115, %cst_64 [1] : vector<32x128xf32> to vector<32xf32>
    %130 = vector.shape_cast %129 : vector<32xf32> to vector<32x1xf32>
    %cst_65 = arith.constant 1.280000e+02 : f32
    %131 = vector.broadcast %cst_65 : f32 to vector<32x1xf32>
    %132 = arith.divf %130, %131 : vector<32x1xf32>
    %133 = arith.mulf %115, %115 : vector<32x128xf32>
    %cst_66 = arith.constant dense<0.000000e+00> : vector<32xf32>
    %134 = vector.multi_reduction <add>, %133, %cst_66 [1] : vector<32x128xf32> to vector<32xf32>
    %135 = vector.shape_cast %134 : vector<32xf32> to vector<32x1xf32>
    %cst_67 = arith.constant 1.280000e+02 : f32
    %136 = vector.broadcast %cst_67 : f32 to vector<32x1xf32>
    %137 = arith.divf %135, %136 : vector<32x1xf32>
    %138 = arith.mulf %132, %132 : vector<32x1xf32>
    %139 = arith.subf %137, %138 : vector<32x1xf32>
    %140 = vector.broadcast %132 : vector<32x1xf32> to vector<32x128xf32>
    %141 = arith.subf %115, %140 : vector<32x128xf32>
    %cst_68 = arith.constant 9.99999974E-6 : f32
    %142 = vector.broadcast %cst_68 : f32 to vector<32x1xf32>
    %143 = arith.addf %139, %142 : vector<32x1xf32>
    %144 = math.rsqrt %143 : vector<32x1xf32>
    %145 = vector.broadcast %144 : vector<32x1xf32> to vector<32x128xf32>
    %146 = arith.mulf %141, %145 : vector<32x128xf32>
    %cst_69 = arith.constant dense<0.000000e+00> : vector<64x128xf32>
    %147 = tpu.matmul %2, %124, %cst_69 {dimension_numbers = #tpu.dot_dimension_numbers<[1], [0], [0], [1], [0, 0, 1, 1], [], []>} : vector<64x128xbf16>, vector<128x128xbf16>, vector<64x128xf32> -> vector<64x128xf32>
    %148 = vector.broadcast %3 : vector<64x1xf32> to vector<64x128xf32>
    %149 = arith.addf %147, %148 : vector<64x128xf32>
    %150 = vector.extract_strided_slice %149 {offsets = [0, 0], sizes = [32, 128], strides = [1, 1]} : vector<64x128xf32> to vector<32x128xf32>
    %151 = vector.extract_strided_slice %149 {offsets = [32, 0], sizes = [32, 128], strides = [1, 1]} : vector<64x128xf32> to vector<32x128xf32>
    %152 = arith.mulf %146, %150 : vector<32x128xf32>
    %153 = arith.addf %152, %151 : vector<32x128xf32>
    %cst_70 = arith.constant 0.000000e+00 : f32
    %154 = vector.broadcast %cst_70 : f32 to vector<32x128xf32>
    %155 = arith.cmpf oge, %153, %154 : vector<32x128xf32>
    %cst_71 = arith.constant 2.000000e-01 : f32
    %156 = vector.broadcast %cst_71 : f32 to vector<32x128xf32>
    %157 = arith.mulf %156, %153 : vector<32x128xf32>
    %158 = arith.select %155, %153, %157 : vector<32x128xi1>, vector<32x128xf32>
    %159 = arith.truncf %158 : vector<32x128xf32> to vector<32x128xbf16>
    %cst_72 = arith.constant dense<0.000000e+00> : vector<64x128xf32>
    %160 = tpu.matmul %12, %159, %cst_72 {dimension_numbers = #tpu.dot_dimension_numbers<[1], [0], [0], [1], [0, 0, 1, 1], [], []>} : vector<64x32xbf16>, vector<32x128xbf16>, vector<64x128xf32> -> vector<64x128xf32>
    %cst_73 = arith.constant dense<0.000000e+00> : vector<64x128xf32>
    %161 = tpu.matmul %4, %126, %cst_73 {dimension_numbers = #tpu.dot_dimension_numbers<[1], [0], [0], [1], [0, 0, 1, 1], [], []>} : vector<64x128xbf16>, vector<128x128xbf16>, vector<64x128xf32> -> vector<64x128xf32>
    %162 = vector.broadcast %5 : vector<64x1xf32> to vector<64x128xf32>
    %163 = arith.addf %161, %162 : vector<64x128xf32>
    %164 = vector.extract_strided_slice %163 {offsets = [0, 0], sizes = [32, 128], strides = [1, 1]} : vector<64x128xf32> to vector<32x128xf32>
    %165 = vector.extract_strided_slice %163 {offsets = [32, 0], sizes = [32, 128], strides = [1, 1]} : vector<64x128xf32> to vector<32x128xf32>
    %166 = arith.mulf %146, %164 : vector<32x128xf32>
    %167 = arith.addf %166, %165 : vector<32x128xf32>
    %cst_74 = arith.constant 0.000000e+00 : f32
    %168 = vector.broadcast %cst_74 : f32 to vector<32x128xf32>
    %169 = arith.cmpf oge, %167, %168 : vector<32x128xf32>
    %cst_75 = arith.constant 2.000000e-01 : f32
    %170 = vector.broadcast %cst_75 : f32 to vector<32x128xf32>
    %171 = arith.mulf %170, %167 : vector<32x128xf32>
    %172 = arith.select %169, %167, %171 : vector<32x128xi1>, vector<32x128xf32>
    %173 = arith.truncf %172 : vector<32x128xf32> to vector<32x128xbf16>
    %cst_76 = arith.constant dense<0.000000e+00> : vector<32x128xf32>
    %174 = tpu.matmul %8, %173, %cst_76 {dimension_numbers = #tpu.dot_dimension_numbers<[1], [0], [0], [1], [0, 0, 1, 1], [], []>} : vector<32x32xbf16>, vector<32x128xbf16>, vector<32x128xf32> -> vector<32x128xf32>
    %175 = vector.broadcast %9 : vector<32x1xf32> to vector<32x128xf32>
    %176 = arith.addf %174, %175 : vector<32x128xf32>
    %cst_77 = arith.constant dense<0.000000e+00> : vector<32xf32>
    %177 = vector.multi_reduction <add>, %176, %cst_77 [1] : vector<32x128xf32> to vector<32xf32>
    %178 = vector.shape_cast %177 : vector<32xf32> to vector<32x1xf32>
    %cst_78 = arith.constant 1.280000e+02 : f32
    %179 = vector.broadcast %cst_78 : f32 to vector<32x1xf32>
    %180 = arith.divf %178, %179 : vector<32x1xf32>
    %181 = arith.mulf %176, %176 : vector<32x128xf32>
    %cst_79 = arith.constant dense<0.000000e+00> : vector<32xf32>
    %182 = vector.multi_reduction <add>, %181, %cst_79 [1] : vector<32x128xf32> to vector<32xf32>
    %183 = vector.shape_cast %182 : vector<32xf32> to vector<32x1xf32>
    %cst_80 = arith.constant 1.280000e+02 : f32
    %184 = vector.broadcast %cst_80 : f32 to vector<32x1xf32>
    %185 = arith.divf %183, %184 : vector<32x1xf32>
    %186 = arith.mulf %180, %180 : vector<32x1xf32>
    %187 = arith.subf %185, %186 : vector<32x1xf32>
    %188 = vector.broadcast %180 : vector<32x1xf32> to vector<32x128xf32>
    %189 = arith.subf %176, %188 : vector<32x128xf32>
    %cst_81 = arith.constant 9.99999974E-6 : f32
    %190 = vector.broadcast %cst_81 : f32 to vector<32x1xf32>
    %191 = arith.addf %187, %190 : vector<32x1xf32>
    %192 = math.rsqrt %191 : vector<32x1xf32>
    %193 = vector.broadcast %192 : vector<32x1xf32> to vector<32x128xf32>
    %194 = arith.mulf %189, %193 : vector<32x128xf32>
    %cst_82 = arith.constant dense<0.000000e+00> : vector<64x128xf32>
    %195 = tpu.matmul %6, %128, %cst_82 {dimension_numbers = #tpu.dot_dimension_numbers<[1], [0], [0], [1], [0, 0, 1, 1], [], []>} : vector<64x128xbf16>, vector<128x128xbf16>, vector<64x128xf32> -> vector<64x128xf32>
    %196 = vector.broadcast %7 : vector<64x1xf32> to vector<64x128xf32>
    %197 = arith.addf %195, %196 : vector<64x128xf32>
    %198 = vector.extract_strided_slice %197 {offsets = [0, 0], sizes = [32, 128], strides = [1, 1]} : vector<64x128xf32> to vector<32x128xf32>
    %199 = vector.extract_strided_slice %197 {offsets = [32, 0], sizes = [32, 128], strides = [1, 1]} : vector<64x128xf32> to vector<32x128xf32>
    %200 = arith.mulf %194, %198 : vector<32x128xf32>
    %201 = arith.addf %200, %199 : vector<32x128xf32>
    %cst_83 = arith.constant 0.000000e+00 : f32
    %202 = vector.broadcast %cst_83 : f32 to vector<32x128xf32>
    %203 = arith.cmpf oge, %201, %202 : vector<32x128xf32>
    %cst_84 = arith.constant 2.000000e-01 : f32
    %204 = vector.broadcast %cst_84 : f32 to vector<32x128xf32>
    %205 = arith.mulf %204, %201 : vector<32x128xf32>
    %206 = arith.select %203, %201, %205 : vector<32x128xi1>, vector<32x128xf32>
    %207 = arith.truncf %206 : vector<32x128xf32> to vector<32x128xbf16>
    %cst_85 = arith.constant dense<0.000000e+00> : vector<64x128xf32>
    %208 = tpu.matmul %10, %207, %cst_85 {dimension_numbers = #tpu.dot_dimension_numbers<[1], [0], [0], [1], [0, 0, 1, 1], [], []>} : vector<64x32xbf16>, vector<32x128xbf16>, vector<64x128xf32> -> vector<64x128xf32>
    %209 = vector.broadcast %11 : vector<64x1xf32> to vector<64x128xf32>
    %210 = arith.addf %208, %209 : vector<64x128xf32>
    %211 = arith.addf %160, %210 : vector<64x128xf32>
    %c1_86 = arith.constant 1 : index
    %c0_87 = arith.constant 0 : index
    %c0_88 = arith.constant 0 : index
    %212 = vector.load %arg16[%c1_86, %c0_87, %c0_88] : memref<2x64x128xf32, #tpu.memory_space<vmem>>, vector<1x64x128xf32>
    %213 = vector.shape_cast %212 : vector<1x64x128xf32> to vector<64x128xf32>
    %214 = vector.shape_cast %211 : vector<64x128xf32> to vector<1x64x128xf32>
    tpu.vector_store %arg16[%c1_86, %c0_87, %c0_88], %214 {strides = array<i32>} : memref<2x64x128xf32, #tpu.memory_space<vmem>>, vector<1x64x128xf32>,
    return
  }
  func.func @transform_0(%arg0: i32) -> (i32, i32, i32) {
    %c0_i32 = arith.constant 0 : i32
    %c0_i32_0 = arith.constant 0 : i32
    %c0_i32_1 = arith.constant 0 : i32
    return %arg0, %c0_i32, %c0_i32_0 : i32, i32, i32
  }
  func.func @transform_1(%arg0: i32) -> (i32, i32, i32) {
    %c0_i32 = arith.constant 0 : i32
    %c0_i32_0 = arith.constant 0 : i32
    %c0_i32_1 = arith.constant 0 : i32
    return %arg0, %c0_i32, %c0_i32_0 : i32, i32, i32
  }
  func.func @transform_2(%arg0: i32) -> (i32, i32) {
    %c0_i32 = arith.constant 0 : i32
    %c0_i32_0 = arith.constant 0 : i32
    %c0_i32_1 = arith.constant 0 : i32
    return %c0_i32, %c0_i32_0 : i32, i32
  }
  func.func @transform_3(%arg0: i32) -> (i32, i32) {
    %c0_i32 = arith.constant 0 : i32
    %c0_i32_0 = arith.constant 0 : i32
    %c0_i32_1 = arith.constant 0 : i32
    return %c0_i32, %c0_i32_0 : i32, i32
  }
  func.func @transform_4(%arg0: i32) -> (i32, i32) {
    %c0_i32 = arith.constant 0 : i32
    %c0_i32_0 = arith.constant 0 : i32
    %c0_i32_1 = arith.constant 0 : i32
    return %c0_i32, %c0_i32_0 : i32, i32
  }
  func.func @transform_5(%arg0: i32) -> (i32, i32) {
    %c0_i32 = arith.constant 0 : i32
    %c0_i32_0 = arith.constant 0 : i32
    %c0_i32_1 = arith.constant 0 : i32
    return %c0_i32, %c0_i32_0 : i32, i32
  }
  func.func @transform_6(%arg0: i32) -> (i32, i32) {
    %c0_i32 = arith.constant 0 : i32
    %c0_i32_0 = arith.constant 0 : i32
    %c0_i32_1 = arith.constant 0 : i32
    return %c0_i32, %c0_i32_0 : i32, i32
  }
  func.func @transform_7(%arg0: i32) -> (i32, i32) {
    %c0_i32 = arith.constant 0 : i32
    %c0_i32_0 = arith.constant 0 : i32
    %c0_i32_1 = arith.constant 0 : i32
    return %c0_i32, %c0_i32_0 : i32, i32
  }
  func.func @transform_8(%arg0: i32) -> (i32, i32) {
    %c0_i32 = arith.constant 0 : i32
    %c0_i32_0 = arith.constant 0 : i32
    %c0_i32_1 = arith.constant 0 : i32
    return %c0_i32, %c0_i32_0 : i32, i32
  }
  func.func @transform_9(%arg0: i32) -> (i32, i32) {
    %c0_i32 = arith.constant 0 : i32
    %c0_i32_0 = arith.constant 0 : i32
    %c0_i32_1 = arith.constant 0 : i32
    return %c0_i32, %c0_i32_0 : i32, i32
  }
  func.func @transform_10(%arg0: i32) -> (i32, i32) {
    %c0_i32 = arith.constant 0 : i32
    %c0_i32_0 = arith.constant 0 : i32
    %c0_i32_1 = arith.constant 0 : i32
    return %c0_i32, %c0_i32_0 : i32, i32
  }
  func.func @transform_11(%arg0: i32) -> (i32, i32) {
    %c0_i32 = arith.constant 0 : i32
    %c0_i32_0 = arith.constant 0 : i32
    %c0_i32_1 = arith.constant 0 : i32
    return %c0_i32, %c0_i32_0 : i32, i32
  }
  func.func @transform_12(%arg0: i32) -> (i32, i32) {
    %c0_i32 = arith.constant 0 : i32
    %c0_i32_0 = arith.constant 0 : i32
    %c0_i32_1 = arith.constant 0 : i32
    return %c0_i32, %c0_i32_0 : i32, i32
  }
  func.func @transform_13(%arg0: i32) -> (i32, i32) {
    %c0_i32 = arith.constant 0 : i32
    %c0_i32_0 = arith.constant 0 : i32
    %c0_i32_1 = arith.constant 0 : i32
    return %c0_i32, %c0_i32_0 : i32, i32
  }
  func.func @transform_14(%arg0: i32) -> (i32, i32) {
    %c0_i32 = arith.constant 0 : i32
    %c0_i32_0 = arith.constant 0 : i32
    %c0_i32_1 = arith.constant 0 : i32
    return %c0_i32, %c0_i32_0 : i32, i32
  }
  func.func @transform_15(%arg0: i32) -> (i32, i32, i32) {
    %c0_i32 = arith.constant 0 : i32
    %c0_i32_0 = arith.constant 0 : i32
    %c0_i32_1 = arith.constant 0 : i32
    return %arg0, %c0_i32, %c0_i32_0 : i32, i32, i32
  }
}

</mosaic_0001>

<llo_original>
// kernel: tpu_custom_call.1
$region0: #{tpu_custom_call.1}
  #allocation0 [shape = 'u32[]', space=smem, size = 0x4, offset = 0x4, fixed_abs, tag = 'smem constant byte address 0x4 - core index']
  #allocation1 [shape = 'u32[144,128]{1,0:T(1,128)}', space=vmem, size = 0x12000, scoped, tag = 'internal scratch']
  %s0 = inlined_call_operand.vmem [shape: f32[4,32,128], index: 0, kind: input, shape index: {}]
  %s1 = inlined_call_operand.vmem [shape: bf16[4,16,128], index: 1, kind: input, shape index: {}]
  %s2 = inlined_call_operand.vmem [shape: bf16[384,16], index: 2, kind: input, shape index: {}]
  %s3 = inlined_call_operand.vmem [shape: f32[384,1], index: 3, kind: input, shape index: {}]
  %s4 = inlined_call_operand.vmem [shape: bf16[64,128], index: 4, kind: input, shape index: {}]
  %s5 = inlined_call_operand.vmem [shape: f32[64,1], index: 5, kind: input, shape index: {}]
  %s6 = inlined_call_operand.vmem [shape: bf16[64,128], index: 6, kind: input, shape index: {}]
  %s7 = inlined_call_operand.vmem [shape: f32[64,1], index: 7, kind: input, shape index: {}]
  %s8 = inlined_call_operand.vmem [shape: bf16[64,128], index: 8, kind: input, shape index: {}]
  %s9 = inlined_call_operand.vmem [shape: f32[64,1], index: 9, kind: input, shape index: {}]
  %s10 = inlined_call_operand.vmem [shape: bf16[32,32], index: 10, kind: input, shape index: {}]
  %s11 = inlined_call_operand.vmem [shape: f32[32,1], index: 11, kind: input, shape index: {}]
  %s12 = inlined_call_operand.vmem [shape: bf16[64,32], index: 12, kind: input, shape index: {}]
  %s13 = inlined_call_operand.vmem [shape: f32[64,1], index: 13, kind: input, shape index: {}]
  %s14 = inlined_call_operand.vmem [shape: bf16[64,32], index: 14, kind: input, shape index: {}]
  %s15 = inlined_call_operand.hbm [shape: f32[4,64,128], index: 15, kind: output, shape index: {}]
  %s16 = sld [smem:[#allocation0]]
  $region93: #{tpu_custom_call.1} parent=0
    _
  %s18 = ssub.s32 1, %s16
  %s19 = scalar_select 0, %s18, %s16
  $region1: #{tpu_custom_call.1} parent=0
    #allocation2 [shape = 'u8[131072]{0}', space=vmem, size = 0x20000, scoped, tag = 'output window, operand 0']
    #allocation3 [shape = 's32[2]{0}', space=sflag, size = 0x8, scoped, tag = 'scoped memory for tpu_custom_call.1']
    %20 = vsyncpa [#allocation3], 0
    %s21 = scalar_lea.sflag [#allocation3], 1
    %22 = vsyncpa %s21, 0
    loop: start=0, step=1, limit=4
    $region2: #{tpu_custom_call.1} parent=1 // loop_pre_header
      _
    $region3: #{tpu_custom_call.1} parent=1 // loop_header
      %s24 = sphi 0, %s28
      %p25 = scmp.ge.s32.totalorder %s24, 4
      %s34 = sphi 0, %s36
      %s37 = sphi 0, %s34
      %s38 = sphi 0, %s37
      %s54 = sphi 0, %s38
      %s60 = sphi 0, %s62
      %s63 = sphi 0, %s60
      %s64 = sphi 0, %s63
      %s80 = sphi 0, %s64
      %s84 = sphi 0, %s84
      %s86 = sphi 0, %s84
      %s87 = sphi 0, %s86
      %s101 = sphi 0, %s87
      %s105 = sphi 0, %s105
      %s107 = sphi 0, %s105
      %s108 = sphi 0, %s107
      %s122 = sphi 0, %s108
      %s126 = sphi 0, %s126
      %s128 = sphi 0, %s126
      %s129 = sphi 0, %s128
      %s143 = sphi 0, %s129
      %s147 = sphi 0, %s147
      %s149 = sphi 0, %s147
      %s150 = sphi 0, %s149
      %s164 = sphi 0, %s150
      %s168 = sphi 0, %s168
      %s170 = sphi 0, %s168
      %s171 = sphi 0, %s170
      %s185 = sphi 0, %s171
      %s189 = sphi 0, %s189
      %s191 = sphi 0, %s189
      %s192 = sphi 0, %s191
      %s206 = sphi 0, %s192
      %s210 = sphi 0, %s210
      %s212 = sphi 0, %s210
      %s213 = sphi 0, %s212
      %s227 = sphi 0, %s213
      %s231 = sphi 0, %s231
      %s233 = sphi 0, %s231
      %s234 = sphi 0, %s233
      %s248 = sphi 0, %s234
      %s252 = sphi 0, %s252
      %s254 = sphi 0, %s252
      %s255 = sphi 0, %s254
      %s269 = sphi 0, %s255
      %s273 = sphi 0, %s273
      %s275 = sphi 0, %s273
      %s276 = sphi 0, %s275
      %s290 = sphi 0, %s276
      %s294 = sphi 0, %s294
      %s296 = sphi 0, %s294
      %s297 = sphi 0, %s296
      %s311 = sphi 0, %s297
      %s315 = sphi 0, %s315
      %s317 = sphi 0, %s315
      %s318 = sphi 0, %s317
      %s332 = sphi 0, %s318
      %s336 = sphi 0, %s336
      %s338 = sphi 0, %s336
      %s339 = sphi 0, %s338
      %s353 = sphi 0, %s339
      %s359 = sphi 0, %s361
      %s362 = sphi 0, %s359
      %s363 = sphi 0, %s362
      %s379 = sphi 0, %s363
    $region4: #{tpu_custom_call.1} parent=1 // loop_header_branch
      %27 = sbr.rel (%p25) target = $region8
    $region5: #{tpu_custom_call.1} parent=1 // loop_body
      %s29 = ssub.s32 %s24, 1
      %s30 = ssub.s32 %s24, 2
      %s31 = sadd.s32 %s24, 1
      %s32 = ssub.s32 %s24, %s31
      %p33 = scmp.eq.s32.totalorder %s32, 0
      %s35 = sadd.s32 %s34, 1
      %s36 = scalar_select %p33, %s34, %s35
      %p39 = pneg %p33
      %p40 = scmp.eq.s32.totalorder %s24, 1
      %p41 = por %p39, %p40
      %p42 = scmp.ne.s32.totalorder %s34, %s37
      %p43 = scmp.eq.s32.totalorder %s24, 0
      %p44 = por %p42, %p43
      %p45 = scmp.ne.s32.totalorder %s34, %s37
      %p46 = scmp.eq.s32.totalorder %s29, 1
      %p47 = por %p45, %p46
      %p48 = scmp.ne.s32.totalorder %s37, %s38
      %p49 = scmp.eq.s32.totalorder %s29, 0
      %p50 = por %p48, %p49
      %p51 = scmp.ne.s32.totalorder %s37, %s38
      %p52 = scmp.eq.s32.totalorder %s30, 1
      %p53 = por %p51, %p52
      %p55 = scmp.ne.s32.totalorder %s38, %s54
      %p56 = scmp.eq.s32.totalorder %s30, 0
      %p57 = por %p55, %p56
      %s58 = ssub.s32 %s24, %s31
      %p59 = scmp.eq.s32.totalorder %s58, 0
      %s61 = sadd.s32 %s60, 1
      %s62 = scalar_select %p59, %s60, %s61
      %p65 = pneg %p59
      %p66 = scmp.eq.s32.totalorder %s24, 1
      %p67 = por %p65, %p66
      %p68 = scmp.ne.s32.totalorder %s60, %s63
      %p69 = scmp.eq.s32.totalorder %s24, 0
      %p70 = por %p68, %p69
      %p71 = scmp.ne.s32.totalorder %s60, %s63
      %p72 = scmp.eq.s32.totalorder %s29, 1
      %p73 = por %p71, %p72
      %p74 = scmp.ne.s32.totalorder %s63, %s64
      %p75 = scmp.eq.s32.totalorder %s29, 0
      %p76 = por %p74, %p75
      %p77 = scmp.ne.s32.totalorder %s63, %s64
      %p78 = scmp.eq.s32.totalorder %s30, 1
      %p79 = por %p77, %p78
      %p81 = scmp.ne.s32.totalorder %s64, %s80
      %p82 = scmp.eq.s32.totalorder %s30, 0
      %p83 = por %p81, %p82
      %s85 = sadd.s32 %s84, 1
      %p88 = scmp.eq.s32.totalorder %s24, 1
      %p89 = scmp.ne.s32.totalorder %s84, %s86
      %p90 = scmp.eq.s32.totalorder %s24, 0
      %p91 = por %p89, %p90
      %p92 = scmp.ne.s32.totalorder %s84, %s86
      %p93 = scmp.eq.s32.totalorder %s29, 1
      %p94 = por %p92, %p93
      %p95 = scmp.ne.s32.totalorder %s86, %s87
      %p96 = scmp.eq.s32.totalorder %s29, 0
      %p97 = por %p95, %p96
      %p98 = scmp.ne.s32.totalorder %s86, %s87
      %p99 = scmp.eq.s32.totalorder %s30, 1
      %p100 = por %p98, %p99
      %p102 = scmp.ne.s32.totalorder %s87, %s101
      %p103 = scmp.eq.s32.totalorder %s30, 0
      %p104 = por %p102, %p103
      %s106 = sadd.s32 %s105, 1
      %p109 = scmp.eq.s32.totalorder %s24, 1
      %p110 = scmp.ne.s32.totalorder %s105, %s107
      %p111 = scmp.eq.s32.totalorder %s24, 0
      %p112 = por %p110, %p111
      %p113 = scmp.ne.s32.totalorder %s105, %s107
      %p114 = scmp.eq.s32.totalorder %s29, 1
      %p115 = por %p113, %p114
      %p116 = scmp.ne.s32.totalorder %s107, %s108
      %p117 = scmp.eq.s32.totalorder %s29, 0
      %p118 = por %p116, %p117
      %p119 = scmp.ne.s32.totalorder %s107, %s108
      %p120 = scmp.eq.s32.totalorder %s30, 1
      %p121 = por %p119, %p120
      %p123 = scmp.ne.s32.totalorder %s108, %s122
      %p124 = scmp.eq.s32.totalorder %s30, 0
      %p125 = por %p123, %p124
      %s127 = sadd.s32 %s126, 1
      %p130 = scmp.eq.s32.totalorder %s24, 1
      %p131 = scmp.ne.s32.totalorder %s126, %s128
      %p132 = scmp.eq.s32.totalorder %s24, 0
      %p133 = por %p131, %p132
      %p134 = scmp.ne.s32.totalorder %s126, %s128
      %p135 = scmp.eq.s32.totalorder %s29, 1
      %p136 = por %p134, %p135
      %p137 = scmp.ne.s32.totalorder %s128, %s129
      %p138 = scmp.eq.s32.totalorder %s29, 0
      %p139 = por %p137, %p138
      %p140 = scmp.ne.s32.totalorder %s128, %s129
      %p141 = scmp.eq.s32.totalorder %s30, 1
      %p142 = por %p140, %p141
      %p144 = scmp.ne.s32.totalorder %s129, %s143
      %p145 = scmp.eq.s32.totalorder %s30, 0
      %p146 = por %p144, %p145
      %s148 = sadd.s32 %s147, 1
      %p151 = scmp.eq.s32.totalorder %s24, 1
      %p152 = scmp.ne.s32.totalorder %s147, %s149
      %p153 = scmp.eq.s32.totalorder %s24, 0
      %p154 = por %p152, %p153
      %p155 = scmp.ne.s32.totalorder %s147, %s149
      %p156 = scmp.eq.s32.totalorder %s29, 1
      %p157 = por %p155, %p156
      %p158 = scmp.ne.s32.totalorder %s149, %s150
      %p159 = scmp.eq.s32.totalorder %s29, 0
      %p160 = por %p158, %p159
      %p161 = scmp.ne.s32.totalorder %s149, %s150
      %p162 = scmp.eq.s32.totalorder %s30, 1
      %p163 = por %p161, %p162
      %p165 = scmp.ne.s32.totalorder %s150, %s164
      %p166 = scmp.eq.s32.totalorder %s30, 0
      %p167 = por %p165, %p166
      %s169 = sadd.s32 %s168, 1
      %p172 = scmp.eq.s32.totalorder %s24, 1
      %p173 = scmp.ne.s32.totalorder %s168, %s170
      %p174 = scmp.eq.s32.totalorder %s24, 0
      %p175 = por %p173, %p174
      %p176 = scmp.ne.s32.totalorder %s168, %s170
      %p177 = scmp.eq.s32.totalorder %s29, 1
      %p178 = por %p176, %p177
      %p179 = scmp.ne.s32.totalorder %s170, %s171
      %p180 = scmp.eq.s32.totalorder %s29, 0
      %p181 = por %p179, %p180
      %p182 = scmp.ne.s32.totalorder %s170, %s171
      %p183 = scmp.eq.s32.totalorder %s30, 1
      %p184 = por %p182, %p183
      %p186 = scmp.ne.s32.totalorder %s171, %s185
      %p187 = scmp.eq.s32.totalorder %s30, 0
      %p188 = por %p186, %p187
      %s190 = sadd.s32 %s189, 1
      %p193 = scmp.eq.s32.totalorder %s24, 1
      %p194 = scmp.ne.s32.totalorder %s189, %s191
      %p195 = scmp.eq.s32.totalorder %s24, 0
      %p196 = por %p194, %p195
      %p197 = scmp.ne.s32.totalorder %s189, %s191
      %p198 = scmp.eq.s32.totalorder %s29, 1
      %p199 = por %p197, %p198
      %p200 = scmp.ne.s32.totalorder %s191, %s192
      %p201 = scmp.eq.s32.totalorder %s29, 0
      %p202 = por %p200, %p201
      %p203 = scmp.ne.s32.totalorder %s191, %s192
      %p204 = scmp.eq.s32.totalorder %s30, 1
      %p205 = por %p203, %p204
      %p207 = scmp.ne.s32.totalorder %s192, %s206
      %p208 = scmp.eq.s32.totalorder %s30, 0
      %p209 = por %p207, %p208
      %s211 = sadd.s32 %s210, 1
      %p214 = scmp.eq.s32.totalorder %s24, 1
      %p215 = scmp.ne.s32.totalorder %s210, %s212
      %p216 = scmp.eq.s32.totalorder %s24, 0
      %p217 = por %p215, %p216
      %p218 = scmp.ne.s32.totalorder %s210, %s212
      %p219 = scmp.eq.s32.totalorder %s29, 1
      %p220 = por %p218, %p219
      %p221 = scmp.ne.s32.totalorder %s212, %s213
      %p222 = scmp.eq.s32.totalorder %s29, 0
      %p223 = por %p221, %p222
      %p224 = scmp.ne.s32.totalorder %s212, %s213
      %p225 = scmp.eq.s32.totalorder %s30, 1
      %p226 = por %p224, %p225
      %p228 = scmp.ne.s32.totalorder %s213, %s227
      %p229 = scmp.eq.s32.totalorder %s30, 0
      %p230 = por %p228, %p229
      %s232 = sadd.s32 %s231, 1
      %p235 = scmp.eq.s32.totalorder %s24, 1
      %p236 = scmp.ne.s32.totalorder %s231, %s233
      %p237 = scmp.eq.s32.totalorder %s24, 0
      %p238 = por %p236, %p237
      %p239 = scmp.ne.s32.totalorder %s231, %s233
      %p240 = scmp.eq.s32.totalorder %s29, 1
      %p241 = por %p239, %p240
      %p242 = scmp.ne.s32.totalorder %s233, %s234
      %p243 = scmp.eq.s32.totalorder %s29, 0
      %p244 = por %p242, %p243
      %p245 = scmp.ne.s32.totalorder %s233, %s234
      %p246 = scmp.eq.s32.totalorder %s30, 1
      %p247 = por %p245, %p246
      %p249 = scmp.ne.s32.totalorder %s234, %s248
      %p250 = scmp.eq.s32.totalorder %s30, 0
      %p251 = por %p249, %p250
      %s253 = sadd.s32 %s252, 1
      %p256 = scmp.eq.s32.totalorder %s24, 1
      %p257 = scmp.ne.s32.totalorder %s252, %s254
      %p258 = scmp.eq.s32.totalorder %s24, 0
      %p259 = por %p257, %p258
      %p260 = scmp.ne.s32.totalorder %s252, %s254
      %p261 = scmp.eq.s32.totalorder %s29, 1
      %p262 = por %p260, %p261
      %p263 = scmp.ne.s32.totalorder %s254, %s255
      %p264 = scmp.eq.s32.totalorder %s29, 0
      %p265 = por %p263, %p264
      %p266 = scmp.ne.s32.totalorder %s254, %s255
      %p267 = scmp.eq.s32.totalorder %s30, 1
      %p268 = por %p266, %p267
      %p270 = scmp.ne.s32.totalorder %s255, %s269
      %p271 = scmp.eq.s32.totalorder %s30, 0
      %p272 = por %p270, %p271
      %s274 = sadd.s32 %s273, 1
      %p277 = scmp.eq.s32.totalorder %s24, 1
      %p278 = scmp.ne.s32.totalorder %s273, %s275
      %p279 = scmp.eq.s32.totalorder %s24, 0
      %p280 = por %p278, %p279
      %p281 = scmp.ne.s32.totalorder %s273, %s275
      %p282 = scmp.eq.s32.totalorder %s29, 1
      %p283 = por %p281, %p282
      %p284 = scmp.ne.s32.totalorder %s275, %s276
      %p285 = scmp.eq.s32.totalorder %s29, 0
      %p286 = por %p284, %p285
      %p287 = scmp.ne.s32.totalorder %s275, %s276
      %p288 = scmp.eq.s32.totalorder %s30, 1
      %p289 = por %p287, %p288
      %p291 = scmp.ne.s32.totalorder %s276, %s290
      %p292 = scmp.eq.s32.totalorder %s30, 0
      %p293 = por %p291, %p292
      %s295 = sadd.s32 %s294, 1
      %p298 = scmp.eq.s32.totalorder %s24, 1
      %p299 = scmp.ne.s32.totalorder %s294, %s296
      %p300 = scmp.eq.s32.totalorder %s24, 0
      %p301 = por %p299, %p300
      %p302 = scmp.ne.s32.totalorder %s294, %s296
      %p303 = scmp.eq.s32.totalorder %s29, 1
      %p304 = por %p302, %p303
      %p305 = scmp.ne.s32.totalorder %s296, %s297
      %p306 = scmp.eq.s32.totalorder %s29, 0
      %p307 = por %p305, %p306
      %p308 = scmp.ne.s32.totalorder %s296, %s297
      %p309 = scmp.eq.s32.totalorder %s30, 1
      %p310 = por %p308, %p309
      %p312 = scmp.ne.s32.totalorder %s297, %s311
      %p313 = scmp.eq.s32.totalorder %s30, 0
      %p314 = por %p312, %p313
      %s316 = sadd.s32 %s315, 1
      %p319 = scmp.eq.s32.totalorder %s24, 1
      %p320 = scmp.ne.s32.totalorder %s315, %s317
      %p321 = scmp.eq.s32.totalorder %s24, 0
      %p322 = por %p320, %p321
      %p323 = scmp.ne.s32.totalorder %s315, %s317
      %p324 = scmp.eq.s32.totalorder %s29, 1
      %p325 = por %p323, %p324
      %p326 = scmp.ne.s32.totalorder %s317, %s318
      %p327 = scmp.eq.s32.totalorder %s29, 0
      %p328 = por %p326, %p327
      %p329 = scmp.ne.s32.totalorder %s317, %s318
      %p330 = scmp.eq.s32.totalorder %s30, 1
      %p331 = por %p329, %p330
      %p333 = scmp.ne.s32.totalorder %s318, %s332
      %p334 = scmp.eq.s32.totalorder %s30, 0
      %p335 = por %p333, %p334
      %s337 = sadd.s32 %s336, 1
      %p340 = scmp.eq.s32.totalorder %s24, 1
      %p341 = scmp.ne.s32.totalorder %s336, %s338
      %p342 = scmp.eq.s32.totalorder %s24, 0
      %p343 = por %p341, %p342
      %p344 = scmp.ne.s32.totalorder %s336, %s338
      %p345 = scmp.eq.s32.totalorder %s29, 1
      %p346 = por %p344, %p345
      %p347 = scmp.ne.s32.totalorder %s338, %s339
      %p348 = scmp.eq.s32.totalorder %s29, 0
      %p349 = por %p347, %p348
      %p350 = scmp.ne.s32.totalorder %s338, %s339
      %p351 = scmp.eq.s32.totalorder %s30, 1
      %p352 = por %p350, %p351
      %p354 = scmp.ne.s32.totalorder %s339, %s353
      %p355 = scmp.eq.s32.totalorder %s30, 0
      %p356 = por %p354, %p355
      %s357 = ssub.s32 %s24, %s31
      %p358 = scmp.eq.s32.totalorder %s357, 0
      %s360 = sadd.s32 %s359, 1
      %s361 = scalar_select %p358, %s359, %s360
      %p364 = pneg %p358
      %p365 = scmp.eq.s32.totalorder %s24, 1
      %p366 = por %p364, %p365
      %p367 = scmp.ne.s32.totalorder %s359, %s362
      %p368 = scmp.eq.s32.totalorder %s24, 0
      %p369 = por %p367, %p368
      %p370 = scmp.ne.s32.totalorder %s359, %s362
      %p371 = scmp.eq.s32.totalorder %s29, 1
      %p372 = por %p370, %p371
      %p373 = scmp.ne.s32.totalorder %s362, %s363
      %p374 = scmp.eq.s32.totalorder %s29, 0
      %p375 = por %p373, %p374
      %p376 = scmp.ne.s32.totalorder %s362, %s363
      %p377 = scmp.eq.s32.totalorder %s30, 1
      %p378 = por %p376, %p377
      %p380 = scmp.ne.s32.totalorder %s363, %s379
      %p381 = scmp.eq.s32.totalorder %s30, 0
      %p382 = por %p380, %p381
      %p383 = scmp.le.s32.totalorder 1, %s24
      %p384 = scmp.lt.s32.totalorder %s24, 3
      %p385 = pnand %p383, %p384
      %p386 = pneg %p385
      // Predicated region
      $region9: #{tpu_custom_call.1} parent=5 // pred_check
        _
      $region10: #{tpu_custom_call.1} parent=5 // pred_check_branch
        %388 = sbr.rel (%p385) target = $region12
      $region11: #{tpu_custom_call.1} parent=5 // pred_region
        %s389 = ssub.s32 %s24, 1
        // Predicated region
        $region13: #{tpu_custom_call.1} parent=11 // pred_check
          %p390 = pneg %p97
        $region14: #{tpu_custom_call.1} parent=11 // pred_check_branch
          %392 = sbr.rel (%p390) target = $region16
        $region15: #{tpu_custom_call.1} parent=11 // pred_region
          _
        $region16: #{tpu_custom_call.1} parent=11 // pred_fallthru
          _
        // Predicated region
        $region17: #{tpu_custom_call.1} parent=11 // pred_check
          %p393 = pneg %p118
        $region18: #{tpu_custom_call.1} parent=11 // pred_check_branch
          %395 = sbr.rel (%p393) target = $region20
        $region19: #{tpu_custom_call.1} parent=11 // pred_region
          _
        $region20: #{tpu_custom_call.1} parent=11 // pred_fallthru
          _
        // Predicated region
        $region21: #{tpu_custom_call.1} parent=11 // pred_check
          %p396 = pneg %p139
        $region22: #{tpu_custom_call.1} parent=11 // pred_check_branch
          %398 = sbr.rel (%p396) target = $region24
        $region23: #{tpu_custom_call.1} parent=11 // pred_region
          _
        $region24: #{tpu_custom_call.1} parent=11 // pred_fallthru
          _
        // Predicated region
        $region25: #{tpu_custom_call.1} parent=11 // pred_check
          %p399 = pneg %p160
        $region26: #{tpu_custom_call.1} parent=11 // pred_check_branch
          %401 = sbr.rel (%p399) target = $region28
        $region27: #{tpu_custom_call.1} parent=11 // pred_region
          _
        $region28: #{tpu_custom_call.1} parent=11 // pred_fallthru
          _
        // Predicated region
        $region29: #{tpu_custom_call.1} parent=11 // pred_check
          %p402 = pneg %p181
        $region30: #{tpu_custom_call.1} parent=11 // pred_check_branch
          %404 = sbr.rel (%p402) target = $region32
        $region31: #{tpu_custom_call.1} parent=11 // pred_region
          _
        $region32: #{tpu_custom_call.1} parent=11 // pred_fallthru
          _
        // Predicated region
        $region33: #{tpu_custom_call.1} parent=11 // pred_check
          %p405 = pneg %p202
        $region34: #{tpu_custom_call.1} parent=11 // pred_check_branch
          %407 = sbr.rel (%p405) target = $region36
        $region35: #{tpu_custom_call.1} parent=11 // pred_region
          _
        $region36: #{tpu_custom_call.1} parent=11 // pred_fallthru
          _
        // Predicated region
        $region37: #{tpu_custom_call.1} parent=11 // pred_check
          %p408 = pneg %p223
        $region38: #{tpu_custom_call.1} parent=11 // pred_check_branch
          %410 = sbr.rel (%p408) target = $region40
        $region39: #{tpu_custom_call.1} parent=11 // pred_region
          _
        $region40: #{tpu_custom_call.1} parent=11 // pred_fallthru
          _
        // Predicated region
        $region41: #{tpu_custom_call.1} parent=11 // pred_check
          %p411 = pneg %p244
        $region42: #{tpu_custom_call.1} parent=11 // pred_check_branch
          %413 = sbr.rel (%p411) target = $region44
        $region43: #{tpu_custom_call.1} parent=11 // pred_region
          _
        $region44: #{tpu_custom_call.1} parent=11 // pred_fallthru
          _
        // Predicated region
        $region45: #{tpu_custom_call.1} parent=11 // pred_check
          %p414 = pneg %p265
        $region46: #{tpu_custom_call.1} parent=11 // pred_check_branch
          %416 = sbr.rel (%p414) target = $region48
        $region47: #{tpu_custom_call.1} parent=11 // pred_region
          _
        $region48: #{tpu_custom_call.1} parent=11 // pred_fallthru
          _
        // Predicated region
        $region49: #{tpu_custom_call.1} parent=11 // pred_check
          %p417 = pneg %p286
        $region50: #{tpu_custom_call.1} parent=11 // pred_check_branch
          %419 = sbr.rel (%p417) target = $region52
        $region51: #{tpu_custom_call.1} parent=11 // pred_region
          _
        $region52: #{tpu_custom_call.1} parent=11 // pred_fallthru
          _
        // Predicated region
        $region53: #{tpu_custom_call.1} parent=11 // pred_check
          %p420 = pneg %p307
        $region54: #{tpu_custom_call.1} parent=11 // pred_check_branch
          %422 = sbr.rel (%p420) target = $region56
        $region55: #{tpu_custom_call.1} parent=11 // pred_region
          _
        $region56: #{tpu_custom_call.1} parent=11 // pred_fallthru
          _
        // Predicated region
        $region57: #{tpu_custom_call.1} parent=11 // pred_check
          %p423 = pneg %p328
        $region58: #{tpu_custom_call.1} parent=11 // pred_check_branch
          %425 = sbr.rel (%p423) target = $region60
        $region59: #{tpu_custom_call.1} parent=11 // pred_region
          _
        $region60: #{tpu_custom_call.1} parent=11 // pred_fallthru
          _
        // Predicated region
        $region61: #{tpu_custom_call.1} parent=11 // pred_check
          %p426 = pneg %p349
        $region62: #{tpu_custom_call.1} parent=11 // pred_check_branch
          %428 = sbr.rel (%p426) target = $region64
        $region63: #{tpu_custom_call.1} parent=11 // pred_region
          _
        $region64: #{tpu_custom_call.1} parent=11 // pred_fallthru
          _
      $region12: #{tpu_custom_call.1} parent=5 // pred_fallthru
        _
      %p429 = scmp.lt.s32.totalorder %s24, 2
      // Predicated region
      $region65: #{tpu_custom_call.1} parent=5 // pred_check
        %p430 = pneg %p429
      $region66: #{tpu_custom_call.1} parent=5 // pred_check_branch
        %432 = sbr.rel (%p430) target = $region68
      $region67: #{tpu_custom_call.1} parent=5 // pred_region
        // Predicated region
        $region69: #{tpu_custom_call.1} parent=67 // pred_check
          %p433 = pneg %p44
        $region70: #{tpu_custom_call.1} parent=67 // pred_check_branch
          %435 = sbr.rel (%p433) target = $region72
        $region71: #{tpu_custom_call.1} parent=67 // pred_region
          %s436 = smul.u32 2, %s24
          %p437 = scmp.lt.s32.totalorder %s436, 3
          %s438 = scalar_select %p437, %s436, 3
          %s439 = smul.addr %s438, 4
          %s440 = smul.addr %s439, 8
          %s441 = scalar_lea.vmem %s0, %s440
          %s442 = smul.u32 2, %s24
        $region72: #{tpu_custom_call.1} parent=67 // pred_fallthru
          _
        // Predicated region
        $region73: #{tpu_custom_call.1} parent=67 // pred_check
          %p443 = pneg %p70
        $region74: #{tpu_custom_call.1} parent=67 // pred_check_branch
          %445 = sbr.rel (%p443) target = $region76
        $region75: #{tpu_custom_call.1} parent=67 // pred_region
          %s446 = smul.u32 2, %s24
          %p447 = scmp.lt.s32.totalorder %s446, 3
          %s448 = scalar_select %p447, %s446, 3
          %s449 = smul.addr %s448, 2
          %s450 = smul.addr %s449, 4
          %s451 = scalar_lea.vmem %s1, %s450
          %s452 = smul.u32 2, %s24
        $region76: #{tpu_custom_call.1} parent=67 // pred_fallthru
          _
      $region68: #{tpu_custom_call.1} parent=5 // pred_fallthru
        _
      %p453 = scmp.le.s32.totalorder 1, %s24
      %p454 = scmp.lt.s32.totalorder %s24, 3
      %p455 = pnand %p453, %p454
      %p456 = pneg %p455
      // Predicated region
      $region77: #{tpu_custom_call.1} parent=5 // pred_check
        _
      $region78: #{tpu_custom_call.1} parent=5 // pred_check_branch
        %458 = sbr.rel (%p455) target = $region80
      $region79: #{tpu_custom_call.1} parent=5 // pred_region
        %s459 = ssub.s32 %s24, 1
        %s460 = smul.u32 2, %s29
        %p461 = scmp.lt.s32.totalorder %s460, 3
        %s462 = scalar_select %p461, %s460, 3
        %s463 = smul.addr %s462, 4
        %s464 = smul.addr %s463, 8
        %s465 = scalar_lea.vmem %s0, %s464
        %p466 = pneg %p50
        %p467 = pneg %p47
        %s468 = smul.u32 2, %s29
        %p469 = scmp.lt.s32.totalorder %s468, 3
        %s470 = scalar_select %p469, %s468, 3
        %s471 = smul.addr %s470, 2
        %s472 = smul.addr %s471, 4
        %s473 = scalar_lea.vmem %s1, %s472
        %p474 = pneg %p76
        %p475 = pneg %p73
        %p476 = pneg %p97
        %p477 = pneg %p94
        %p478 = pneg %p118
        %p479 = pneg %p115
        %p480 = pneg %p139
        %p481 = pneg %p136
        %p482 = pneg %p160
        %p483 = pneg %p157
        %p484 = pneg %p181
        %p485 = pneg %p178
        %p486 = pneg %p202
        %p487 = pneg %p199
        %p488 = pneg %p223
        %p489 = pneg %p220
        %p490 = pneg %p244
        %p491 = pneg %p241
        %p492 = pneg %p265
        %p493 = pneg %p262
        %p494 = pneg %p286
        %p495 = pneg %p283
        %p496 = pneg %p307
        %p497 = pneg %p304
        %p498 = pneg %p328
        %p499 = pneg %p325
        %p500 = pneg %p349
        %p501 = pneg %p346
        %p502 = pneg %p375
        %p503 = pneg %p372
        %s504 = sand.u32 %s362, 1
        %s505 = scalar_lea.sflag [#allocation3], %s504
        %s506 = sand.u32 %s362, 1
        %s507 = smul.addr %s506, 128
        %s508 = scalar_lea.vmem [#allocation2], %s507
        %s509 = smul.u32 2, %s29
        %p510 = scmp.lt.s32.totalorder %s509, 3
        %s511 = scalar_select %p510, %s509, 3
        %s512 = smul.addr %s511, 4
        %s513 = smul.addr %s512, 8
        %s514 = scalar_lea.vmem %s0, %s513
        %s515 = smul.u32 2, %s29
        %s516 = smul.u32 2, %s29
        %p517 = scmp.lt.s32.totalorder %s516, 3
        %s518 = scalar_select %p517, %s516, 3
        %s519 = smul.addr %s518, 2
        %s520 = smul.addr %s519, 4
        %s521 = scalar_lea.vmem %s1, %s520
        %s522 = smul.u32 2, %s29
        %s523 = smul.u32 2, %s29
        %v525 = vld [vmem:[%s2] sm:$0xf]
        %v526 = vld [vmem:[%s2 + $0x4] sm:$0xf]
        %v527 = vld [vmem:[%s2 + $0x8] sm:$0xf]
        %v528 = vld [vmem:[%s2 + $0xc] sm:$0xf]
        %v529 = vld [vmem:[%s2 + $0x10] sm:$0xf]
        %v530 = vld [vmem:[%s2 + $0x14] sm:$0xf]
        %v531 = vld [vmem:[%s2 + $0x18] sm:$0xf]
        %v532 = vld [vmem:[%s2 + $0x1c] sm:$0xf]
        %v533 = vld [vmem:[%s2 + $0x20] sm:$0xf]
        %v534 = vld [vmem:[%s2 + $0x24] sm:$0xf]
        %v535 = vld [vmem:[%s2 + $0x28] sm:$0xf]
        %v536 = vld [vmem:[%s2 + $0x2c] sm:$0xf]
        %v537 = vld [vmem:[%s2 + $0x30] sm:$0xf]
        %v538 = vld [vmem:[%s2 + $0x34] sm:$0xf]
        %v539 = vld [vmem:[%s2 + $0x38] sm:$0xf]
        %v540 = vld [vmem:[%s2 + $0x3c] sm:$0xf]
        %v541 = vld [vmem:[%s2 + $0x40] sm:$0xf]
        %v542 = vld [vmem:[%s2 + $0x44] sm:$0xf]
        %v543 = vld [vmem:[%s2 + $0x48] sm:$0xf]
        %v544 = vld [vmem:[%s2 + $0x4c] sm:$0xf]
        %v545 = vld [vmem:[%s2 + $0x50] sm:$0xf]
        %v546 = vld [vmem:[%s2 + $0x54] sm:$0xf]
        %v547 = vld [vmem:[%s2 + $0x58] sm:$0xf]
        %v548 = vld [vmem:[%s2 + $0x5c] sm:$0xf]
        %v549 = vld [vmem:[%s2 + $0x60] sm:$0xf]
        %v550 = vld [vmem:[%s2 + $0x64] sm:$0xf]
        %v551 = vld [vmem:[%s2 + $0x68] sm:$0xf]
        %v552 = vld [vmem:[%s2 + $0x6c] sm:$0xf]
        %v553 = vld [vmem:[%s2 + $0x70] sm:$0xf]
        %v554 = vld [vmem:[%s2 + $0x74] sm:$0xf]
        %v555 = vld [vmem:[%s2 + $0x78] sm:$0xf]
        %v556 = vld [vmem:[%s2 + $0x7c] sm:$0xf]
        %v557 = vld [vmem:[%s2 + $0x80] sm:$0xf]
        %v558 = vld [vmem:[%s2 + $0x84] sm:$0xf]
        %v559 = vld [vmem:[%s2 + $0x88] sm:$0xf]
        %v560 = vld [vmem:[%s2 + $0x8c] sm:$0xf]
        %v561 = vld [vmem:[%s2 + $0x90] sm:$0xf]
        %v562 = vld [vmem:[%s2 + $0x94] sm:$0xf]
        %v563 = vld [vmem:[%s2 + $0x98] sm:$0xf]
        %v564 = vld [vmem:[%s2 + $0x9c] sm:$0xf]
        %v565 = vld [vmem:[%s2 + $0xa0] sm:$0xf]
        %v566 = vld [vmem:[%s2 + $0xa4] sm:$0xf]
        %v567 = vld [vmem:[%s2 + $0xa8] sm:$0xf]
        %v568 = vld [vmem:[%s2 + $0xac] sm:$0xf]
        %v569 = vld [vmem:[%s2 + $0xb0] sm:$0xf]
        %v570 = vld [vmem:[%s2 + $0xb4] sm:$0xf]
        %v571 = vld [vmem:[%s2 + $0xb8] sm:$0xf]
        %v572 = vld [vmem:[%s2 + $0xbc] sm:$0xf]
        %v573 = vld [vmem:[%s3] sm:$0xff]
        %v574 = vld [vmem:[%s3 + $0x8] sm:$0xff]
        %v575 = vld [vmem:[%s3 + $0x10] sm:$0xff]
        %v576 = vld [vmem:[%s3 + $0x18] sm:$0xff]
        %v577 = vld [vmem:[%s3 + $0x20] sm:$0xff]
        %v578 = vld [vmem:[%s3 + $0x28] sm:$0xff]
        %v579 = vld [vmem:[%s3 + $0x30] sm:$0xff]
        %v580 = vld [vmem:[%s3 + $0x38] sm:$0xff]
        %v581 = vld [vmem:[%s3 + $0x40] sm:$0xff]
        %v582 = vld [vmem:[%s3 + $0x48] sm:$0xff]
        %v583 = vld [vmem:[%s3 + $0x50] sm:$0xff]
        %v584 = vld [vmem:[%s3 + $0x58] sm:$0xff]
        %v585 = vld [vmem:[%s3 + $0x60] sm:$0xff]
        %v586 = vld [vmem:[%s3 + $0x68] sm:$0xff]
        %v587 = vld [vmem:[%s3 + $0x70] sm:$0xff]
        %v588 = vld [vmem:[%s3 + $0x78] sm:$0xff]
        %v589 = vld [vmem:[%s3 + $0x80] sm:$0xff]
        %v590 = vld [vmem:[%s3 + $0x88] sm:$0xff]
        %v591 = vld [vmem:[%s3 + $0x90] sm:$0xff]
        %v592 = vld [vmem:[%s3 + $0x98] sm:$0xff]
        %v593 = vld [vmem:[%s3 + $0xa0] sm:$0xff]
        %v594 = vld [vmem:[%s3 + $0xa8] sm:$0xff]
        %v595 = vld [vmem:[%s3 + $0xb0] sm:$0xff]
        %v596 = vld [vmem:[%s3 + $0xb8] sm:$0xff]
        %v597 = vld [vmem:[%s3 + $0xc0] sm:$0xff]
        %v598 = vld [vmem:[%s3 + $0xc8] sm:$0xff]
        %v599 = vld [vmem:[%s3 + $0xd0] sm:$0xff]
        %v600 = vld [vmem:[%s3 + $0xd8] sm:$0xff]
        %v601 = vld [vmem:[%s3 + $0xe0] sm:$0xff]
        %v602 = vld [vmem:[%s3 + $0xe8] sm:$0xff]
        %v603 = vld [vmem:[%s3 + $0xf0] sm:$0xff]
        %v604 = vld [vmem:[%s3 + $0xf8] sm:$0xff]
        %v605 = vld [vmem:[%s3 + $0x100] sm:$0xff]
        %v606 = vld [vmem:[%s3 + $0x108] sm:$0xff]
        %v607 = vld [vmem:[%s3 + $0x110] sm:$0xff]
        %v608 = vld [vmem:[%s3 + $0x118] sm:$0xff]
        %v609 = vld [vmem:[%s3 + $0x120] sm:$0xff]
        %v610 = vld [vmem:[%s3 + $0x128] sm:$0xff]
        %v611 = vld [vmem:[%s3 + $0x130] sm:$0xff]
        %v612 = vld [vmem:[%s3 + $0x138] sm:$0xff]
        %v613 = vld [vmem:[%s3 + $0x140] sm:$0xff]
        %v614 = vld [vmem:[%s3 + $0x148] sm:$0xff]
        %v615 = vld [vmem:[%s3 + $0x150] sm:$0xff]
        %v616 = vld [vmem:[%s3 + $0x158] sm:$0xff]
        %v617 = vld [vmem:[%s3 + $0x160] sm:$0xff]
        %v618 = vld [vmem:[%s3 + $0x168] sm:$0xff]
        %v619 = vld [vmem:[%s3 + $0x170] sm:$0xff]
        %v620 = vld [vmem:[%s3 + $0x178] sm:$0xff]
        %v621 = vld [vmem:[%s4] sm:$0xf]
        %v622 = vld [vmem:[%s4 + $0x4] sm:$0xf]
        %v623 = vld [vmem:[%s4 + $0x8] sm:$0xf]
        %v624 = vld [vmem:[%s4 + $0xc] sm:$0xf]
        %v625 = vld [vmem:[%s4 + $0x10] sm:$0xf]
        %v626 = vld [vmem:[%s4 + $0x14] sm:$0xf]
        %v627 = vld [vmem:[%s4 + $0x18] sm:$0xf]
        %v628 = vld [vmem:[%s4 + $0x1c] sm:$0xf]
        %v629 = vld [vmem:[%s5] sm:$0xff]
        %v630 = vld [vmem:[%s5 + $0x8] sm:$0xff]
        %v631 = vld [vmem:[%s5 + $0x10] sm:$0xff]
        %v632 = vld [vmem:[%s5 + $0x18] sm:$0xff]
        %v633 = vld [vmem:[%s5 + $0x20] sm:$0xff]
        %v634 = vld [vmem:[%s5 + $0x28] sm:$0xff]
        %v635 = vld [vmem:[%s5 + $0x30] sm:$0xff]
        %v636 = vld [vmem:[%s5 + $0x38] sm:$0xff]
        %v637 = vld [vmem:[%s6] sm:$0xf]
        %v638 = vld [vmem:[%s6 + $0x4] sm:$0xf]
        %v639 = vld [vmem:[%s6 + $0x8] sm:$0xf]
        %v640 = vld [vmem:[%s6 + $0xc] sm:$0xf]
        %v641 = vld [vmem:[%s6 + $0x10] sm:$0xf]
        %v642 = vld [vmem:[%s6 + $0x14] sm:$0xf]
        %v643 = vld [vmem:[%s6 + $0x18] sm:$0xf]
        %v644 = vld [vmem:[%s6 + $0x1c] sm:$0xf]
        %v645 = vld [vmem:[%s7] sm:$0xff]
        %v646 = vld [vmem:[%s7 + $0x8] sm:$0xff]
        %v647 = vld [vmem:[%s7 + $0x10] sm:$0xff]
        %v648 = vld [vmem:[%s7 + $0x18] sm:$0xff]
        %v649 = vld [vmem:[%s7 + $0x20] sm:$0xff]
        %v650 = vld [vmem:[%s7 + $0x28] sm:$0xff]
        %v651 = vld [vmem:[%s7 + $0x30] sm:$0xff]
        %v652 = vld [vmem:[%s7 + $0x38] sm:$0xff]
        %v653 = vld [vmem:[%s8] sm:$0xf]
        %v654 = vld [vmem:[%s8 + $0x4] sm:$0xf]
        %v655 = vld [vmem:[%s8 + $0x8] sm:$0xf]
        %v656 = vld [vmem:[%s8 + $0xc] sm:$0xf]
        %v657 = vld [vmem:[%s8 + $0x10] sm:$0xf]
        %v658 = vld [vmem:[%s8 + $0x14] sm:$0xf]
        %v659 = vld [vmem:[%s8 + $0x18] sm:$0xf]
        %v660 = vld [vmem:[%s8 + $0x1c] sm:$0xf]
        %v661 = vld [vmem:[%s9] sm:$0xff]
        %v662 = vld [vmem:[%s9 + $0x8] sm:$0xff]
        %v663 = vld [vmem:[%s9 + $0x10] sm:$0xff]
        %v664 = vld [vmem:[%s9 + $0x18] sm:$0xff]
        %v665 = vld [vmem:[%s9 + $0x20] sm:$0xff]
        %v666 = vld [vmem:[%s9 + $0x28] sm:$0xff]
        %v667 = vld [vmem:[%s9 + $0x30] sm:$0xff]
        %v668 = vld [vmem:[%s9 + $0x38] sm:$0xff]
        %v669 = vld [vmem:[%s10] sm:$0xf]
        %v670 = vld [vmem:[%s10 + $0x4] sm:$0xf]
        %v671 = vld [vmem:[%s10 + $0x8] sm:$0xf]
        %v672 = vld [vmem:[%s10 + $0xc] sm:$0xf]
        %v673 = vld [vmem:[%s11] sm:$0xff]
        %v674 = vld [vmem:[%s11 + $0x8] sm:$0xff]
        %v675 = vld [vmem:[%s11 + $0x10] sm:$0xff]
        %v676 = vld [vmem:[%s11 + $0x18] sm:$0xff]
        %v677 = vld [vmem:[%s12] sm:$0xf]
        %v678 = vld [vmem:[%s12 + $0x4] sm:$0xf]
        %v679 = vld [vmem:[%s12 + $0x8] sm:$0xf]
        %v680 = vld [vmem:[%s12 + $0xc] sm:$0xf]
        %v681 = vld [vmem:[%s12 + $0x10] sm:$0xf]
        %v682 = vld [vmem:[%s12 + $0x14] sm:$0xf]
        %v683 = vld [vmem:[%s12 + $0x18] sm:$0xf]
        %v684 = vld [vmem:[%s12 + $0x1c] sm:$0xf]
        %v685 = vld [vmem:[%s13] sm:$0xff]
        %v686 = vld [vmem:[%s13 + $0x8] sm:$0xff]
        %v687 = vld [vmem:[%s13 + $0x10] sm:$0xff]
        %v688 = vld [vmem:[%s13 + $0x18] sm:$0xff]
        %v689 = vld [vmem:[%s13 + $0x20] sm:$0xff]
        %v690 = vld [vmem:[%s13 + $0x28] sm:$0xff]
        %v691 = vld [vmem:[%s13 + $0x30] sm:$0xff]
        %v692 = vld [vmem:[%s13 + $0x38] sm:$0xff]
        %v693 = vld [vmem:[%s14] sm:$0xf]
        %v694 = vld [vmem:[%s14 + $0x4] sm:$0xf]
        %v695 = vld [vmem:[%s14 + $0x8] sm:$0xf]
        %v696 = vld [vmem:[%s14 + $0xc] sm:$0xf]
        %v697 = vld [vmem:[%s14 + $0x10] sm:$0xf]
        %v698 = vld [vmem:[%s14 + $0x14] sm:$0xf]
        %v699 = vld [vmem:[%s14 + $0x18] sm:$0xf]
        %v700 = vld [vmem:[%s14 + $0x1c] sm:$0xf]
        %v701 = vld [vmem:[%s514] sm:$0xff]
        %v702 = vld [vmem:[%s514 + $0x8] sm:$0xff]
        %v703 = vld [vmem:[%s514 + $0x10] sm:$0xff]
        %v704 = vld [vmem:[%s514 + $0x18] sm:$0xff]
        %v705 = vld [vmem:[%s521] sm:$0xf]
        %v706 = vld [vmem:[%s521 + $0x4] sm:$0xf]
        %708 = vset.pattern.permute.xlu0 0
        %709 = vperm.xlu0 %708, %v573
        %v710 = vpop.permute.xlu0 %709
        %713 = vset.pattern.permute.xlu0 0
        %714 = vperm.xlu0 %713, %v574
        %v715 = vpop.permute.xlu0 %714
        %718 = vset.pattern.permute.xlu0 0
        %719 = vperm.xlu0 %718, %v575
        %v720 = vpop.permute.xlu0 %719
        %723 = vset.pattern.permute.xlu0 0
        %724 = vperm.xlu0 %723, %v576
        %v725 = vpop.permute.xlu0 %724
        %728 = vset.pattern.permute.xlu0 0
        %729 = vperm.xlu0 %728, %v577
        %v730 = vpop.permute.xlu0 %729
        %733 = vset.pattern.permute.xlu0 0
        %734 = vperm.xlu0 %733, %v578
        %v735 = vpop.permute.xlu0 %734
        %738 = vset.pattern.permute.xlu0 0
        %739 = vperm.xlu0 %738, %v579
        %v740 = vpop.permute.xlu0 %739
        %743 = vset.pattern.permute.xlu0 0
        %744 = vperm.xlu0 %743, %v580
        %v745 = vpop.permute.xlu0 %744
        %748 = vset.pattern.permute.xlu0 0
        %749 = vperm.xlu0 %748, %v581
        %v750 = vpop.permute.xlu0 %749
        %753 = vset.pattern.permute.xlu0 0
        %754 = vperm.xlu0 %753, %v582
        %v755 = vpop.permute.xlu0 %754
        %758 = vset.pattern.permute.xlu0 0
        %759 = vperm.xlu0 %758, %v583
        %v760 = vpop.permute.xlu0 %759
        %763 = vset.pattern.permute.xlu0 0
        %764 = vperm.xlu0 %763, %v584
        %v765 = vpop.permute.xlu0 %764
        %768 = vset.pattern.permute.xlu0 0
        %769 = vperm.xlu0 %768, %v585
        %v770 = vpop.permute.xlu0 %769
        %773 = vset.pattern.permute.xlu0 0
        %774 = vperm.xlu0 %773, %v586
        %v775 = vpop.permute.xlu0 %774
        %778 = vset.pattern.permute.xlu0 0
        %779 = vperm.xlu0 %778, %v587
        %v780 = vpop.permute.xlu0 %779
        %783 = vset.pattern.permute.xlu0 0
        %784 = vperm.xlu0 %783, %v588
        %v785 = vpop.permute.xlu0 %784
        %788 = vset.pattern.permute.xlu0 0
        %789 = vperm.xlu0 %788, %v589
        %v790 = vpop.permute.xlu0 %789
        %793 = vset.pattern.permute.xlu0 0
        %794 = vperm.xlu0 %793, %v590
        %v795 = vpop.permute.xlu0 %794
        %798 = vset.pattern.permute.xlu0 0
        %799 = vperm.xlu0 %798, %v591
        %v800 = vpop.permute.xlu0 %799
        %803 = vset.pattern.permute.xlu0 0
        %804 = vperm.xlu0 %803, %v592
        %v805 = vpop.permute.xlu0 %804
        %808 = vset.pattern.permute.xlu0 0
        %809 = vperm.xlu0 %808, %v593
        %v810 = vpop.permute.xlu0 %809
        %813 = vset.pattern.permute.xlu0 0
        %814 = vperm.xlu0 %813, %v594
        %v815 = vpop.permute.xlu0 %814
        %818 = vset.pattern.permute.xlu0 0
        %819 = vperm.xlu0 %818, %v595
        %v820 = vpop.permute.xlu0 %819
        %823 = vset.pattern.permute.xlu0 0
        %824 = vperm.xlu0 %823, %v596
        %v825 = vpop.permute.xlu0 %824
        %828 = vset.pattern.permute.xlu0 0
        %829 = vperm.xlu0 %828, %v597
        %v830 = vpop.permute.xlu0 %829
        %833 = vset.pattern.permute.xlu0 0
        %834 = vperm.xlu0 %833, %v598
        %v835 = vpop.permute.xlu0 %834
        %838 = vset.pattern.permute.xlu0 0
        %839 = vperm.xlu0 %838, %v599
        %v840 = vpop.permute.xlu0 %839
        %843 = vset.pattern.permute.xlu0 0
        %844 = vperm.xlu0 %843, %v600
        %v845 = vpop.permute.xlu0 %844
        %848 = vset.pattern.permute.xlu0 0
        %849 = vperm.xlu0 %848, %v601
        %v850 = vpop.permute.xlu0 %849
        %853 = vset.pattern.permute.xlu0 0
        %854 = vperm.xlu0 %853, %v602
        %v855 = vpop.permute.xlu0 %854
        %858 = vset.pattern.permute.xlu0 0
        %859 = vperm.xlu0 %858, %v603
        %v860 = vpop.permute.xlu0 %859
        %863 = vset.pattern.permute.xlu0 0
        %864 = vperm.xlu0 %863, %v604
        %v865 = vpop.permute.xlu0 %864
        %868 = vset.pattern.permute.xlu0 0
        %869 = vperm.xlu0 %868, %v605
        %v870 = vpop.permute.xlu0 %869
        %873 = vset.pattern.permute.xlu0 0
        %874 = vperm.xlu0 %873, %v606
        %v875 = vpop.permute.xlu0 %874
        %878 = vset.pattern.permute.xlu0 0
        %879 = vperm.xlu0 %878, %v607
        %v880 = vpop.permute.xlu0 %879
        %883 = vset.pattern.permute.xlu0 0
        %884 = vperm.xlu0 %883, %v608
        %v885 = vpop.permute.xlu0 %884
        %888 = vset.pattern.permute.xlu0 0
        %889 = vperm.xlu0 %888, %v609
        %v890 = vpop.permute.xlu0 %889
        %893 = vset.pattern.permute.xlu0 0
        %894 = vperm.xlu0 %893, %v610
        %v895 = vpop.permute.xlu0 %894
        %898 = vset.pattern.permute.xlu0 0
        %899 = vperm.xlu0 %898, %v611
        %v900 = vpop.permute.xlu0 %899
        %903 = vset.pattern.permute.xlu0 0
        %904 = vperm.xlu0 %903, %v612
        %v905 = vpop.permute.xlu0 %904
        %908 = vset.pattern.permute.xlu0 0
        %909 = vperm.xlu0 %908, %v613
        %v910 = vpop.permute.xlu0 %909
        %913 = vset.pattern.permute.xlu0 0
        %914 = vperm.xlu0 %913, %v614
        %v915 = vpop.permute.xlu0 %914
        %918 = vset.pattern.permute.xlu0 0
        %919 = vperm.xlu0 %918, %v615
        %v920 = vpop.permute.xlu0 %919
        %923 = vset.pattern.permute.xlu0 0
        %924 = vperm.xlu0 %923, %v616
        %v925 = vpop.permute.xlu0 %924
        %928 = vset.pattern.permute.xlu0 0
        %929 = vperm.xlu0 %928, %v617
        %v930 = vpop.permute.xlu0 %929
        %933 = vset.pattern.permute.xlu0 0
        %934 = vperm.xlu0 %933, %v618
        %v935 = vpop.permute.xlu0 %934
        %938 = vset.pattern.permute.xlu0 0
        %939 = vperm.xlu0 %938, %v619
        %v940 = vpop.permute.xlu0 %939
        %943 = vset.pattern.permute.xlu0 0
        %944 = vperm.xlu0 %943, %v620
        %v945 = vpop.permute.xlu0 %944
        %v995 = vunpack.c.l.b16 %v525
        %v996 = vunpack.c.l.b16 %v526
        %v997 = vunpack.c.l.b16 %v527
        %v998 = vunpack.c.l.b16 %v528
        %v999 = vunpack.c.l.b16 %v529
        %v1000 = vunpack.c.l.b16 %v530
        %v1001 = vunpack.c.l.b16 %v531
        %v1002 = vunpack.c.l.b16 %v532
        %v1003 = vunpack.c.l.b16 %v533
        %v1004 = vunpack.c.l.b16 %v534
        %v1005 = vunpack.c.l.b16 %v535
        %v1006 = vunpack.c.l.b16 %v536
        %v1007 = vunpack.c.l.b16 %v537
        %v1008 = vunpack.c.l.b16 %v538
        %v1009 = vunpack.c.l.b16 %v539
        %v1010 = vunpack.c.l.b16 %v540
        %v1011 = vunpack.c.l.b16 %v541
        %v1012 = vunpack.c.l.b16 %v542
        %v1013 = vunpack.c.l.b16 %v543
        %v1014 = vunpack.c.l.b16 %v544
        %v1015 = vunpack.c.l.b16 %v545
        %v1016 = vunpack.c.l.b16 %v546
        %v1017 = vunpack.c.l.b16 %v547
        %v1018 = vunpack.c.l.b16 %v548
        %v1019 = vunpack.c.l.b16 %v549
        %v1020 = vunpack.c.l.b16 %v550
        %v1021 = vunpack.c.l.b16 %v551
        %v1022 = vunpack.c.l.b16 %v552
        %v1023 = vunpack.c.l.b16 %v553
        %v1024 = vunpack.c.l.b16 %v554
        %v1025 = vunpack.c.l.b16 %v555
        %v1026 = vunpack.c.l.b16 %v556
        %v1027 = vunpack.c.l.b16 %v557
        %v1028 = vunpack.c.l.b16 %v558
        %v1029 = vunpack.c.l.b16 %v559
        %v1030 = vunpack.c.l.b16 %v560
        %v1031 = vunpack.c.l.b16 %v561
        %v1032 = vunpack.c.l.b16 %v562
        %v1033 = vunpack.c.l.b16 %v563
        %v1034 = vunpack.c.l.b16 %v564
        %v1035 = vunpack.c.l.b16 %v565
        %v1036 = vunpack.c.l.b16 %v566
        %v1037 = vunpack.c.l.b16 %v567
        %v1038 = vunpack.c.l.b16 %v568
        %v1039 = vunpack.c.l.b16 %v569
        %v1040 = vunpack.c.l.b16 %v570
        %v1041 = vunpack.c.l.b16 %v571
        %v1042 = vunpack.c.l.b16 %v572
        %v1043 = vpack.c.b16 %v996, %v995
        %v1044 = vpack.c.b16 %v998, %v997
        %v1045 = vpack.c.b16 %v1000, %v999
        %v1046 = vpack.c.b16 %v1002, %v1001
        %v1047 = vpack.c.b16 %v1004, %v1003
        %v1048 = vpack.c.b16 %v1006, %v1005
        %v1049 = vpack.c.b16 %v1008, %v1007
        %v1050 = vpack.c.b16 %v1010, %v1009
        %v1051 = vpack.c.b16 %v1012, %v1011
        %v1052 = vpack.c.b16 %v1014, %v1013
        %v1053 = vpack.c.b16 %v1016, %v1015
        %v1054 = vpack.c.b16 %v1018, %v1017
        %v1055 = vpack.c.b16 %v1020, %v1019
        %v1056 = vpack.c.b16 %v1022, %v1021
        %v1057 = vpack.c.b16 %v1024, %v1023
        %v1058 = vpack.c.b16 %v1026, %v1025
        %v1059 = vpack.c.b16 %v1028, %v1027
        %v1060 = vpack.c.b16 %v1030, %v1029
        %v1061 = vpack.c.b16 %v1032, %v1031
        %v1062 = vpack.c.b16 %v1034, %v1033
        %v1063 = vpack.c.b16 %v1036, %v1035
        %v1064 = vpack.c.b16 %v1038, %v1037
        %v1065 = vpack.c.b16 %v1040, %v1039
        %v1066 = vpack.c.b16 %v1042, %v1041
        %v1069 = vunpack.c.l.b16 %v705
        %v1070 = vunpack.c.l.b16 %v706
        %v1071 = vpack.c.b16 %v1070, %v1069
        %vm1073 = vcmask 130048
        %v1075 = vsel %vm1073, %v1043, 0
        %v1078 = vsel %vm1073, %v1044, 0
        %v1081 = vsel %vm1073, %v1045, 0
        %v1084 = vsel %vm1073, %v1046, 0
        %v1087 = vsel %vm1073, %v1047, 0
        %v1090 = vsel %vm1073, %v1048, 0
        %v1093 = vsel %vm1073, %v1049, 0
        %v1096 = vsel %vm1073, %v1050, 0
        %v1099 = vsel %vm1073, %v1051, 0
        %v1102 = vsel %vm1073, %v1052, 0
        %v1105 = vsel %vm1073, %v1053, 0
        %v1108 = vsel %vm1073, %v1054, 0
        %v1111 = vsel %vm1073, %v1055, 0
        %v1114 = vsel %vm1073, %v1056, 0
        %v1117 = vsel %vm1073, %v1057, 0
        %v1120 = vsel %vm1073, %v1058, 0
        %v1123 = vsel %vm1073, %v1059, 0
        %v1126 = vsel %vm1073, %v1060, 0
        %v1129 = vsel %vm1073, %v1061, 0
        %v1132 = vsel %vm1073, %v1062, 0
        %v1135 = vsel %vm1073, %v1063, 0
        %v1138 = vsel %vm1073, %v1064, 0
        %v1141 = vsel %vm1073, %v1065, 0
        %v1144 = vsel %vm1073, %v1066, 0
        %1146 = vmatprep.subr.bf16.mxu0 0
        %1147 = vmatpush1.bf16.msra.mxu0 0
        %1148 = vmatprep.subr.bf16.mxu0 0
        %1149 = vmatpush1.bf16.msra.mxu0 0
        %1150 = vmatprep.subr.bf16.mxu0 0
        %1151 = vmatpush1.bf16.msra.mxu0 0
        %1152 = vmatprep.subr.bf16.mxu0 0
        %1153 = vmatpush1.bf16.msra.mxu0 0
        %1154 = vmatprep.subr.bf16.mxu0 0
        %1155 = vmatpush1.bf16.msra.mxu0 0
        %1156 = vmatprep.subr.bf16.mxu0 0
        %1157 = vmatpush1.bf16.msra.mxu0 0
        %1158 = vmatprep.subr.bf16.mxu0 0
        %1159 = vmatpush1.bf16.msra.mxu0 0
        %1160 = vmatprep.subr.bf16.mxu0 0
        %1161 = vmatpush1.bf16.msra.mxu0 %v1071
        %1162 = vmatprep.subr.bf16.mxu0 0
        %1163 = vmatpush2.bf16.msra.mxu0 0
        %1164 = vmatprep.subr.bf16.mxu0 0
        %1165 = vmatpush2.bf16.msra.mxu0 0
        %1166 = vmatprep.subr.bf16.mxu0 0
        %1167 = vmatpush2.bf16.msra.mxu0 0
        %1168 = vmatprep.subr.bf16.mxu0 0
        %1169 = vmatpush2.bf16.msra.mxu0 0
        %1170 = vmatprep.subr.bf16.mxu0 0
        %1171 = vmatpush2.bf16.msra.mxu0 0
        %1172 = vmatprep.subr.bf16.mxu0 0
        %1173 = vmatpush2.bf16.msra.mxu0 0
        %1174 = vmatprep.subr.bf16.mxu0 0
        %1175 = vmatpush2.bf16.msra.mxu0 0
        %1176 = vmatprep.subr.bf16.mxu0 0
        %1177 = vmatpush2.bf16.msra.mxu0 0
        %1178 = vmatprep.mubr.bf16.mxu0 0
        %1179 = vmatmul.mubr.bf16.gmra.mxu0 %v1075
        %v1180 = vpop.f32.mrf.mxu0
        %v1181 = vadd.f32 %v710, %v1180
        %v1182 = vpop.f32.mrf.mxu0
        %v1183 = vpop.f32.mrf.mxu0
        %v1184 = vadd.f32 %v715, %v1183
        %v1185 = vpop.f32.mrf.mxu0
        %1186 = vmatprep.mubr.bf16.mxu0 0
        %1187 = vmatmul.mubr.bf16.gmra.mxu0 %v1078
        %v1188 = vpop.f32.mrf.mxu0
        %v1189 = vadd.f32 %v720, %v1188
        %v1190 = vpop.f32.mrf.mxu0
        %v1191 = vpop.f32.mrf.mxu0
        %v1192 = vadd.f32 %v725, %v1191
        %v1193 = vpop.f32.mrf.mxu0
        %1194 = vmatprep.mubr.bf16.mxu0 0
        %1195 = vmatmul.mubr.bf16.gmra.mxu0 %v1081
        %v1196 = vpop.f32.mrf.mxu0
        %v1197 = vadd.f32 %v730, %v1196
        %v1198 = vpop.f32.mrf.mxu0
        %v1199 = vpop.f32.mrf.mxu0
        %v1200 = vadd.f32 %v735, %v1199
        %v1201 = vpop.f32.mrf.mxu0
        %1202 = vmatprep.mubr.bf16.mxu0 0
        %1203 = vmatmul.mubr.bf16.gmra.mxu0 %v1084
        %v1204 = vpop.f32.mrf.mxu0
        %v1205 = vadd.f32 %v740, %v1204
        %v1206 = vpop.f32.mrf.mxu0
        %v1207 = vpop.f32.mrf.mxu0
        %v1208 = vadd.f32 %v745, %v1207
        %v1209 = vpop.f32.mrf.mxu0
        %1210 = vmatprep.mubr.bf16.mxu0 0
        %1211 = vmatmul.mubr.bf16.gmra.mxu0 %v1087
        %v1212 = vpop.f32.mrf.mxu0
        %v1213 = vadd.f32 %v750, %v1212
        %v1214 = vpop.f32.mrf.mxu0
        %v1215 = vpop.f32.mrf.mxu0
        %v1216 = vadd.f32 %v755, %v1215
        %v1217 = vpop.f32.mrf.mxu0
        %1218 = vmatprep.mubr.bf16.mxu0 0
        %1219 = vmatmul.mubr.bf16.gmra.mxu0 %v1090
        %v1220 = vpop.f32.mrf.mxu0
        %v1221 = vadd.f32 %v760, %v1220
        %v1222 = vpop.f32.mrf.mxu0
        %v1223 = vpop.f32.mrf.mxu0
        %v1224 = vadd.f32 %v765, %v1223
        %v1225 = vpop.f32.mrf.mxu0
        %1226 = vmatprep.mubr.bf16.mxu0 0
        %1227 = vmatmul.mubr.bf16.gmra.mxu0 %v1093
        %v1228 = vpop.f32.mrf.mxu0
        %v1229 = vadd.f32 %v770, %v1228
        %v1230 = vpop.f32.mrf.mxu0
        %v1231 = vpop.f32.mrf.mxu0
        %v1232 = vadd.f32 %v775, %v1231
        %v1233 = vpop.f32.mrf.mxu0
        %1234 = vmatprep.mubr.bf16.mxu0 0
        %1235 = vmatmul.mubr.bf16.gmra.mxu0 %v1096
        %v1236 = vpop.f32.mrf.mxu0
        %v1237 = vadd.f32 %v780, %v1236
        %v1238 = vpop.f32.mrf.mxu0
        %v1239 = vpop.f32.mrf.mxu0
        %v1240 = vadd.f32 %v785, %v1239
        %v1241 = vpop.f32.mrf.mxu0
        %1242 = vmatprep.mubr.bf16.mxu0 0
        %1243 = vmatmul.mubr.bf16.gmra.mxu0 %v1099
        %v1244 = vpop.f32.mrf.mxu0
        %v1245 = vadd.f32 %v790, %v1244
        %v1246 = vpop.f32.mrf.mxu0
        %v1247 = vpop.f32.mrf.mxu0
        %v1248 = vadd.f32 %v795, %v1247
        %v1249 = vpop.f32.mrf.mxu0
        %1250 = vmatprep.mubr.bf16.mxu0 0
        %1251 = vmatmul.mubr.bf16.gmra.mxu0 %v1102
        %v1252 = vpop.f32.mrf.mxu0
        %v1253 = vadd.f32 %v800, %v1252
        %v1254 = vpop.f32.mrf.mxu0
        %v1255 = vpop.f32.mrf.mxu0
        %v1256 = vadd.f32 %v805, %v1255
        %v1257 = vpop.f32.mrf.mxu0
        %1258 = vmatprep.mubr.bf16.mxu0 0
        %1259 = vmatmul.mubr.bf16.gmra.mxu0 %v1105
        %v1260 = vpop.f32.mrf.mxu0
        %v1261 = vadd.f32 %v810, %v1260
        %v1262 = vpop.f32.mrf.mxu0
        %v1263 = vpop.f32.mrf.mxu0
        %v1264 = vadd.f32 %v815, %v1263
        %v1265 = vpop.f32.mrf.mxu0
        %1266 = vmatprep.mubr.bf16.mxu0 0
        %1267 = vmatmul.mubr.bf16.gmra.mxu0 %v1108
        %v1268 = vpop.f32.mrf.mxu0
        %v1269 = vadd.f32 %v820, %v1268
        %v1270 = vpop.f32.mrf.mxu0
        %v1271 = vpop.f32.mrf.mxu0
        %v1272 = vadd.f32 %v825, %v1271
        %v1273 = vpop.f32.mrf.mxu0
        %1274 = vmatprep.mubr.bf16.mxu0 0
        %1275 = vmatmul.mubr.bf16.gmra.mxu0 %v1111
        %v1276 = vpop.f32.mrf.mxu0
        %v1277 = vadd.f32 %v830, %v1276
        %v1278 = vpop.f32.mrf.mxu0
        %v1279 = vpop.f32.mrf.mxu0
        %v1280 = vadd.f32 %v835, %v1279
        %v1281 = vpop.f32.mrf.mxu0
        %1282 = vmatprep.mubr.bf16.mxu0 0
        %1283 = vmatmul.mubr.bf16.gmra.mxu0 %v1114
        %v1284 = vpop.f32.mrf.mxu0
        %v1285 = vadd.f32 %v840, %v1284
        %v1286 = vpop.f32.mrf.mxu0
        %v1287 = vpop.f32.mrf.mxu0
        %v1288 = vadd.f32 %v845, %v1287
        %v1289 = vpop.f32.mrf.mxu0
        %1290 = vmatprep.mubr.bf16.mxu0 0
        %1291 = vmatmul.mubr.bf16.gmra.mxu0 %v1117
        %v1292 = vpop.f32.mrf.mxu0
        %v1293 = vadd.f32 %v850, %v1292
        %v1294 = vpop.f32.mrf.mxu0
        %v1295 = vpop.f32.mrf.mxu0
        %v1296 = vadd.f32 %v855, %v1295
        %v1297 = vpop.f32.mrf.mxu0
        %1298 = vmatprep.mubr.bf16.mxu0 0
        %1299 = vmatmul.mubr.bf16.gmra.mxu0 %v1120
        %v1300 = vpop.f32.mrf.mxu0
        %v1301 = vadd.f32 %v860, %v1300
        %v1302 = vpop.f32.mrf.mxu0
        %v1303 = vpop.f32.mrf.mxu0
        %v1304 = vadd.f32 %v865, %v1303
        %v1305 = vpop.f32.mrf.mxu0
        %1306 = vmatprep.mubr.bf16.mxu0 0
        %1307 = vmatmul.mubr.bf16.gmra.mxu0 %v1123
        %v1308 = vpop.f32.mrf.mxu0
        %v1309 = vadd.f32 %v870, %v1308
        %v1310 = vpop.f32.mrf.mxu0
        %v1311 = vpop.f32.mrf.mxu0
        %v1312 = vadd.f32 %v875, %v1311
        %v1313 = vpop.f32.mrf.mxu0
        %1314 = vmatprep.mubr.bf16.mxu0 0
        %1315 = vmatmul.mubr.bf16.gmra.mxu0 %v1126
        %v1316 = vpop.f32.mrf.mxu0
        %v1317 = vadd.f32 %v880, %v1316
        %v1318 = vpop.f32.mrf.mxu0
        %v1319 = vpop.f32.mrf.mxu0
        %v1320 = vadd.f32 %v885, %v1319
        %v1321 = vpop.f32.mrf.mxu0
        %1322 = vmatprep.mubr.bf16.mxu0 0
        %1323 = vmatmul.mubr.bf16.gmra.mxu0 %v1129
        %v1324 = vpop.f32.mrf.mxu0
        %v1325 = vadd.f32 %v890, %v1324
        %v1326 = vpop.f32.mrf.mxu0
        %v1327 = vpop.f32.mrf.mxu0
        %v1328 = vadd.f32 %v895, %v1327
        %v1329 = vpop.f32.mrf.mxu0
        %1330 = vmatprep.mubr.bf16.mxu0 0
        %1331 = vmatmul.mubr.bf16.gmra.mxu0 %v1132
        %v1332 = vpop.f32.mrf.mxu0
        %v1333 = vadd.f32 %v900, %v1332
        %v1334 = vpop.f32.mrf.mxu0
        %v1335 = vpop.f32.mrf.mxu0
        %v1336 = vadd.f32 %v905, %v1335
        %v1337 = vpop.f32.mrf.mxu0
        %1338 = vmatprep.mubr.bf16.mxu0 0
        %1339 = vmatmul.mubr.bf16.gmra.mxu0 %v1135
        %v1340 = vpop.f32.mrf.mxu0
        %v1341 = vadd.f32 %v910, %v1340
        %v1342 = vpop.f32.mrf.mxu0
        %v1343 = vpop.f32.mrf.mxu0
        %v1344 = vadd.f32 %v915, %v1343
        %v1345 = vpop.f32.mrf.mxu0
        %1346 = vmatprep.mubr.bf16.mxu0 0
        %1347 = vmatmul.mubr.bf16.gmra.mxu0 %v1138
        %v1348 = vpop.f32.mrf.mxu0
        %v1349 = vadd.f32 %v920, %v1348
        %v1350 = vpop.f32.mrf.mxu0
        %v1351 = vpop.f32.mrf.mxu0
        %v1352 = vadd.f32 %v925, %v1351
        %v1353 = vpop.f32.mrf.mxu0
        %1354 = vmatprep.mubr.bf16.mxu0 0
        %1355 = vmatmul.mubr.bf16.gmra.mxu0 %v1141
        %v1356 = vpop.f32.mrf.mxu0
        %v1357 = vadd.f32 %v930, %v1356
        %v1358 = vpop.f32.mrf.mxu0
        %v1359 = vpop.f32.mrf.mxu0
        %v1360 = vadd.f32 %v935, %v1359
        %v1361 = vpop.f32.mrf.mxu0
        %1362 = vmatprep.mubr.bf16.mxu0 0
        %1363 = vmatmul.mubr.bf16.gmra.mxu0 %v1144
        %v1364 = vpop.f32.mrf.mxu0
        %v1365 = vadd.f32 %v940, %v1364
        %v1366 = vpop.f32.mrf.mxu0
        %v1367 = vpop.f32.mrf.mxu0
        %v1368 = vadd.f32 %v945, %v1367
        %v1369 = vpop.f32.mrf.mxu0
        %1370 = vdwg.mxu0
        %v1371 = vmax.f32 %v1181, 0.0
        %v1372 = vmax.f32 %v1184, 0.0
        %v1373 = vmax.f32 %v1189, 0.0
        %v1374 = vmax.f32 %v1192, 0.0
        %v1375 = vmax.f32 %v1197, 0.0
        %v1376 = vmax.f32 %v1200, 0.0
        %v1377 = vmax.f32 %v1205, 0.0
        %v1378 = vmax.f32 %v1208, 0.0
        %v1379 = vmax.f32 %v1213, 0.0
        %v1380 = vmax.f32 %v1216, 0.0
        %v1381 = vmax.f32 %v1221, 0.0
        %v1382 = vmax.f32 %v1224, 0.0
        %v1383 = vmax.f32 %v1229, 0.0
        %v1384 = vmax.f32 %v1232, 0.0
        %v1385 = vmax.f32 %v1237, 0.0
        %v1386 = vmax.f32 %v1240, 0.0
        %v1387 = vmax.f32 %v1245, 0.0
        %v1388 = vmax.f32 %v1248, 0.0
        %v1389 = vmax.f32 %v1253, 0.0
        %v1390 = vmax.f32 %v1256, 0.0
        %v1391 = vmax.f32 %v1261, 0.0
        %v1392 = vmax.f32 %v1264, 0.0
        %v1393 = vmax.f32 %v1269, 0.0
        %v1394 = vmax.f32 %v1272, 0.0
        %v1395 = vmax.f32 %v1277, 0.0
        %v1396 = vmax.f32 %v1280, 0.0
        %v1397 = vmax.f32 %v1285, 0.0
        %v1398 = vmax.f32 %v1288, 0.0
        %v1399 = vmax.f32 %v1293, 0.0
        %v1400 = vmax.f32 %v1296, 0.0
        %v1401 = vmax.f32 %v1301, 0.0
        %v1402 = vmax.f32 %v1304, 0.0
        %v1403 = vmax.f32 %v1309, 0.0
        %v1404 = vmax.f32 %v1312, 0.0
        %v1405 = vmax.f32 %v1317, 0.0
        %v1406 = vmax.f32 %v1320, 0.0
        %v1407 = vmax.f32 %v1325, 0.0
        %v1408 = vmax.f32 %v1328, 0.0
        %v1409 = vmax.f32 %v1333, 0.0
        %v1410 = vmax.f32 %v1336, 0.0
        %v1411 = vmax.f32 %v1341, 0.0
        %v1412 = vmax.f32 %v1344, 0.0
        %v1413 = vmax.f32 %v1349, 0.0
        %v1414 = vmax.f32 %v1352, 0.0
        %v1415 = vmax.f32 %v1357, 0.0
        %v1416 = vmax.f32 %v1360, 0.0
        %v1417 = vmax.f32 %v1365, 0.0
        %v1418 = vmax.f32 %v1368, 0.0
        %v1419 = vpack.c.bf16 %v1372, %v1371
        %v1420 = vpack.c.bf16 %v1374, %v1373
        %v1421 = vpack.c.bf16 %v1376, %v1375
        %v1422 = vpack.c.bf16 %v1378, %v1377
        %v1423 = vpack.c.bf16 %v1380, %v1379
        %v1424 = vpack.c.bf16 %v1382, %v1381
        %v1425 = vpack.c.bf16 %v1384, %v1383
        %v1426 = vpack.c.bf16 %v1386, %v1385
        %v1427 = vpack.c.bf16 %v1388, %v1387
        %v1428 = vpack.c.bf16 %v1390, %v1389
        %v1429 = vpack.c.bf16 %v1392, %v1391
        %v1430 = vpack.c.bf16 %v1394, %v1393
        %v1431 = vpack.c.bf16 %v1396, %v1395
        %v1432 = vpack.c.bf16 %v1398, %v1397
        %v1433 = vpack.c.bf16 %v1400, %v1399
        %v1434 = vpack.c.bf16 %v1402, %v1401
        %v1435 = vpack.c.bf16 %v1404, %v1403
        %v1436 = vpack.c.bf16 %v1406, %v1405
        %v1437 = vpack.c.bf16 %v1408, %v1407
        %v1438 = vpack.c.bf16 %v1410, %v1409
        %v1439 = vpack.c.bf16 %v1412, %v1411
        %v1440 = vpack.c.bf16 %v1414, %v1413
        %v1441 = vpack.c.bf16 %v1416, %v1415
        %v1442 = vpack.c.bf16 %v1418, %v1417
        %1443 = vadd.xlane.f32.xlu0 %v701
        %v1444 = vpop.xlane.xlu0 %1443
        %1445 = vadd.xlane.f32.xlu0 %v702
        %v1446 = vpop.xlane.xlu0 %1445
        %1447 = vadd.xlane.f32.xlu0 %v703
        %v1448 = vpop.xlane.xlu0 %1447
        %1449 = vadd.xlane.f32.xlu0 %v704
        %v1450 = vpop.xlane.xlu0 %1449
        %v1451 = vrcp.pop 128.0
        %v1452 = vmul.f32 %v1444, %v1451
        %v1453 = vmul.f32 %v1446, %v1451
        %v1454 = vmul.f32 %v1448, %v1451
        %v1455 = vmul.f32 %v1450, %v1451
        %v1456 = vmul.f32 %v701, %v701
        %v1457 = vmul.f32 %v702, %v702
        %v1458 = vmul.f32 %v703, %v703
        %v1459 = vmul.f32 %v704, %v704
        %1460 = vadd.xlane.f32.xlu0 %v1456
        %v1461 = vpop.xlane.xlu0 %1460
        %1462 = vadd.xlane.f32.xlu0 %v1457
        %v1463 = vpop.xlane.xlu0 %1462
        %1464 = vadd.xlane.f32.xlu0 %v1458
        %v1465 = vpop.xlane.xlu0 %1464
        %1466 = vadd.xlane.f32.xlu0 %v1459
        %v1467 = vpop.xlane.xlu0 %1466
        %v1468 = vmul.f32 %v1461, %v1451
        %v1469 = vmul.f32 %v1463, %v1451
        %v1470 = vmul.f32 %v1465, %v1451
        %v1471 = vmul.f32 %v1467, %v1451
        %v1472 = vmul.f32 %v1452, %v1452
        %v1473 = vmul.f32 %v1453, %v1453
        %v1474 = vmul.f32 %v1454, %v1454
        %v1475 = vmul.f32 %v1455, %v1455
        %v1476 = vsub.f32 %v1468, %v1472
        %v1477 = vsub.f32 %v1469, %v1473
        %v1478 = vsub.f32 %v1470, %v1474
        %v1479 = vsub.f32 %v1471, %v1475
        %v1480 = vsub.f32 %v701, %v1452
        %v1481 = vsub.f32 %v702, %v1453
        %v1482 = vsub.f32 %v703, %v1454
        %v1483 = vsub.f32 %v704, %v1455
        %v1484 = vadd.f32 %v1476, 1e-05
        %v1485 = vadd.f32 %v1477, 1e-05
        %v1486 = vadd.f32 %v1478, 1e-05
        %v1487 = vadd.f32 %v1479, 1e-05
        %v1488 = vrsqrt.pop %v1484
        %v1489 = vrsqrt.pop %v1485
        %v1490 = vrsqrt.pop %v1486
        %v1491 = vrsqrt.pop %v1487
        %v1492 = vmul.f32 %v1480, %v1488
        %v1493 = vmul.f32 %v1481, %v1489
        %v1494 = vmul.f32 %v1482, %v1490
        %v1495 = vmul.f32 %v1483, %v1491
        %1497 = vset.pattern.permute.xlu0 0
        %1498 = vperm.xlu0 %1497, %v629
        %v1499 = vpop.permute.xlu0 %1498
        %1502 = vset.pattern.permute.xlu0 0
        %1503 = vperm.xlu0 %1502, %v630
        %v1504 = vpop.permute.xlu0 %1503
        %1507 = vset.pattern.permute.xlu0 0
        %1508 = vperm.xlu0 %1507, %v631
        %v1509 = vpop.permute.xlu0 %1508
        %1512 = vset.pattern.permute.xlu0 0
        %1513 = vperm.xlu0 %1512, %v632
        %v1514 = vpop.permute.xlu0 %1513
        %1517 = vset.pattern.permute.xlu0 0
        %1518 = vperm.xlu0 %1517, %v633
        %v1519 = vpop.permute.xlu0 %1518
        %1522 = vset.pattern.permute.xlu0 0
        %1523 = vperm.xlu0 %1522, %v634
        %v1524 = vpop.permute.xlu0 %1523
        %1527 = vset.pattern.permute.xlu0 0
        %1528 = vperm.xlu0 %1527, %v635
        %v1529 = vpop.permute.xlu0 %1528
        %1532 = vset.pattern.permute.xlu0 0
        %1533 = vperm.xlu0 %1532, %v636
        %v1534 = vpop.permute.xlu0 %1533
        %v1544 = vunpack.c.l.b16 %v621
        %v1545 = vunpack.c.l.b16 %v622
        %v1546 = vunpack.c.l.b16 %v623
        %v1547 = vunpack.c.l.b16 %v624
        %v1548 = vunpack.c.l.b16 %v625
        %v1549 = vunpack.c.l.b16 %v626
        %v1550 = vunpack.c.l.b16 %v627
        %v1551 = vunpack.c.l.b16 %v628
        %v1552 = vpack.c.b16 %v1545, %v1544
        %v1553 = vpack.c.b16 %v1547, %v1546
        %v1554 = vpack.c.b16 %v1549, %v1548
        %v1555 = vpack.c.b16 %v1551, %v1550
        %1560 = vmatprep.subr.bf16.mxu0 0
        %1561 = vmatpush1.bf16.msra.mxu0 %v1426
        %1562 = vmatprep.subr.bf16.mxu0 0
        %1563 = vmatpush1.bf16.msra.mxu0 %v1425
        %1564 = vmatprep.subr.bf16.mxu0 0
        %1565 = vmatpush1.bf16.msra.mxu0 %v1424
        %1566 = vmatprep.subr.bf16.mxu0 0
        %1567 = vmatpush1.bf16.msra.mxu0 %v1423
        %1568 = vmatprep.subr.bf16.mxu0 0
        %1569 = vmatpush1.bf16.msra.mxu0 %v1422
        %1570 = vmatprep.subr.bf16.mxu0 0
        %1571 = vmatpush1.bf16.msra.mxu0 %v1421
        %1572 = vmatprep.subr.bf16.mxu0 0
        %1573 = vmatpush1.bf16.msra.mxu0 %v1420
        %1574 = vmatprep.subr.bf16.mxu0 0
        %1575 = vmatpush1.bf16.msra.mxu0 %v1419
        %1576 = vmatprep.subr.bf16.mxu0 0
        %1577 = vmatpush2.bf16.msra.mxu0 0
        %1578 = vmatprep.subr.bf16.mxu0 0
        %1579 = vmatpush2.bf16.msra.mxu0 0
        %1580 = vmatprep.subr.bf16.mxu0 0
        %1581 = vmatpush2.bf16.msra.mxu0 0
        %1582 = vmatprep.subr.bf16.mxu0 0
        %1583 = vmatpush2.bf16.msra.mxu0 0
        %1584 = vmatprep.subr.bf16.mxu0 0
        %1585 = vmatpush2.bf16.msra.mxu0 0
        %1586 = vmatprep.subr.bf16.mxu0 0
        %1587 = vmatpush2.bf16.msra.mxu0 0
        %1588 = vmatprep.subr.bf16.mxu0 0
        %1589 = vmatpush2.bf16.msra.mxu0 0
        %1590 = vmatprep.subr.bf16.mxu0 0
        %1591 = vmatpush2.bf16.msra.mxu0 0
        %1592 = vmatprep.mubr.bf16.mxu0 0
        %1593 = vmatmul.mubr.bf16.gmra.mxu0 %v1552
        %v1594 = vpop.f32.mrf.mxu0
        %v1595 = vadd.f32 %v1499, %v1594
        %v1596 = vpop.f32.mrf.mxu0
        %v1597 = vpop.f32.mrf.mxu0
        %v1598 = vadd.f32 %v1504, %v1597
        %v1599 = vpop.f32.mrf.mxu0
        %1600 = vmatprep.mubr.bf16.mxu0 0
        %1601 = vmatmul.mubr.bf16.gmra.mxu0 %v1553
        %v1602 = vpop.f32.mrf.mxu0
        %v1603 = vadd.f32 %v1509, %v1602
        %v1604 = vpop.f32.mrf.mxu0
        %v1605 = vpop.f32.mrf.mxu0
        %v1606 = vadd.f32 %v1514, %v1605
        %v1607 = vpop.f32.mrf.mxu0
        %1608 = vmatprep.mubr.bf16.mxu0 0
        %1609 = vmatmul.mubr.bf16.gmra.mxu0 %v1554
        %v1610 = vpop.f32.mrf.mxu0
        %v1611 = vadd.f32 %v1519, %v1610
        %v1612 = vpop.f32.mrf.mxu0
        %v1613 = vpop.f32.mrf.mxu0
        %v1614 = vadd.f32 %v1524, %v1613
        %v1615 = vpop.f32.mrf.mxu0
        %1616 = vmatprep.mubr.bf16.mxu0 0
        %1617 = vmatmul.mubr.bf16.gmra.mxu0 %v1555
        %v1618 = vpop.f32.mrf.mxu0
        %v1619 = vadd.f32 %v1529, %v1618
        %v1620 = vpop.f32.mrf.mxu0
        %v1621 = vpop.f32.mrf.mxu0
        %v1622 = vadd.f32 %v1534, %v1621
        %v1623 = vpop.f32.mrf.mxu0
        %1624 = vdwg.mxu0
        %v1625 = vmul.f32 %v1492, %v1595
        %v1626 = vmul.f32 %v1493, %v1598
        %v1627 = vmul.f32 %v1494, %v1603
        %v1628 = vmul.f32 %v1495, %v1606
        %v1629 = vadd.f32 %v1625, %v1611
        %v1630 = vadd.f32 %v1626, %v1614
        %v1631 = vadd.f32 %v1627, %v1619
        %v1632 = vadd.f32 %v1628, %v1622
        %vm1633 = vcmp.ge.f32.partialorder %v1629, 0.0
        %vm1634 = vcmp.ge.f32.partialorder %v1630, 0.0
        %vm1635 = vcmp.ge.f32.partialorder %v1631, 0.0
        %vm1636 = vcmp.ge.f32.partialorder %v1632, 0.0
        %v1637 = vmul.f32 %v1629, 0.2
        %v1638 = vmul.f32 %v1630, 0.2
        %v1639 = vmul.f32 %v1631, 0.2
        %v1640 = vmul.f32 %v1632, 0.2
        %v1641 = vsel %vm1633, %v1629, %v1637
        %v1642 = vsel %vm1634, %v1630, %v1638
        %v1643 = vsel %vm1635, %v1631, %v1639
        %v1644 = vsel %vm1636, %v1632, %v1640
        %v1645 = vpack.c.bf16 %v1642, %v1641
        %v1646 = vpack.c.bf16 %v1644, %v1643
        %1648 = vset.pattern.permute.xlu0 0
        %1649 = vperm.xlu0 %1648, %v645
        %v1650 = vpop.permute.xlu0 %1649
        %1653 = vset.pattern.permute.xlu0 0
        %1654 = vperm.xlu0 %1653, %v646
        %v1655 = vpop.permute.xlu0 %1654
        %1658 = vset.pattern.permute.xlu0 0
        %1659 = vperm.xlu0 %1658, %v647
        %v1660 = vpop.permute.xlu0 %1659
        %1663 = vset.pattern.permute.xlu0 0
        %1664 = vperm.xlu0 %1663, %v648
        %v1665 = vpop.permute.xlu0 %1664
        %1668 = vset.pattern.permute.xlu0 0
        %1669 = vperm.xlu0 %1668, %v649
        %v1670 = vpop.permute.xlu0 %1669
        %1673 = vset.pattern.permute.xlu0 0
        %1674 = vperm.xlu0 %1673, %v650
        %v1675 = vpop.permute.xlu0 %1674
        %1678 = vset.pattern.permute.xlu0 0
        %1679 = vperm.xlu0 %1678, %v651
        %v1680 = vpop.permute.xlu0 %1679
        %1683 = vset.pattern.permute.xlu0 0
        %1684 = vperm.xlu0 %1683, %v652
        %v1685 = vpop.permute.xlu0 %1684
        %v1695 = vunpack.c.l.b16 %v637
        %v1696 = vunpack.c.l.b16 %v638
        %v1697 = vunpack.c.l.b16 %v639
        %v1698 = vunpack.c.l.b16 %v640
        %v1699 = vunpack.c.l.b16 %v641
        %v1700 = vunpack.c.l.b16 %v642
        %v1701 = vunpack.c.l.b16 %v643
        %v1702 = vunpack.c.l.b16 %v644
        %v1703 = vpack.c.b16 %v1696, %v1695
        %v1704 = vpack.c.b16 %v1698, %v1697
        %v1705 = vpack.c.b16 %v1700, %v1699
        %v1706 = vpack.c.b16 %v1702, %v1701
        %1711 = vmatprep.subr.bf16.mxu0 0
        %1712 = vmatpush1.bf16.msra.mxu0 %v1434
        %1713 = vmatprep.subr.bf16.mxu0 0
        %1714 = vmatpush1.bf16.msra.mxu0 %v1433
        %1715 = vmatprep.subr.bf16.mxu0 0
        %1716 = vmatpush1.bf16.msra.mxu0 %v1432
        %1717 = vmatprep.subr.bf16.mxu0 0
        %1718 = vmatpush1.bf16.msra.mxu0 %v1431
        %1719 = vmatprep.subr.bf16.mxu0 0
        %1720 = vmatpush1.bf16.msra.mxu0 %v1430
        %1721 = vmatprep.subr.bf16.mxu0 0
        %1722 = vmatpush1.bf16.msra.mxu0 %v1429
        %1723 = vmatprep.subr.bf16.mxu0 0
        %1724 = vmatpush1.bf16.msra.mxu0 %v1428
        %1725 = vmatprep.subr.bf16.mxu0 0
        %1726 = vmatpush1.bf16.msra.mxu0 %v1427
        %1727 = vmatprep.subr.bf16.mxu0 0
        %1728 = vmatpush2.bf16.msra.mxu0 0
        %1729 = vmatprep.subr.bf16.mxu0 0
        %1730 = vmatpush2.bf16.msra.mxu0 0
        %1731 = vmatprep.subr.bf16.mxu0 0
        %1732 = vmatpush2.bf16.msra.mxu0 0
        %1733 = vmatprep.subr.bf16.mxu0 0
        %1734 = vmatpush2.bf16.msra.mxu0 0
        %1735 = vmatprep.subr.bf16.mxu0 0
        %1736 = vmatpush2.bf16.msra.mxu0 0
        %1737 = vmatprep.subr.bf16.mxu0 0
        %1738 = vmatpush2.bf16.msra.mxu0 0
        %1739 = vmatprep.subr.bf16.mxu0 0
        %1740 = vmatpush2.bf16.msra.mxu0 0
        %1741 = vmatprep.subr.bf16.mxu0 0
        %1742 = vmatpush2.bf16.msra.mxu0 0
        %1743 = vmatprep.mubr.bf16.mxu0 0
        %1744 = vmatmul.mubr.bf16.gmra.mxu0 %v1703
        %v1745 = vpop.f32.mrf.mxu0
        %v1746 = vadd.f32 %v1650, %v1745
        %v1747 = vpop.f32.mrf.mxu0
        %v1748 = vpop.f32.mrf.mxu0
        %v1749 = vadd.f32 %v1655, %v1748
        %v1750 = vpop.f32.mrf.mxu0
        %1751 = vmatprep.mubr.bf16.mxu0 0
        %1752 = vmatmul.mubr.bf16.gmra.mxu0 %v1704
        %v1753 = vpop.f32.mrf.mxu0
        %v1754 = vadd.f32 %v1660, %v1753
        %v1755 = vpop.f32.mrf.mxu0
        %v1756 = vpop.f32.mrf.mxu0
        %v1757 = vadd.f32 %v1665, %v1756
        %v1758 = vpop.f32.mrf.mxu0
        %1759 = vmatprep.mubr.bf16.mxu0 0
        %1760 = vmatmul.mubr.bf16.gmra.mxu0 %v1705
        %v1761 = vpop.f32.mrf.mxu0
        %v1762 = vadd.f32 %v1670, %v1761
        %v1763 = vpop.f32.mrf.mxu0
        %v1764 = vpop.f32.mrf.mxu0
        %v1765 = vadd.f32 %v1675, %v1764
        %v1766 = vpop.f32.mrf.mxu0
        %1767 = vmatprep.mubr.bf16.mxu0 0
        %1768 = vmatmul.mubr.bf16.gmra.mxu0 %v1706
        %v1769 = vpop.f32.mrf.mxu0
        %v1770 = vadd.f32 %v1680, %v1769
        %v1771 = vpop.f32.mrf.mxu0
        %v1772 = vpop.f32.mrf.mxu0
        %v1773 = vadd.f32 %v1685, %v1772
        %v1774 = vpop.f32.mrf.mxu0
        %1775 = vdwg.mxu0
        %v1776 = vmul.f32 %v1492, %v1746
        %v1777 = vmul.f32 %v1493, %v1749
        %v1778 = vmul.f32 %v1494, %v1754
        %v1779 = vmul.f32 %v1495, %v1757
        %v1780 = vadd.f32 %v1776, %v1762
        %v1781 = vadd.f32 %v1777, %v1765
        %v1782 = vadd.f32 %v1778, %v1770
        %v1783 = vadd.f32 %v1779, %v1773
        %vm1784 = vcmp.ge.f32.partialorder %v1780, 0.0
        %vm1785 = vcmp.ge.f32.partialorder %v1781, 0.0
        %vm1786 = vcmp.ge.f32.partialorder %v1782, 0.0
        %vm1787 = vcmp.ge.f32.partialorder %v1783, 0.0
        %v1788 = vmul.f32 %v1780, 0.2
        %v1789 = vmul.f32 %v1781, 0.2
        %v1790 = vmul.f32 %v1782, 0.2
        %v1791 = vmul.f32 %v1783, 0.2
        %v1792 = vsel %vm1784, %v1780, %v1788
        %v1793 = vsel %vm1785, %v1781, %v1789
        %v1794 = vsel %vm1786, %v1782, %v1790
        %v1795 = vsel %vm1787, %v1783, %v1791
        %v1796 = vpack.c.bf16 %v1793, %v1792
        %v1797 = vpack.c.bf16 %v1795, %v1794
        %1799 = vset.pattern.permute.xlu0 0
        %1800 = vperm.xlu0 %1799, %v673
        %v1801 = vpop.permute.xlu0 %1800
        %1804 = vset.pattern.permute.xlu0 0
        %1805 = vperm.xlu0 %1804, %v674
        %v1806 = vpop.permute.xlu0 %1805
        %1809 = vset.pattern.permute.xlu0 0
        %1810 = vperm.xlu0 %1809, %v675
        %v1811 = vpop.permute.xlu0 %1810
        %1814 = vset.pattern.permute.xlu0 0
        %1815 = vperm.xlu0 %1814, %v676
        %v1816 = vpop.permute.xlu0 %1815
        %v1822 = vunpack.c.l.b16 %v669
        %v1823 = vunpack.c.l.b16 %v670
        %v1824 = vunpack.c.l.b16 %v671
        %v1825 = vunpack.c.l.b16 %v672
        %v1826 = vpack.c.b16 %v1823, %v1822
        %v1827 = vpack.c.b16 %v1825, %v1824
        %vm1828 = vcmask 261120
        %v1830 = vsel %vm1828, %v1826, 0
        %v1833 = vsel %vm1828, %v1827, 0
        %1835 = vmatprep.subr.bf16.mxu0 0
        %1836 = vmatpush1.bf16.msra.mxu0 0
        %1837 = vmatprep.subr.bf16.mxu0 0
        %1838 = vmatpush1.bf16.msra.mxu0 0
        %1839 = vmatprep.subr.bf16.mxu0 0
        %1840 = vmatpush1.bf16.msra.mxu0 0
        %1841 = vmatprep.subr.bf16.mxu0 0
        %1842 = vmatpush1.bf16.msra.mxu0 0
        %1843 = vmatprep.subr.bf16.mxu0 0
        %1844 = vmatpush1.bf16.msra.mxu0 0
        %1845 = vmatprep.subr.bf16.mxu0 0
        %1846 = vmatpush1.bf16.msra.mxu0 0
        %1847 = vmatprep.subr.bf16.mxu0 0
        %1848 = vmatpush1.bf16.msra.mxu0 %v1797
        %1849 = vmatprep.subr.bf16.mxu0 0
        %1850 = vmatpush1.bf16.msra.mxu0 %v1796
        %1851 = vmatprep.subr.bf16.mxu0 0
        %1852 = vmatpush2.bf16.msra.mxu0 0
        %1853 = vmatprep.subr.bf16.mxu0 0
        %1854 = vmatpush2.bf16.msra.mxu0 0
        %1855 = vmatprep.subr.bf16.mxu0 0
        %1856 = vmatpush2.bf16.msra.mxu0 0
        %1857 = vmatprep.subr.bf16.mxu0 0
        %1858 = vmatpush2.bf16.msra.mxu0 0
        %1859 = vmatprep.subr.bf16.mxu0 0
        %1860 = vmatpush2.bf16.msra.mxu0 0
        %1861 = vmatprep.subr.bf16.mxu0 0
        %1862 = vmatpush2.bf16.msra.mxu0 0
        %1863 = vmatprep.subr.bf16.mxu0 0
        %1864 = vmatpush2.bf16.msra.mxu0 0
        %1865 = vmatprep.subr.bf16.mxu0 0
        %1866 = vmatpush2.bf16.msra.mxu0 0
        %1867 = vmatprep.mubr.bf16.mxu0 0
        %1868 = vmatmul.mubr.bf16.gmra.mxu0 %v1830
        %v1869 = vpop.f32.mrf.mxu0
        %v1870 = vadd.f32 %v1801, %v1869
        %v1871 = vpop.f32.mrf.mxu0
        %v1872 = vpop.f32.mrf.mxu0
        %v1873 = vadd.f32 %v1806, %v1872
        %v1874 = vpop.f32.mrf.mxu0
        %1875 = vmatprep.mubr.bf16.mxu0 0
        %1876 = vmatmul.mubr.bf16.gmra.mxu0 %v1833
        %v1877 = vpop.f32.mrf.mxu0
        %v1878 = vadd.f32 %v1811, %v1877
        %v1879 = vpop.f32.mrf.mxu0
        %v1880 = vpop.f32.mrf.mxu0
        %v1881 = vadd.f32 %v1816, %v1880
        %v1882 = vpop.f32.mrf.mxu0
        %1883 = vdwg.mxu0
        %1884 = vadd.xlane.f32.xlu0 %v1870
        %v1885 = vpop.xlane.xlu0 %1884
        %1886 = vadd.xlane.f32.xlu0 %v1873
        %v1887 = vpop.xlane.xlu0 %1886
        %1888 = vadd.xlane.f32.xlu0 %v1878
        %v1889 = vpop.xlane.xlu0 %1888
        %1890 = vadd.xlane.f32.xlu0 %v1881
        %v1891 = vpop.xlane.xlu0 %1890
        %v1892 = vmul.f32 %v1885, %v1451
        %v1893 = vmul.f32 %v1887, %v1451
        %v1894 = vmul.f32 %v1889, %v1451
        %v1895 = vmul.f32 %v1891, %v1451
        %v1896 = vmul.f32 %v1870, %v1870
        %v1897 = vmul.f32 %v1873, %v1873
        %v1898 = vmul.f32 %v1878, %v1878
        %v1899 = vmul.f32 %v1881, %v1881
        %1900 = vadd.xlane.f32.xlu0 %v1896
        %v1901 = vpop.xlane.xlu0 %1900
        %1902 = vadd.xlane.f32.xlu0 %v1897
        %v1903 = vpop.xlane.xlu0 %1902
        %1904 = vadd.xlane.f32.xlu0 %v1898
        %v1905 = vpop.xlane.xlu0 %1904
        %1906 = vadd.xlane.f32.xlu0 %v1899
        %v1907 = vpop.xlane.xlu0 %1906
        %v1908 = vmul.f32 %v1901, %v1451
        %v1909 = vmul.f32 %v1903, %v1451
        %v1910 = vmul.f32 %v1905, %v1451
        %v1911 = vmul.f32 %v1907, %v1451
        %v1912 = vmul.f32 %v1892, %v1892
        %v1913 = vmul.f32 %v1893, %v1893
        %v1914 = vmul.f32 %v1894, %v1894
        %v1915 = vmul.f32 %v1895, %v1895
        %v1916 = vsub.f32 %v1908, %v1912
        %v1917 = vsub.f32 %v1909, %v1913
        %v1918 = vsub.f32 %v1910, %v1914
        %v1919 = vsub.f32 %v1911, %v1915
        %v1920 = vsub.f32 %v1870, %v1892
        %v1921 = vsub.f32 %v1873, %v1893
        %v1922 = vsub.f32 %v1878, %v1894
        %v1923 = vsub.f32 %v1881, %v1895
        %v1924 = vadd.f32 %v1916, 1e-05
        %v1925 = vadd.f32 %v1917, 1e-05
        %v1926 = vadd.f32 %v1918, 1e-05
        %v1927 = vadd.f32 %v1919, 1e-05
        %v1928 = vrsqrt.pop %v1924
        %v1929 = vrsqrt.pop %v1925
        %v1930 = vrsqrt.pop %v1926
        %v1931 = vrsqrt.pop %v1927
        %v1932 = vmul.f32 %v1920, %v1928
        %v1933 = vmul.f32 %v1921, %v1929
        %v1934 = vmul.f32 %v1922, %v1930
        %v1935 = vmul.f32 %v1923, %v1931
        %1937 = vset.pattern.permute.xlu0 0
        %1938 = vperm.xlu0 %1937, %v661
        %v1939 = vpop.permute.xlu0 %1938
        %1942 = vset.pattern.permute.xlu0 0
        %1943 = vperm.xlu0 %1942, %v662
        %v1944 = vpop.permute.xlu0 %1943
        %1947 = vset.pattern.permute.xlu0 0
        %1948 = vperm.xlu0 %1947, %v663
        %v1949 = vpop.permute.xlu0 %1948
        %1952 = vset.pattern.permute.xlu0 0
        %1953 = vperm.xlu0 %1952, %v664
        %v1954 = vpop.permute.xlu0 %1953
        %1957 = vset.pattern.permute.xlu0 0
        %1958 = vperm.xlu0 %1957, %v665
        %v1959 = vpop.permute.xlu0 %1958
        %1962 = vset.pattern.permute.xlu0 0
        %1963 = vperm.xlu0 %1962, %v666
        %v1964 = vpop.permute.xlu0 %1963
        %1967 = vset.pattern.permute.xlu0 0
        %1968 = vperm.xlu0 %1967, %v667
        %v1969 = vpop.permute.xlu0 %1968
        %1972 = vset.pattern.permute.xlu0 0
        %1973 = vperm.xlu0 %1972, %v668
        %v1974 = vpop.permute.xlu0 %1973
        %v1984 = vunpack.c.l.b16 %v653
        %v1985 = vunpack.c.l.b16 %v654
        %v1986 = vunpack.c.l.b16 %v655
        %v1987 = vunpack.c.l.b16 %v656
        %v1988 = vunpack.c.l.b16 %v657
        %v1989 = vunpack.c.l.b16 %v658
        %v1990 = vunpack.c.l.b16 %v659
        %v1991 = vunpack.c.l.b16 %v660
        %v1992 = vpack.c.b16 %v1985, %v1984
        %v1993 = vpack.c.b16 %v1987, %v1986
        %v1994 = vpack.c.b16 %v1989, %v1988
        %v1995 = vpack.c.b16 %v1991, %v1990
        %2000 = vmatprep.subr.bf16.mxu0 0
        %2001 = vmatpush1.bf16.msra.mxu0 %v1442
        %2002 = vmatprep.subr.bf16.mxu0 0
        %2003 = vmatpush1.bf16.msra.mxu0 %v1441
        %2004 = vmatprep.subr.bf16.mxu0 0
        %2005 = vmatpush1.bf16.msra.mxu0 %v1440
        %2006 = vmatprep.subr.bf16.mxu0 0
        %2007 = vmatpush1.bf16.msra.mxu0 %v1439
        %2008 = vmatprep.subr.bf16.mxu0 0
        %2009 = vmatpush1.bf16.msra.mxu0 %v1438
        %2010 = vmatprep.subr.bf16.mxu0 0
        %2011 = vmatpush1.bf16.msra.mxu0 %v1437
        %2012 = vmatprep.subr.bf16.mxu0 0
        %2013 = vmatpush1.bf16.msra.mxu0 %v1436
        %2014 = vmatprep.subr.bf16.mxu0 0
        %2015 = vmatpush1.bf16.msra.mxu0 %v1435
        %2016 = vmatprep.subr.bf16.mxu0 0
        %2017 = vmatpush2.bf16.msra.mxu0 0
        %2018 = vmatprep.subr.bf16.mxu0 0
        %2019 = vmatpush2.bf16.msra.mxu0 0
        %2020 = vmatprep.subr.bf16.mxu0 0
        %2021 = vmatpush2.bf16.msra.mxu0 0
        %2022 = vmatprep.subr.bf16.mxu0 0
        %2023 = vmatpush2.bf16.msra.mxu0 0
        %2024 = vmatprep.subr.bf16.mxu0 0
        %2025 = vmatpush2.bf16.msra.mxu0 0
        %2026 = vmatprep.subr.bf16.mxu0 0
        %2027 = vmatpush2.bf16.msra.mxu0 0
        %2028 = vmatprep.subr.bf16.mxu0 0
        %2029 = vmatpush2.bf16.msra.mxu0 0
        %2030 = vmatprep.subr.bf16.mxu0 0
        %2031 = vmatpush2.bf16.msra.mxu0 0
        %2032 = vmatprep.mubr.bf16.mxu0 0
        %2033 = vmatmul.mubr.bf16.gmra.mxu0 %v1992
        %v2034 = vpop.f32.mrf.mxu0
        %v2035 = vadd.f32 %v1939, %v2034
        %v2036 = vpop.f32.mrf.mxu0
        %v2037 = vpop.f32.mrf.mxu0
        %v2038 = vadd.f32 %v1944, %v2037
        %v2039 = vpop.f32.mrf.mxu0
        %2040 = vmatprep.mubr.bf16.mxu0 0
        %2041 = vmatmul.mubr.bf16.gmra.mxu0 %v1993
        %v2042 = vpop.f32.mrf.mxu0
        %v2043 = vadd.f32 %v1949, %v2042
        %v2044 = vpop.f32.mrf.mxu0
        %v2045 = vpop.f32.mrf.mxu0
        %v2046 = vadd.f32 %v1954, %v2045
        %v2047 = vpop.f32.mrf.mxu0
        %2048 = vmatprep.mubr.bf16.mxu0 0
        %2049 = vmatmul.mubr.bf16.gmra.mxu0 %v1994
        %v2050 = vpop.f32.mrf.mxu0
        %v2051 = vadd.f32 %v1959, %v2050
        %v2052 = vpop.f32.mrf.mxu0
        %v2053 = vpop.f32.mrf.mxu0
        %v2054 = vadd.f32 %v1964, %v2053
        %v2055 = vpop.f32.mrf.mxu0
        %2056 = vmatprep.mubr.bf16.mxu0 0
        %2057 = vmatmul.mubr.bf16.gmra.mxu0 %v1995
        %v2058 = vpop.f32.mrf.mxu0
        %v2059 = vadd.f32 %v1969, %v2058
        %v2060 = vpop.f32.mrf.mxu0
        %v2061 = vpop.f32.mrf.mxu0
        %v2062 = vadd.f32 %v1974, %v2061
        %v2063 = vpop.f32.mrf.mxu0
        %2064 = vdwg.mxu0
        %v2065 = vmul.f32 %v1932, %v2035
        %v2066 = vmul.f32 %v1933, %v2038
        %v2067 = vmul.f32 %v1934, %v2043
        %v2068 = vmul.f32 %v1935, %v2046
        %v2069 = vadd.f32 %v2065, %v2051
        %v2070 = vadd.f32 %v2066, %v2054
        %v2071 = vadd.f32 %v2067, %v2059
        %v2072 = vadd.f32 %v2068, %v2062
        %vm2073 = vcmp.ge.f32.partialorder %v2069, 0.0
        %vm2074 = vcmp.ge.f32.partialorder %v2070, 0.0
        %vm2075 = vcmp.ge.f32.partialorder %v2071, 0.0
        %vm2076 = vcmp.ge.f32.partialorder %v2072, 0.0
        %v2077 = vmul.f32 %v2069, 0.2
        %v2078 = vmul.f32 %v2070, 0.2
        %v2079 = vmul.f32 %v2071, 0.2
        %v2080 = vmul.f32 %v2072, 0.2
        %v2081 = vsel %vm2073, %v2069, %v2077
        %v2082 = vsel %vm2074, %v2070, %v2078
        %v2083 = vsel %vm2075, %v2071, %v2079
        %v2084 = vsel %vm2076, %v2072, %v2080
        %v2085 = vpack.c.bf16 %v2082, %v2081
        %v2086 = vpack.c.bf16 %v2084, %v2083
        %2088 = vset.pattern.permute.xlu0 0
        %2089 = vperm.xlu0 %2088, %v685
        %v2090 = vpop.permute.xlu0 %2089
        %2093 = vset.pattern.permute.xlu0 0
        %2094 = vperm.xlu0 %2093, %v686
        %v2095 = vpop.permute.xlu0 %2094
        %2098 = vset.pattern.permute.xlu0 0
        %2099 = vperm.xlu0 %2098, %v687
        %v2100 = vpop.permute.xlu0 %2099
        %2103 = vset.pattern.permute.xlu0 0
        %2104 = vperm.xlu0 %2103, %v688
        %v2105 = vpop.permute.xlu0 %2104
        %2108 = vset.pattern.permute.xlu0 0
        %2109 = vperm.xlu0 %2108, %v689
        %v2110 = vpop.permute.xlu0 %2109
        %2113 = vset.pattern.permute.xlu0 0
        %2114 = vperm.xlu0 %2113, %v690
        %v2115 = vpop.permute.xlu0 %2114
        %2118 = vset.pattern.permute.xlu0 0
        %2119 = vperm.xlu0 %2118, %v691
        %v2120 = vpop.permute.xlu0 %2119
        %2123 = vset.pattern.permute.xlu0 0
        %2124 = vperm.xlu0 %2123, %v692
        %v2125 = vpop.permute.xlu0 %2124
        %v2135 = vunpack.c.l.b16 %v677
        %v2136 = vunpack.c.l.b16 %v678
        %v2137 = vunpack.c.l.b16 %v679
        %v2138 = vunpack.c.l.b16 %v680
        %v2139 = vunpack.c.l.b16 %v681
        %v2140 = vunpack.c.l.b16 %v682
        %v2141 = vunpack.c.l.b16 %v683
        %v2142 = vunpack.c.l.b16 %v684
        %v2143 = vpack.c.b16 %v2136, %v2135
        %v2144 = vpack.c.b16 %v2138, %v2137
        %v2145 = vpack.c.b16 %v2140, %v2139
        %v2146 = vpack.c.b16 %v2142, %v2141
        %v2148 = vsel %vm1828, %v2143, 0
        %v2151 = vsel %vm1828, %v2144, 0
        %v2154 = vsel %vm1828, %v2145, 0
        %v2157 = vsel %vm1828, %v2146, 0
        %2159 = vmatprep.subr.bf16.mxu0 0
        %2160 = vmatpush1.bf16.msra.mxu0 0
        %2161 = vmatprep.subr.bf16.mxu0 0
        %2162 = vmatpush1.bf16.msra.mxu0 0
        %2163 = vmatprep.subr.bf16.mxu0 0
        %2164 = vmatpush1.bf16.msra.mxu0 0
        %2165 = vmatprep.subr.bf16.mxu0 0
        %2166 = vmatpush1.bf16.msra.mxu0 0
        %2167 = vmatprep.subr.bf16.mxu0 0
        %2168 = vmatpush1.bf16.msra.mxu0 0
        %2169 = vmatprep.subr.bf16.mxu0 0
        %2170 = vmatpush1.bf16.msra.mxu0 0
        %2171 = vmatprep.subr.bf16.mxu0 0
        %2172 = vmatpush1.bf16.msra.mxu0 %v2086
        %2173 = vmatprep.subr.bf16.mxu0 0
        %2174 = vmatpush1.bf16.msra.mxu0 %v2085
        %2175 = vmatprep.subr.bf16.mxu0 0
        %2176 = vmatpush2.bf16.msra.mxu0 0
        %2177 = vmatprep.subr.bf16.mxu0 0
        %2178 = vmatpush2.bf16.msra.mxu0 0
        %2179 = vmatprep.subr.bf16.mxu0 0
        %2180 = vmatpush2.bf16.msra.mxu0 0
        %2181 = vmatprep.subr.bf16.mxu0 0
        %2182 = vmatpush2.bf16.msra.mxu0 0
        %2183 = vmatprep.subr.bf16.mxu0 0
        %2184 = vmatpush2.bf16.msra.mxu0 0
        %2185 = vmatprep.subr.bf16.mxu0 0
        %2186 = vmatpush2.bf16.msra.mxu0 0
        %2187 = vmatprep.subr.bf16.mxu0 0
        %2188 = vmatpush2.bf16.msra.mxu0 0
        %2189 = vmatprep.subr.bf16.mxu0 0
        %2190 = vmatpush2.bf16.msra.mxu0 0
        %2191 = vmatprep.mubr.bf16.mxu0 0
        %2192 = vmatmul.mubr.bf16.gmra.mxu0 %v2148
        %v2193 = vpop.f32.mrf.mxu0
        %v2194 = vadd.f32 %v2090, %v2193
        %v2195 = vpop.f32.mrf.mxu0
        %v2196 = vpop.f32.mrf.mxu0
        %v2197 = vadd.f32 %v2095, %v2196
        %v2198 = vpop.f32.mrf.mxu0
        %2199 = vmatprep.mubr.bf16.mxu0 0
        %2200 = vmatmul.mubr.bf16.gmra.mxu0 %v2151
        %v2201 = vpop.f32.mrf.mxu0
        %v2202 = vadd.f32 %v2100, %v2201
        %v2203 = vpop.f32.mrf.mxu0
        %v2204 = vpop.f32.mrf.mxu0
        %v2205 = vadd.f32 %v2105, %v2204
        %v2206 = vpop.f32.mrf.mxu0
        %2207 = vmatprep.mubr.bf16.mxu0 0
        %2208 = vmatmul.mubr.bf16.gmra.mxu0 %v2154
        %v2209 = vpop.f32.mrf.mxu0
        %v2210 = vadd.f32 %v2110, %v2209
        %v2211 = vpop.f32.mrf.mxu0
        %v2212 = vpop.f32.mrf.mxu0
        %v2213 = vadd.f32 %v2115, %v2212
        %v2214 = vpop.f32.mrf.mxu0
        %2215 = vmatprep.mubr.bf16.mxu0 0
        %2216 = vmatmul.mubr.bf16.gmra.mxu0 %v2157
        %v2217 = vpop.f32.mrf.mxu0
        %v2218 = vadd.f32 %v2120, %v2217
        %v2219 = vpop.f32.mrf.mxu0
        %v2220 = vpop.f32.mrf.mxu0
        %v2221 = vadd.f32 %v2125, %v2220
        %v2222 = vpop.f32.mrf.mxu0
        %2223 = vdwg.mxu0
        %v2232 = vunpack.c.l.b16 %v693
        %v2233 = vunpack.c.l.b16 %v694
        %v2234 = vunpack.c.l.b16 %v695
        %v2235 = vunpack.c.l.b16 %v696
        %v2236 = vunpack.c.l.b16 %v697
        %v2237 = vunpack.c.l.b16 %v698
        %v2238 = vunpack.c.l.b16 %v699
        %v2239 = vunpack.c.l.b16 %v700
        %v2240 = vpack.c.b16 %v2233, %v2232
        %v2241 = vpack.c.b16 %v2235, %v2234
        %v2242 = vpack.c.b16 %v2237, %v2236
        %v2243 = vpack.c.b16 %v2239, %v2238
        %v2245 = vsel %vm1828, %v2240, 0
        %v2248 = vsel %vm1828, %v2241, 0
        %v2251 = vsel %vm1828, %v2242, 0
        %v2254 = vsel %vm1828, %v2243, 0
        %2256 = vmatprep.subr.bf16.mxu0 0
        %2257 = vmatpush1.bf16.msra.mxu0 0
        %2258 = vmatprep.subr.bf16.mxu0 0
        %2259 = vmatpush1.bf16.msra.mxu0 0
        %2260 = vmatprep.subr.bf16.mxu0 0
        %2261 = vmatpush1.bf16.msra.mxu0 0
        %2262 = vmatprep.subr.bf16.mxu0 0
        %2263 = vmatpush1.bf16.msra.mxu0 0
        %2264 = vmatprep.subr.bf16.mxu0 0
        %2265 = vmatpush1.bf16.msra.mxu0 0
        %2266 = vmatprep.subr.bf16.mxu0 0
        %2267 = vmatpush1.bf16.msra.mxu0 0
        %2268 = vmatprep.subr.bf16.mxu0 0
        %2269 = vmatpush1.bf16.msra.mxu0 %v1646
        %2270 = vmatprep.subr.bf16.mxu0 0
        %2271 = vmatpush1.bf16.msra.mxu0 %v1645
        %2272 = vmatprep.subr.bf16.mxu0 0
        %2273 = vmatpush2.bf16.msra.mxu0 0
        %2274 = vmatprep.subr.bf16.mxu0 0
        %2275 = vmatpush2.bf16.msra.mxu0 0
        %2276 = vmatprep.subr.bf16.mxu0 0
        %2277 = vmatpush2.bf16.msra.mxu0 0
        %2278 = vmatprep.subr.bf16.mxu0 0
        %2279 = vmatpush2.bf16.msra.mxu0 0
        %2280 = vmatprep.subr.bf16.mxu0 0
        %2281 = vmatpush2.bf16.msra.mxu0 0
        %2282 = vmatprep.subr.bf16.mxu0 0
        %2283 = vmatpush2.bf16.msra.mxu0 0
        %2284 = vmatprep.subr.bf16.mxu0 0
        %2285 = vmatpush2.bf16.msra.mxu0 0
        %2286 = vmatprep.subr.bf16.mxu0 0
        %2287 = vmatpush2.bf16.msra.mxu0 0
        %2288 = vmatprep.mubr.bf16.mxu0 0
        %2289 = vmatmul.mubr.bf16.gmra.mxu0 %v2245
        %v2290 = vpop.f32.mrf.mxu0
        %v2291 = vadd.f32 %v2194, %v2290
        %v2292 = vpop.f32.mrf.mxu0
        %v2293 = vpop.f32.mrf.mxu0
        %v2294 = vadd.f32 %v2197, %v2293
        %v2295 = vpop.f32.mrf.mxu0
        %2296 = vmatprep.mubr.bf16.mxu0 0
        %2297 = vmatmul.mubr.bf16.gmra.mxu0 %v2248
        %v2298 = vpop.f32.mrf.mxu0
        %v2299 = vadd.f32 %v2202, %v2298
        %v2300 = vpop.f32.mrf.mxu0
        %v2301 = vpop.f32.mrf.mxu0
        %v2302 = vadd.f32 %v2205, %v2301
        %v2303 = vpop.f32.mrf.mxu0
        %2304 = vmatprep.mubr.bf16.mxu0 0
        %2305 = vmatmul.mubr.bf16.gmra.mxu0 %v2251
        %v2306 = vpop.f32.mrf.mxu0
        %v2307 = vadd.f32 %v2210, %v2306
        %v2308 = vpop.f32.mrf.mxu0
        %v2309 = vpop.f32.mrf.mxu0
        %v2310 = vadd.f32 %v2213, %v2309
        %v2311 = vpop.f32.mrf.mxu0
        %2312 = vmatprep.mubr.bf16.mxu0 0
        %2313 = vmatmul.mubr.bf16.gmra.mxu0 %v2254
        %v2314 = vpop.f32.mrf.mxu0
        %v2315 = vadd.f32 %v2218, %v2314
        %v2316 = vpop.f32.mrf.mxu0
        %v2317 = vpop.f32.mrf.mxu0
        %v2318 = vadd.f32 %v2221, %v2317
        %v2319 = vpop.f32.mrf.mxu0
        %2320 = vdwg.mxu0
        %2321 = vst [vmem:[%s508] sm:$0xff] %v2291
        %2322 = vst [vmem:[%s508 + $0x8] sm:$0xff] %v2294
        %2323 = vst [vmem:[%s508 + $0x10] sm:$0xff] %v2299
        %2324 = vst [vmem:[%s508 + $0x18] sm:$0xff] %v2302
        %2325 = vst [vmem:[%s508 + $0x20] sm:$0xff] %v2307
        %2326 = vst [vmem:[%s508 + $0x28] sm:$0xff] %v2310
        %2327 = vst [vmem:[%s508 + $0x30] sm:$0xff] %v2315
        %2328 = vst [vmem:[%s508 + $0x38] sm:$0xff] %v2318
        %s2329 = scalar_lea.vmem %s514, 32
        %v2330 = vld [vmem:[%s2329] sm:$0xff]
        %v2331 = vld [vmem:[%s2329 + $0x8] sm:$0xff]
        %v2332 = vld [vmem:[%s2329 + $0x10] sm:$0xff]
        %v2333 = vld [vmem:[%s2329 + $0x18] sm:$0xff]
        %s2334 = scalar_lea.vmem %s521, 8
        %v2335 = vld [vmem:[%s2334] sm:$0xf]
        %v2336 = vld [vmem:[%s2334 + $0x4] sm:$0xf]
        %v2339 = vunpack.c.l.b16 %v2335
        %v2340 = vunpack.c.l.b16 %v2336
        %v2341 = vpack.c.b16 %v2340, %v2339
        %2343 = vmatprep.subr.bf16.mxu0 0
        %2344 = vmatpush1.bf16.msra.mxu0 0
        %2345 = vmatprep.subr.bf16.mxu0 0
        %2346 = vmatpush1.bf16.msra.mxu0 0
        %2347 = vmatprep.subr.bf16.mxu0 0
        %2348 = vmatpush1.bf16.msra.mxu0 0
        %2349 = vmatprep.subr.bf16.mxu0 0
        %2350 = vmatpush1.bf16.msra.mxu0 0
        %2351 = vmatprep.subr.bf16.mxu0 0
        %2352 = vmatpush1.bf16.msra.mxu0 0
        %2353 = vmatprep.subr.bf16.mxu0 0
        %2354 = vmatpush1.bf16.msra.mxu0 0
        %2355 = vmatprep.subr.bf16.mxu0 0
        %2356 = vmatpush1.bf16.msra.mxu0 0
        %2357 = vmatprep.subr.bf16.mxu0 0
        %2358 = vmatpush1.bf16.msra.mxu0 %v2341
        %2359 = vmatprep.subr.bf16.mxu0 0
        %2360 = vmatpush2.bf16.msra.mxu0 0
        %2361 = vmatprep.subr.bf16.mxu0 0
        %2362 = vmatpush2.bf16.msra.mxu0 0
        %2363 = vmatprep.subr.bf16.mxu0 0
        %2364 = vmatpush2.bf16.msra.mxu0 0
        %2365 = vmatprep.subr.bf16.mxu0 0
        %2366 = vmatpush2.bf16.msra.mxu0 0
        %2367 = vmatprep.subr.bf16.mxu0 0
        %2368 = vmatpush2.bf16.msra.mxu0 0
        %2369 = vmatprep.subr.bf16.mxu0 0
        %2370 = vmatpush2.bf16.msra.mxu0 0
        %2371 = vmatprep.subr.bf16.mxu0 0
        %2372 = vmatpush2.bf16.msra.mxu0 0
        %2373 = vmatprep.subr.bf16.mxu0 0
        %2374 = vmatpush2.bf16.msra.mxu0 0
        %2375 = vmatprep.mubr.bf16.mxu0 0
        %2376 = vmatmul.mubr.bf16.gmra.mxu0 %v1075
        %v2377 = vpop.f32.mrf.mxu0
        %v2378 = vadd.f32 %v710, %v2377
        %v2379 = vpop.f32.mrf.mxu0
        %v2380 = vpop.f32.mrf.mxu0
        %v2381 = vadd.f32 %v715, %v2380
        %v2382 = vpop.f32.mrf.mxu0
        %2383 = vmatprep.mubr.bf16.mxu0 0
        %2384 = vmatmul.mubr.bf16.gmra.mxu0 %v1078
        %v2385 = vpop.f32.mrf.mxu0
        %v2386 = vadd.f32 %v720, %v2385
        %v2387 = vpop.f32.mrf.mxu0
        %v2388 = vpop.f32.mrf.mxu0
        %v2389 = vadd.f32 %v725, %v2388
        %v2390 = vpop.f32.mrf.mxu0
        %2391 = vmatprep.mubr.bf16.mxu0 0
        %2392 = vmatmul.mubr.bf16.gmra.mxu0 %v1081
        %v2393 = vpop.f32.mrf.mxu0
        %v2394 = vadd.f32 %v730, %v2393
        %v2395 = vpop.f32.mrf.mxu0
        %v2396 = vpop.f32.mrf.mxu0
        %v2397 = vadd.f32 %v735, %v2396
        %v2398 = vpop.f32.mrf.mxu0
        %2399 = vmatprep.mubr.bf16.mxu0 0
        %2400 = vmatmul.mubr.bf16.gmra.mxu0 %v1084
        %v2401 = vpop.f32.mrf.mxu0
        %v2402 = vadd.f32 %v740, %v2401
        %v2403 = vpop.f32.mrf.mxu0
        %v2404 = vpop.f32.mrf.mxu0
        %v2405 = vadd.f32 %v745, %v2404
        %v2406 = vpop.f32.mrf.mxu0
        %2407 = vmatprep.mubr.bf16.mxu0 0
        %2408 = vmatmul.mubr.bf16.gmra.mxu0 %v1087
        %v2409 = vpop.f32.mrf.mxu0
        %v2410 = vadd.f32 %v750, %v2409
        %v2411 = vpop.f32.mrf.mxu0
        %v2412 = vpop.f32.mrf.mxu0
        %v2413 = vadd.f32 %v755, %v2412
        %v2414 = vpop.f32.mrf.mxu0
        %2415 = vmatprep.mubr.bf16.mxu0 0
        %2416 = vmatmul.mubr.bf16.gmra.mxu0 %v1090
        %v2417 = vpop.f32.mrf.mxu0
        %v2418 = vadd.f32 %v760, %v2417
        %v2419 = vpop.f32.mrf.mxu0
        %v2420 = vpop.f32.mrf.mxu0
        %v2421 = vadd.f32 %v765, %v2420
        %v2422 = vpop.f32.mrf.mxu0
        %2423 = vmatprep.mubr.bf16.mxu0 0
        %2424 = vmatmul.mubr.bf16.gmra.mxu0 %v1093
        %v2425 = vpop.f32.mrf.mxu0
        %v2426 = vadd.f32 %v770, %v2425
        %v2427 = vpop.f32.mrf.mxu0
        %v2428 = vpop.f32.mrf.mxu0
        %v2429 = vadd.f32 %v775, %v2428
        %v2430 = vpop.f32.mrf.mxu0
        %2431 = vmatprep.mubr.bf16.mxu0 0
        %2432 = vmatmul.mubr.bf16.gmra.mxu0 %v1096
        %v2433 = vpop.f32.mrf.mxu0
        %v2434 = vadd.f32 %v780, %v2433
        %v2435 = vpop.f32.mrf.mxu0
        %v2436 = vpop.f32.mrf.mxu0
        %v2437 = vadd.f32 %v785, %v2436
        %v2438 = vpop.f32.mrf.mxu0
        %2439 = vmatprep.mubr.bf16.mxu0 0
        %2440 = vmatmul.mubr.bf16.gmra.mxu0 %v1099
        %v2441 = vpop.f32.mrf.mxu0
        %v2442 = vadd.f32 %v790, %v2441
        %v2443 = vpop.f32.mrf.mxu0
        %v2444 = vpop.f32.mrf.mxu0
        %v2445 = vadd.f32 %v795, %v2444
        %v2446 = vpop.f32.mrf.mxu0
        %2447 = vmatprep.mubr.bf16.mxu0 0
        %2448 = vmatmul.mubr.bf16.gmra.mxu0 %v1102
        %v2449 = vpop.f32.mrf.mxu0
        %v2450 = vadd.f32 %v800, %v2449
        %v2451 = vpop.f32.mrf.mxu0
        %v2452 = vpop.f32.mrf.mxu0
        %v2453 = vadd.f32 %v805, %v2452
        %v2454 = vpop.f32.mrf.mxu0
        %2455 = vmatprep.mubr.bf16.mxu0 0
        %2456 = vmatmul.mubr.bf16.gmra.mxu0 %v1105
        %v2457 = vpop.f32.mrf.mxu0
        %v2458 = vadd.f32 %v810, %v2457
        %v2459 = vpop.f32.mrf.mxu0
        %v2460 = vpop.f32.mrf.mxu0
        %v2461 = vadd.f32 %v815, %v2460
        %v2462 = vpop.f32.mrf.mxu0
        %2463 = vmatprep.mubr.bf16.mxu0 0
        %2464 = vmatmul.mubr.bf16.gmra.mxu0 %v1108
        %v2465 = vpop.f32.mrf.mxu0
        %v2466 = vadd.f32 %v820, %v2465
        %v2467 = vpop.f32.mrf.mxu0
        %v2468 = vpop.f32.mrf.mxu0
        %v2469 = vadd.f32 %v825, %v2468
        %v2470 = vpop.f32.mrf.mxu0
        %2471 = vmatprep.mubr.bf16.mxu0 0
        %2472 = vmatmul.mubr.bf16.gmra.mxu0 %v1111
        %v2473 = vpop.f32.mrf.mxu0
        %v2474 = vadd.f32 %v830, %v2473
        %v2475 = vpop.f32.mrf.mxu0
        %v2476 = vpop.f32.mrf.mxu0
        %v2477 = vadd.f32 %v835, %v2476
        %v2478 = vpop.f32.mrf.mxu0
        %2479 = vmatprep.mubr.bf16.mxu0 0
        %2480 = vmatmul.mubr.bf16.gmra.mxu0 %v1114
        %v2481 = vpop.f32.mrf.mxu0
        %v2482 = vadd.f32 %v840, %v2481
        %v2483 = vpop.f32.mrf.mxu0
        %v2484 = vpop.f32.mrf.mxu0
        %v2485 = vadd.f32 %v845, %v2484
        %v2486 = vpop.f32.mrf.mxu0
        %2487 = vmatprep.mubr.bf16.mxu0 0
        %2488 = vmatmul.mubr.bf16.gmra.mxu0 %v1117
        %v2489 = vpop.f32.mrf.mxu0
        %v2490 = vadd.f32 %v850, %v2489
        %v2491 = vpop.f32.mrf.mxu0
        %v2492 = vpop.f32.mrf.mxu0
        %v2493 = vadd.f32 %v855, %v2492
        %v2494 = vpop.f32.mrf.mxu0
        %2495 = vmatprep.mubr.bf16.mxu0 0
        %2496 = vmatmul.mubr.bf16.gmra.mxu0 %v1120
        %v2497 = vpop.f32.mrf.mxu0
        %v2498 = vadd.f32 %v860, %v2497
        %v2499 = vpop.f32.mrf.mxu0
        %v2500 = vpop.f32.mrf.mxu0
        %v2501 = vadd.f32 %v865, %v2500
        %v2502 = vpop.f32.mrf.mxu0
        %2503 = vmatprep.mubr.bf16.mxu0 0
        %2504 = vmatmul.mubr.bf16.gmra.mxu0 %v1123
        %v2505 = vpop.f32.mrf.mxu0
        %v2506 = vadd.f32 %v870, %v2505
        %v2507 = vpop.f32.mrf.mxu0
        %v2508 = vpop.f32.mrf.mxu0
        %v2509 = vadd.f32 %v875, %v2508
        %v2510 = vpop.f32.mrf.mxu0
        %2511 = vmatprep.mubr.bf16.mxu0 0
        %2512 = vmatmul.mubr.bf16.gmra.mxu0 %v1126
        %v2513 = vpop.f32.mrf.mxu0
        %v2514 = vadd.f32 %v880, %v2513
        %v2515 = vpop.f32.mrf.mxu0
        %v2516 = vpop.f32.mrf.mxu0
        %v2517 = vadd.f32 %v885, %v2516
        %v2518 = vpop.f32.mrf.mxu0
        %2519 = vmatprep.mubr.bf16.mxu0 0
        %2520 = vmatmul.mubr.bf16.gmra.mxu0 %v1129
        %v2521 = vpop.f32.mrf.mxu0
        %v2522 = vadd.f32 %v890, %v2521
        %v2523 = vpop.f32.mrf.mxu0
        %v2524 = vpop.f32.mrf.mxu0
        %v2525 = vadd.f32 %v895, %v2524
        %v2526 = vpop.f32.mrf.mxu0
        %2527 = vmatprep.mubr.bf16.mxu0 0
        %2528 = vmatmul.mubr.bf16.gmra.mxu0 %v1132
        %v2529 = vpop.f32.mrf.mxu0
        %v2530 = vadd.f32 %v900, %v2529
        %v2531 = vpop.f32.mrf.mxu0
        %v2532 = vpop.f32.mrf.mxu0
        %v2533 = vadd.f32 %v905, %v2532
        %v2534 = vpop.f32.mrf.mxu0
        %2535 = vmatprep.mubr.bf16.mxu0 0
        %2536 = vmatmul.mubr.bf16.gmra.mxu0 %v1135
        %v2537 = vpop.f32.mrf.mxu0
        %v2538 = vadd.f32 %v910, %v2537
        %v2539 = vpop.f32.mrf.mxu0
        %v2540 = vpop.f32.mrf.mxu0
        %v2541 = vadd.f32 %v915, %v2540
        %v2542 = vpop.f32.mrf.mxu0
        %2543 = vmatprep.mubr.bf16.mxu0 0
        %2544 = vmatmul.mubr.bf16.gmra.mxu0 %v1138
        %v2545 = vpop.f32.mrf.mxu0
        %v2546 = vadd.f32 %v920, %v2545
        %v2547 = vpop.f32.mrf.mxu0
        %v2548 = vpop.f32.mrf.mxu0
        %v2549 = vadd.f32 %v925, %v2548
        %v2550 = vpop.f32.mrf.mxu0
        %2551 = vmatprep.mubr.bf16.mxu0 0
        %2552 = vmatmul.mubr.bf16.gmra.mxu0 %v1141
        %v2553 = vpop.f32.mrf.mxu0
        %v2554 = vadd.f32 %v930, %v2553
        %v2555 = vpop.f32.mrf.mxu0
        %v2556 = vpop.f32.mrf.mxu0
        %v2557 = vadd.f32 %v935, %v2556
        %v2558 = vpop.f32.mrf.mxu0
        %2559 = vmatprep.mubr.bf16.mxu0 0
        %2560 = vmatmul.mubr.bf16.gmra.mxu0 %v1144
        %v2561 = vpop.f32.mrf.mxu0
        %v2562 = vadd.f32 %v940, %v2561
        %v2563 = vpop.f32.mrf.mxu0
        %v2564 = vpop.f32.mrf.mxu0
        %v2565 = vadd.f32 %v945, %v2564
        %v2566 = vpop.f32.mrf.mxu0
        %2567 = vdwg.mxu0
        %v2568 = vmax.f32 %v2378, 0.0
        %v2569 = vmax.f32 %v2381, 0.0
        %v2570 = vmax.f32 %v2386, 0.0
        %v2571 = vmax.f32 %v2389, 0.0
        %v2572 = vmax.f32 %v2394, 0.0
        %v2573 = vmax.f32 %v2397, 0.0
        %v2574 = vmax.f32 %v2402, 0.0
        %v2575 = vmax.f32 %v2405, 0.0
        %v2576 = vmax.f32 %v2410, 0.0
        %v2577 = vmax.f32 %v2413, 0.0
        %v2578 = vmax.f32 %v2418, 0.0
        %v2579 = vmax.f32 %v2421, 0.0
        %v2580 = vmax.f32 %v2426, 0.0
        %v2581 = vmax.f32 %v2429, 0.0
        %v2582 = vmax.f32 %v2434, 0.0
        %v2583 = vmax.f32 %v2437, 0.0
        %v2584 = vmax.f32 %v2442, 0.0
        %v2585 = vmax.f32 %v2445, 0.0
        %v2586 = vmax.f32 %v2450, 0.0
        %v2587 = vmax.f32 %v2453, 0.0
        %v2588 = vmax.f32 %v2458, 0.0
        %v2589 = vmax.f32 %v2461, 0.0
        %v2590 = vmax.f32 %v2466, 0.0
        %v2591 = vmax.f32 %v2469, 0.0
        %v2592 = vmax.f32 %v2474, 0.0
        %v2593 = vmax.f32 %v2477, 0.0
        %v2594 = vmax.f32 %v2482, 0.0
        %v2595 = vmax.f32 %v2485, 0.0
        %v2596 = vmax.f32 %v2490, 0.0
        %v2597 = vmax.f32 %v2493, 0.0
        %v2598 = vmax.f32 %v2498, 0.0
        %v2599 = vmax.f32 %v2501, 0.0
        %v2600 = vmax.f32 %v2506, 0.0
        %v2601 = vmax.f32 %v2509, 0.0
        %v2602 = vmax.f32 %v2514, 0.0
        %v2603 = vmax.f32 %v2517, 0.0
        %v2604 = vmax.f32 %v2522, 0.0
        %v2605 = vmax.f32 %v2525, 0.0
        %v2606 = vmax.f32 %v2530, 0.0
        %v2607 = vmax.f32 %v2533, 0.0
        %v2608 = vmax.f32 %v2538, 0.0
        %v2609 = vmax.f32 %v2541, 0.0
        %v2610 = vmax.f32 %v2546, 0.0
        %v2611 = vmax.f32 %v2549, 0.0
        %v2612 = vmax.f32 %v2554, 0.0
        %v2613 = vmax.f32 %v2557, 0.0
        %v2614 = vmax.f32 %v2562, 0.0
        %v2615 = vmax.f32 %v2565, 0.0
        %v2616 = vpack.c.bf16 %v2569, %v2568
        %v2617 = vpack.c.bf16 %v2571, %v2570
        %v2618 = vpack.c.bf16 %v2573, %v2572
        %v2619 = vpack.c.bf16 %v2575, %v2574
        %v2620 = vpack.c.bf16 %v2577, %v2576
        %v2621 = vpack.c.bf16 %v2579, %v2578
        %v2622 = vpack.c.bf16 %v2581, %v2580
        %v2623 = vpack.c.bf16 %v2583, %v2582
        %v2624 = vpack.c.bf16 %v2585, %v2584
        %v2625 = vpack.c.bf16 %v2587, %v2586
        %v2626 = vpack.c.bf16 %v2589, %v2588
        %v2627 = vpack.c.bf16 %v2591, %v2590
        %v2628 = vpack.c.bf16 %v2593, %v2592
        %v2629 = vpack.c.bf16 %v2595, %v2594
        %v2630 = vpack.c.bf16 %v2597, %v2596
        %v2631 = vpack.c.bf16 %v2599, %v2598
        %v2632 = vpack.c.bf16 %v2601, %v2600
        %v2633 = vpack.c.bf16 %v2603, %v2602
        %v2634 = vpack.c.bf16 %v2605, %v2604
        %v2635 = vpack.c.bf16 %v2607, %v2606
        %v2636 = vpack.c.bf16 %v2609, %v2608
        %v2637 = vpack.c.bf16 %v2611, %v2610
        %v2638 = vpack.c.bf16 %v2613, %v2612
        %v2639 = vpack.c.bf16 %v2615, %v2614
        %2640 = vadd.xlane.f32.xlu0 %v2330
        %v2641 = vpop.xlane.xlu0 %2640
        %2642 = vadd.xlane.f32.xlu0 %v2331
        %v2643 = vpop.xlane.xlu0 %2642
        %2644 = vadd.xlane.f32.xlu0 %v2332
        %v2645 = vpop.xlane.xlu0 %2644
        %2646 = vadd.xlane.f32.xlu0 %v2333
        %v2647 = vpop.xlane.xlu0 %2646
        %v2648 = vmul.f32 %v2641, %v1451
        %v2649 = vmul.f32 %v2643, %v1451
        %v2650 = vmul.f32 %v2645, %v1451
        %v2651 = vmul.f32 %v2647, %v1451
        %v2652 = vmul.f32 %v2330, %v2330
        %v2653 = vmul.f32 %v2331, %v2331
        %v2654 = vmul.f32 %v2332, %v2332
        %v2655 = vmul.f32 %v2333, %v2333
        %2656 = vadd.xlane.f32.xlu0 %v2652
        %v2657 = vpop.xlane.xlu0 %2656
        %2658 = vadd.xlane.f32.xlu0 %v2653
        %v2659 = vpop.xlane.xlu0 %2658
        %2660 = vadd.xlane.f32.xlu0 %v2654
        %v2661 = vpop.xlane.xlu0 %2660
        %2662 = vadd.xlane.f32.xlu0 %v2655
        %v2663 = vpop.xlane.xlu0 %2662
        %v2664 = vmul.f32 %v2657, %v1451
        %v2665 = vmul.f32 %v2659, %v1451
        %v2666 = vmul.f32 %v2661, %v1451
        %v2667 = vmul.f32 %v2663, %v1451
        %v2668 = vmul.f32 %v2648, %v2648
        %v2669 = vmul.f32 %v2649, %v2649
        %v2670 = vmul.f32 %v2650, %v2650
        %v2671 = vmul.f32 %v2651, %v2651
        %v2672 = vsub.f32 %v2664, %v2668
        %v2673 = vsub.f32 %v2665, %v2669
        %v2674 = vsub.f32 %v2666, %v2670
        %v2675 = vsub.f32 %v2667, %v2671
        %v2676 = vsub.f32 %v2330, %v2648
        %v2677 = vsub.f32 %v2331, %v2649
        %v2678 = vsub.f32 %v2332, %v2650
        %v2679 = vsub.f32 %v2333, %v2651
        %v2680 = vadd.f32 %v2672, 1e-05
        %v2681 = vadd.f32 %v2673, 1e-05
        %v2682 = vadd.f32 %v2674, 1e-05
        %v2683 = vadd.f32 %v2675, 1e-05
        %v2684 = vrsqrt.pop %v2680
        %v2685 = vrsqrt.pop %v2681
        %v2686 = vrsqrt.pop %v2682
        %v2687 = vrsqrt.pop %v2683
        %v2688 = vmul.f32 %v2676, %v2684
        %v2689 = vmul.f32 %v2677, %v2685
        %v2690 = vmul.f32 %v2678, %v2686
        %v2691 = vmul.f32 %v2679, %v2687
        %2692 = vmatprep.subr.bf16.mxu0 0
        %2693 = vmatpush1.bf16.msra.mxu0 %v2623
        %2694 = vmatprep.subr.bf16.mxu0 0
        %2695 = vmatpush1.bf16.msra.mxu0 %v2622
        %2696 = vmatprep.subr.bf16.mxu0 0
        %2697 = vmatpush1.bf16.msra.mxu0 %v2621
        %2698 = vmatprep.subr.bf16.mxu0 0
        %2699 = vmatpush1.bf16.msra.mxu0 %v2620
        %2700 = vmatprep.subr.bf16.mxu0 0
        %2701 = vmatpush1.bf16.msra.mxu0 %v2619
        %2702 = vmatprep.subr.bf16.mxu0 0
        %2703 = vmatpush1.bf16.msra.mxu0 %v2618
        %2704 = vmatprep.subr.bf16.mxu0 0
        %2705 = vmatpush1.bf16.msra.mxu0 %v2617
        %2706 = vmatprep.subr.bf16.mxu0 0
        %2707 = vmatpush1.bf16.msra.mxu0 %v2616
        %2708 = vmatprep.subr.bf16.mxu0 0
        %2709 = vmatpush2.bf16.msra.mxu0 0
        %2710 = vmatprep.subr.bf16.mxu0 0
        %2711 = vmatpush2.bf16.msra.mxu0 0
        %2712 = vmatprep.subr.bf16.mxu0 0
        %2713 = vmatpush2.bf16.msra.mxu0 0
        %2714 = vmatprep.subr.bf16.mxu0 0
        %2715 = vmatpush2.bf16.msra.mxu0 0
        %2716 = vmatprep.subr.bf16.mxu0 0
        %2717 = vmatpush2.bf16.msra.mxu0 0
        %2718 = vmatprep.subr.bf16.mxu0 0
        %2719 = vmatpush2.bf16.msra.mxu0 0
        %2720 = vmatprep.subr.bf16.mxu0 0
        %2721 = vmatpush2.bf16.msra.mxu0 0
        %2722 = vmatprep.subr.bf16.mxu0 0
        %2723 = vmatpush2.bf16.msra.mxu0 0
        %2724 = vmatprep.mubr.bf16.mxu0 0
        %2725 = vmatmul.mubr.bf16.gmra.mxu0 %v1552
        %v2726 = vpop.f32.mrf.mxu0
        %v2727 = vadd.f32 %v1499, %v2726
        %v2728 = vpop.f32.mrf.mxu0
        %v2729 = vpop.f32.mrf.mxu0
        %v2730 = vadd.f32 %v1504, %v2729
        %v2731 = vpop.f32.mrf.mxu0
        %2732 = vmatprep.mubr.bf16.mxu0 0
        %2733 = vmatmul.mubr.bf16.gmra.mxu0 %v1553
        %v2734 = vpop.f32.mrf.mxu0
        %v2735 = vadd.f32 %v1509, %v2734
        %v2736 = vpop.f32.mrf.mxu0
        %v2737 = vpop.f32.mrf.mxu0
        %v2738 = vadd.f32 %v1514, %v2737
        %v2739 = vpop.f32.mrf.mxu0
        %2740 = vmatprep.mubr.bf16.mxu0 0
        %2741 = vmatmul.mubr.bf16.gmra.mxu0 %v1554
        %v2742 = vpop.f32.mrf.mxu0
        %v2743 = vadd.f32 %v1519, %v2742
        %v2744 = vpop.f32.mrf.mxu0
        %v2745 = vpop.f32.mrf.mxu0
        %v2746 = vadd.f32 %v1524, %v2745
        %v2747 = vpop.f32.mrf.mxu0
        %2748 = vmatprep.mubr.bf16.mxu0 0
        %2749 = vmatmul.mubr.bf16.gmra.mxu0 %v1555
        %v2750 = vpop.f32.mrf.mxu0
        %v2751 = vadd.f32 %v1529, %v2750
        %v2752 = vpop.f32.mrf.mxu0
        %v2753 = vpop.f32.mrf.mxu0
        %v2754 = vadd.f32 %v1534, %v2753
        %v2755 = vpop.f32.mrf.mxu0
        %2756 = vdwg.mxu0
        %v2757 = vmul.f32 %v2688, %v2727
        %v2758 = vmul.f32 %v2689, %v2730
        %v2759 = vmul.f32 %v2690, %v2735
        %v2760 = vmul.f32 %v2691, %v2738
        %v2761 = vadd.f32 %v2757, %v2743
        %v2762 = vadd.f32 %v2758, %v2746
        %v2763 = vadd.f32 %v2759, %v2751
        %v2764 = vadd.f32 %v2760, %v2754
        %vm2765 = vcmp.ge.f32.partialorder %v2761, 0.0
        %vm2766 = vcmp.ge.f32.partialorder %v2762, 0.0
        %vm2767 = vcmp.ge.f32.partialorder %v2763, 0.0
        %vm2768 = vcmp.ge.f32.partialorder %v2764, 0.0
        %v2769 = vmul.f32 %v2761, 0.2
        %v2770 = vmul.f32 %v2762, 0.2
        %v2771 = vmul.f32 %v2763, 0.2
        %v2772 = vmul.f32 %v2764, 0.2
        %v2773 = vsel %vm2765, %v2761, %v2769
        %v2774 = vsel %vm2766, %v2762, %v2770
        %v2775 = vsel %vm2767, %v2763, %v2771
        %v2776 = vsel %vm2768, %v2764, %v2772
        %v2777 = vpack.c.bf16 %v2774, %v2773
        %v2778 = vpack.c.bf16 %v2776, %v2775
        %2779 = vmatprep.subr.bf16.mxu0 0
        %2780 = vmatpush1.bf16.msra.mxu0 %v2631
        %2781 = vmatprep.subr.bf16.mxu0 0
        %2782 = vmatpush1.bf16.msra.mxu0 %v2630
        %2783 = vmatprep.subr.bf16.mxu0 0
        %2784 = vmatpush1.bf16.msra.mxu0 %v2629
        %2785 = vmatprep.subr.bf16.mxu0 0
        %2786 = vmatpush1.bf16.msra.mxu0 %v2628
        %2787 = vmatprep.subr.bf16.mxu0 0
        %2788 = vmatpush1.bf16.msra.mxu0 %v2627
        %2789 = vmatprep.subr.bf16.mxu0 0
        %2790 = vmatpush1.bf16.msra.mxu0 %v2626
        %2791 = vmatprep.subr.bf16.mxu0 0
        %2792 = vmatpush1.bf16.msra.mxu0 %v2625
        %2793 = vmatprep.subr.bf16.mxu0 0
        %2794 = vmatpush1.bf16.msra.mxu0 %v2624
        %2795 = vmatprep.subr.bf16.mxu0 0
        %2796 = vmatpush2.bf16.msra.mxu0 0
        %2797 = vmatprep.subr.bf16.mxu0 0
        %2798 = vmatpush2.bf16.msra.mxu0 0
        %2799 = vmatprep.subr.bf16.mxu0 0
        %2800 = vmatpush2.bf16.msra.mxu0 0
        %2801 = vmatprep.subr.bf16.mxu0 0
        %2802 = vmatpush2.bf16.msra.mxu0 0
        %2803 = vmatprep.subr.bf16.mxu0 0
        %2804 = vmatpush2.bf16.msra.mxu0 0
        %2805 = vmatprep.subr.bf16.mxu0 0
        %2806 = vmatpush2.bf16.msra.mxu0 0
        %2807 = vmatprep.subr.bf16.mxu0 0
        %2808 = vmatpush2.bf16.msra.mxu0 0
        %2809 = vmatprep.subr.bf16.mxu0 0
        %2810 = vmatpush2.bf16.msra.mxu0 0
        %2811 = vmatprep.mubr.bf16.mxu0 0
        %2812 = vmatmul.mubr.bf16.gmra.mxu0 %v1703
        %v2813 = vpop.f32.mrf.mxu0
        %v2814 = vadd.f32 %v1650, %v2813
        %v2815 = vpop.f32.mrf.mxu0
        %v2816 = vpop.f32.mrf.mxu0
        %v2817 = vadd.f32 %v1655, %v2816
        %v2818 = vpop.f32.mrf.mxu0
        %2819 = vmatprep.mubr.bf16.mxu0 0
        %2820 = vmatmul.mubr.bf16.gmra.mxu0 %v1704
        %v2821 = vpop.f32.mrf.mxu0
        %v2822 = vadd.f32 %v1660, %v2821
        %v2823 = vpop.f32.mrf.mxu0
        %v2824 = vpop.f32.mrf.mxu0
        %v2825 = vadd.f32 %v1665, %v2824
        %v2826 = vpop.f32.mrf.mxu0
        %2827 = vmatprep.mubr.bf16.mxu0 0
        %2828 = vmatmul.mubr.bf16.gmra.mxu0 %v1705
        %v2829 = vpop.f32.mrf.mxu0
        %v2830 = vadd.f32 %v1670, %v2829
        %v2831 = vpop.f32.mrf.mxu0
        %v2832 = vpop.f32.mrf.mxu0
        %v2833 = vadd.f32 %v1675, %v2832
        %v2834 = vpop.f32.mrf.mxu0
        %2835 = vmatprep.mubr.bf16.mxu0 0
        %2836 = vmatmul.mubr.bf16.gmra.mxu0 %v1706
        %v2837 = vpop.f32.mrf.mxu0
        %v2838 = vadd.f32 %v1680, %v2837
        %v2839 = vpop.f32.mrf.mxu0
        %v2840 = vpop.f32.mrf.mxu0
        %v2841 = vadd.f32 %v1685, %v2840
        %v2842 = vpop.f32.mrf.mxu0
        %2843 = vdwg.mxu0
        %v2844 = vmul.f32 %v2688, %v2814
        %v2845 = vmul.f32 %v2689, %v2817
        %v2846 = vmul.f32 %v2690, %v2822
        %v2847 = vmul.f32 %v2691, %v2825
        %v2848 = vadd.f32 %v2844, %v2830
        %v2849 = vadd.f32 %v2845, %v2833
        %v2850 = vadd.f32 %v2846, %v2838
        %v2851 = vadd.f32 %v2847, %v2841
        %vm2852 = vcmp.ge.f32.partialorder %v2848, 0.0
        %vm2853 = vcmp.ge.f32.partialorder %v2849, 0.0
        %vm2854 = vcmp.ge.f32.partialorder %v2850, 0.0
        %vm2855 = vcmp.ge.f32.partialorder %v2851, 0.0
        %v2856 = vmul.f32 %v2848, 0.2
        %v2857 = vmul.f32 %v2849, 0.2
        %v2858 = vmul.f32 %v2850, 0.2
        %v2859 = vmul.f32 %v2851, 0.2
        %v2860 = vsel %vm2852, %v2848, %v2856
        %v2861 = vsel %vm2853, %v2849, %v2857
        %v2862 = vsel %vm2854, %v2850, %v2858
        %v2863 = vsel %vm2855, %v2851, %v2859
        %v2864 = vpack.c.bf16 %v2861, %v2860
        %v2865 = vpack.c.bf16 %v2863, %v2862
        %2866 = vmatprep.subr.bf16.mxu0 0
        %2867 = vmatpush1.bf16.msra.mxu0 0
        %2868 = vmatprep.subr.bf16.mxu0 0
        %2869 = vmatpush1.bf16.msra.mxu0 0
        %2870 = vmatprep.subr.bf16.mxu0 0
        %2871 = vmatpush1.bf16.msra.mxu0 0
        %2872 = vmatprep.subr.bf16.mxu0 0
        %2873 = vmatpush1.bf16.msra.mxu0 0
        %2874 = vmatprep.subr.bf16.mxu0 0
        %2875 = vmatpush1.bf16.msra.mxu0 0
        %2876 = vmatprep.subr.bf16.mxu0 0
        %2877 = vmatpush1.bf16.msra.mxu0 0
        %2878 = vmatprep.subr.bf16.mxu0 0
        %2879 = vmatpush1.bf16.msra.mxu0 %v2865
        %2880 = vmatprep.subr.bf16.mxu0 0
        %2881 = vmatpush1.bf16.msra.mxu0 %v2864
        %2882 = vmatprep.subr.bf16.mxu0 0
        %2883 = vmatpush2.bf16.msra.mxu0 0
        %2884 = vmatprep.subr.bf16.mxu0 0
        %2885 = vmatpush2.bf16.msra.mxu0 0
        %2886 = vmatprep.subr.bf16.mxu0 0
        %2887 = vmatpush2.bf16.msra.mxu0 0
        %2888 = vmatprep.subr.bf16.mxu0 0
        %2889 = vmatpush2.bf16.msra.mxu0 0
        %2890 = vmatprep.subr.bf16.mxu0 0
        %2891 = vmatpush2.bf16.msra.mxu0 0
        %2892 = vmatprep.subr.bf16.mxu0 0
        %2893 = vmatpush2.bf16.msra.mxu0 0
        %2894 = vmatprep.subr.bf16.mxu0 0
        %2895 = vmatpush2.bf16.msra.mxu0 0
        %2896 = vmatprep.subr.bf16.mxu0 0
        %2897 = vmatpush2.bf16.msra.mxu0 0
        %2898 = vmatprep.mubr.bf16.mxu0 0
        %2899 = vmatmul.mubr.bf16.gmra.mxu0 %v1830
        %v2900 = vpop.f32.mrf.mxu0
        %v2901 = vadd.f32 %v1801, %v2900
        %v2902 = vpop.f32.mrf.mxu0
        %v2903 = vpop.f32.mrf.mxu0
        %v2904 = vadd.f32 %v1806, %v2903
        %v2905 = vpop.f32.mrf.mxu0
        %2906 = vmatprep.mubr.bf16.mxu0 0
        %2907 = vmatmul.mubr.bf16.gmra.mxu0 %v1833
        %v2908 = vpop.f32.mrf.mxu0
        %v2909 = vadd.f32 %v1811, %v2908
        %v2910 = vpop.f32.mrf.mxu0
        %v2911 = vpop.f32.mrf.mxu0
        %v2912 = vadd.f32 %v1816, %v2911
        %v2913 = vpop.f32.mrf.mxu0
        %2914 = vdwg.mxu0
        %2915 = vadd.xlane.f32.xlu0 %v2901
        %v2916 = vpop.xlane.xlu0 %2915
        %2917 = vadd.xlane.f32.xlu0 %v2904
        %v2918 = vpop.xlane.xlu0 %2917
        %2919 = vadd.xlane.f32.xlu0 %v2909
        %v2920 = vpop.xlane.xlu0 %2919
        %2921 = vadd.xlane.f32.xlu0 %v2912
        %v2922 = vpop.xlane.xlu0 %2921
        %v2923 = vmul.f32 %v2916, %v1451
        %v2924 = vmul.f32 %v2918, %v1451
        %v2925 = vmul.f32 %v2920, %v1451
        %v2926 = vmul.f32 %v2922, %v1451
        %v2927 = vmul.f32 %v2901, %v2901
        %v2928 = vmul.f32 %v2904, %v2904
        %v2929 = vmul.f32 %v2909, %v2909
        %v2930 = vmul.f32 %v2912, %v2912
        %2931 = vadd.xlane.f32.xlu0 %v2927
        %v2932 = vpop.xlane.xlu0 %2931
        %2933 = vadd.xlane.f32.xlu0 %v2928
        %v2934 = vpop.xlane.xlu0 %2933
        %2935 = vadd.xlane.f32.xlu0 %v2929
        %v2936 = vpop.xlane.xlu0 %2935
        %2937 = vadd.xlane.f32.xlu0 %v2930
        %v2938 = vpop.xlane.xlu0 %2937
        %v2939 = vmul.f32 %v2932, %v1451
        %v2940 = vmul.f32 %v2934, %v1451
        %v2941 = vmul.f32 %v2936, %v1451
        %v2942 = vmul.f32 %v2938, %v1451
        %v2943 = vmul.f32 %v2923, %v2923
        %v2944 = vmul.f32 %v2924, %v2924
        %v2945 = vmul.f32 %v2925, %v2925
        %v2946 = vmul.f32 %v2926, %v2926
        %v2947 = vsub.f32 %v2939, %v2943
        %v2948 = vsub.f32 %v2940, %v2944
        %v2949 = vsub.f32 %v2941, %v2945
        %v2950 = vsub.f32 %v2942, %v2946
        %v2951 = vsub.f32 %v2901, %v2923
        %v2952 = vsub.f32 %v2904, %v2924
        %v2953 = vsub.f32 %v2909, %v2925
        %v2954 = vsub.f32 %v2912, %v2926
        %v2955 = vadd.f32 %v2947, 1e-05
        %v2956 = vadd.f32 %v2948, 1e-05
        %v2957 = vadd.f32 %v2949, 1e-05
        %v2958 = vadd.f32 %v2950, 1e-05
        %v2959 = vrsqrt.pop %v2955
        %v2960 = vrsqrt.pop %v2956
        %v2961 = vrsqrt.pop %v2957
        %v2962 = vrsqrt.pop %v2958
        %v2963 = vmul.f32 %v2951, %v2959
        %v2964 = vmul.f32 %v2952, %v2960
        %v2965 = vmul.f32 %v2953, %v2961
        %v2966 = vmul.f32 %v2954, %v2962
        %2967 = vmatprep.subr.bf16.mxu0 0
        %2968 = vmatpush1.bf16.msra.mxu0 %v2639
        %2969 = vmatprep.subr.bf16.mxu0 0
        %2970 = vmatpush1.bf16.msra.mxu0 %v2638
        %2971 = vmatprep.subr.bf16.mxu0 0
        %2972 = vmatpush1.bf16.msra.mxu0 %v2637
        %2973 = vmatprep.subr.bf16.mxu0 0
        %2974 = vmatpush1.bf16.msra.mxu0 %v2636
        %2975 = vmatprep.subr.bf16.mxu0 0
        %2976 = vmatpush1.bf16.msra.mxu0 %v2635
        %2977 = vmatprep.subr.bf16.mxu0 0
        %2978 = vmatpush1.bf16.msra.mxu0 %v2634
        %2979 = vmatprep.subr.bf16.mxu0 0
        %2980 = vmatpush1.bf16.msra.mxu0 %v2633
        %2981 = vmatprep.subr.bf16.mxu0 0
        %2982 = vmatpush1.bf16.msra.mxu0 %v2632
        %2983 = vmatprep.subr.bf16.mxu0 0
        %2984 = vmatpush2.bf16.msra.mxu0 0
        %2985 = vmatprep.subr.bf16.mxu0 0
        %2986 = vmatpush2.bf16.msra.mxu0 0
        %2987 = vmatprep.subr.bf16.mxu0 0
        %2988 = vmatpush2.bf16.msra.mxu0 0
        %2989 = vmatprep.subr.bf16.mxu0 0
        %2990 = vmatpush2.bf16.msra.mxu0 0
        %2991 = vmatprep.subr.bf16.mxu0 0
        %2992 = vmatpush2.bf16.msra.mxu0 0
        %2993 = vmatprep.subr.bf16.mxu0 0
        %2994 = vmatpush2.bf16.msra.mxu0 0
        %2995 = vmatprep.subr.bf16.mxu0 0
        %2996 = vmatpush2.bf16.msra.mxu0 0
        %2997 = vmatprep.subr.bf16.mxu0 0
        %2998 = vmatpush2.bf16.msra.mxu0 0
        %2999 = vmatprep.mubr.bf16.mxu0 0
        %3000 = vmatmul.mubr.bf16.gmra.mxu0 %v1992
        %v3001 = vpop.f32.mrf.mxu0
        %v3002 = vadd.f32 %v1939, %v3001
        %v3003 = vpop.f32.mrf.mxu0
        %v3004 = vpop.f32.mrf.mxu0
        %v3005 = vadd.f32 %v1944, %v3004
        %v3006 = vpop.f32.mrf.mxu0
        %3007 = vmatprep.mubr.bf16.mxu0 0
        %3008 = vmatmul.mubr.bf16.gmra.mxu0 %v1993
        %v3009 = vpop.f32.mrf.mxu0
        %v3010 = vadd.f32 %v1949, %v3009
        %v3011 = vpop.f32.mrf.mxu0
        %v3012 = vpop.f32.mrf.mxu0
        %v3013 = vadd.f32 %v1954, %v3012
        %v3014 = vpop.f32.mrf.mxu0
        %3015 = vmatprep.mubr.bf16.mxu0 0
        %3016 = vmatmul.mubr.bf16.gmra.mxu0 %v1994
        %v3017 = vpop.f32.mrf.mxu0
        %v3018 = vadd.f32 %v1959, %v3017
        %v3019 = vpop.f32.mrf.mxu0
        %v3020 = vpop.f32.mrf.mxu0
        %v3021 = vadd.f32 %v1964, %v3020
        %v3022 = vpop.f32.mrf.mxu0
        %3023 = vmatprep.mubr.bf16.mxu0 0
        %3024 = vmatmul.mubr.bf16.gmra.mxu0 %v1995
        %v3025 = vpop.f32.mrf.mxu0
        %v3026 = vadd.f32 %v1969, %v3025
        %v3027 = vpop.f32.mrf.mxu0
        %v3028 = vpop.f32.mrf.mxu0
        %v3029 = vadd.f32 %v1974, %v3028
        %v3030 = vpop.f32.mrf.mxu0
        %3031 = vdwg.mxu0
        %v3032 = vmul.f32 %v2963, %v3002
        %v3033 = vmul.f32 %v2964, %v3005
        %v3034 = vmul.f32 %v2965, %v3010
        %v3035 = vmul.f32 %v2966, %v3013
        %v3036 = vadd.f32 %v3032, %v3018
        %v3037 = vadd.f32 %v3033, %v3021
        %v3038 = vadd.f32 %v3034, %v3026
        %v3039 = vadd.f32 %v3035, %v3029
        %vm3040 = vcmp.ge.f32.partialorder %v3036, 0.0
        %vm3041 = vcmp.ge.f32.partialorder %v3037, 0.0
        %vm3042 = vcmp.ge.f32.partialorder %v3038, 0.0
        %vm3043 = vcmp.ge.f32.partialorder %v3039, 0.0
        %v3044 = vmul.f32 %v3036, 0.2
        %v3045 = vmul.f32 %v3037, 0.2
        %v3046 = vmul.f32 %v3038, 0.2
        %v3047 = vmul.f32 %v3039, 0.2
        %v3048 = vsel %vm3040, %v3036, %v3044
        %v3049 = vsel %vm3041, %v3037, %v3045
        %v3050 = vsel %vm3042, %v3038, %v3046
        %v3051 = vsel %vm3043, %v3039, %v3047
        %v3052 = vpack.c.bf16 %v3049, %v3048
        %v3053 = vpack.c.bf16 %v3051, %v3050
        %3054 = vmatprep.subr.bf16.mxu0 0
        %3055 = vmatpush1.bf16.msra.mxu0 0
        %3056 = vmatprep.subr.bf16.mxu0 0
        %3057 = vmatpush1.bf16.msra.mxu0 0
        %3058 = vmatprep.subr.bf16.mxu0 0
        %3059 = vmatpush1.bf16.msra.mxu0 0
        %3060 = vmatprep.subr.bf16.mxu0 0
        %3061 = vmatpush1.bf16.msra.mxu0 0
        %3062 = vmatprep.subr.bf16.mxu0 0
        %3063 = vmatpush1.bf16.msra.mxu0 0
        %3064 = vmatprep.subr.bf16.mxu0 0
        %3065 = vmatpush1.bf16.msra.mxu0 0
        %3066 = vmatprep.subr.bf16.mxu0 0
        %3067 = vmatpush1.bf16.msra.mxu0 %v3053
        %3068 = vmatprep.subr.bf16.mxu0 0
        %3069 = vmatpush1.bf16.msra.mxu0 %v3052
        %3070 = vmatprep.subr.bf16.mxu0 0
        %3071 = vmatpush2.bf16.msra.mxu0 0
        %3072 = vmatprep.subr.bf16.mxu0 0
        %3073 = vmatpush2.bf16.msra.mxu0 0
        %3074 = vmatprep.subr.bf16.mxu0 0
        %3075 = vmatpush2.bf16.msra.mxu0 0
        %3076 = vmatprep.subr.bf16.mxu0 0
        %3077 = vmatpush2.bf16.msra.mxu0 0
        %3078 = vmatprep.subr.bf16.mxu0 0
        %3079 = vmatpush2.bf16.msra.mxu0 0
        %3080 = vmatprep.subr.bf16.mxu0 0
        %3081 = vmatpush2.bf16.msra.mxu0 0
        %3082 = vmatprep.subr.bf16.mxu0 0
        %3083 = vmatpush2.bf16.msra.mxu0 0
        %3084 = vmatprep.subr.bf16.mxu0 0
        %3085 = vmatpush2.bf16.msra.mxu0 0
        %3086 = vmatprep.mubr.bf16.mxu0 0
        %3087 = vmatmul.mubr.bf16.gmra.mxu0 %v2148
        %v3088 = vpop.f32.mrf.mxu0
        %v3089 = vadd.f32 %v2090, %v3088
        %v3090 = vpop.f32.mrf.mxu0
        %v3091 = vpop.f32.mrf.mxu0
        %v3092 = vadd.f32 %v2095, %v3091
        %v3093 = vpop.f32.mrf.mxu0
        %3094 = vmatprep.mubr.bf16.mxu0 0
        %3095 = vmatmul.mubr.bf16.gmra.mxu0 %v2151
        %v3096 = vpop.f32.mrf.mxu0
        %v3097 = vadd.f32 %v2100, %v3096
        %v3098 = vpop.f32.mrf.mxu0
        %v3099 = vpop.f32.mrf.mxu0
        %v3100 = vadd.f32 %v2105, %v3099
        %v3101 = vpop.f32.mrf.mxu0
        %3102 = vmatprep.mubr.bf16.mxu0 0
        %3103 = vmatmul.mubr.bf16.gmra.mxu0 %v2154
        %v3104 = vpop.f32.mrf.mxu0
        %v3105 = vadd.f32 %v2110, %v3104
        %v3106 = vpop.f32.mrf.mxu0
        %v3107 = vpop.f32.mrf.mxu0
        %v3108 = vadd.f32 %v2115, %v3107
        %v3109 = vpop.f32.mrf.mxu0
        %3110 = vmatprep.mubr.bf16.mxu0 0
        %3111 = vmatmul.mubr.bf16.gmra.mxu0 %v2157
        %v3112 = vpop.f32.mrf.mxu0
        %v3113 = vadd.f32 %v2120, %v3112
        %v3114 = vpop.f32.mrf.mxu0
        %v3115 = vpop.f32.mrf.mxu0
        %v3116 = vadd.f32 %v2125, %v3115
        %v3117 = vpop.f32.mrf.mxu0
        %3118 = vdwg.mxu0
        %3119 = vmatprep.subr.bf16.mxu0 0
        %3120 = vmatpush1.bf16.msra.mxu0 0
        %3121 = vmatprep.subr.bf16.mxu0 0
        %3122 = vmatpush1.bf16.msra.mxu0 0
        %3123 = vmatprep.subr.bf16.mxu0 0
        %3124 = vmatpush1.bf16.msra.mxu0 0
        %3125 = vmatprep.subr.bf16.mxu0 0
        %3126 = vmatpush1.bf16.msra.mxu0 0
        %3127 = vmatprep.subr.bf16.mxu0 0
        %3128 = vmatpush1.bf16.msra.mxu0 0
        %3129 = vmatprep.subr.bf16.mxu0 0
        %3130 = vmatpush1.bf16.msra.mxu0 0
        %3131 = vmatprep.subr.bf16.mxu0 0
        %3132 = vmatpush1.bf16.msra.mxu0 %v2778
        %3133 = vmatprep.subr.bf16.mxu0 0
        %3134 = vmatpush1.bf16.msra.mxu0 %v2777
        %3135 = vmatprep.subr.bf16.mxu0 0
        %3136 = vmatpush2.bf16.msra.mxu0 0
        %3137 = vmatprep.subr.bf16.mxu0 0
        %3138 = vmatpush2.bf16.msra.mxu0 0
        %3139 = vmatprep.subr.bf16.mxu0 0
        %3140 = vmatpush2.bf16.msra.mxu0 0
        %3141 = vmatprep.subr.bf16.mxu0 0
        %3142 = vmatpush2.bf16.msra.mxu0 0
        %3143 = vmatprep.subr.bf16.mxu0 0
        %3144 = vmatpush2.bf16.msra.mxu0 0
        %3145 = vmatprep.subr.bf16.mxu0 0
        %3146 = vmatpush2.bf16.msra.mxu0 0
        %3147 = vmatprep.subr.bf16.mxu0 0
        %3148 = vmatpush2.bf16.msra.mxu0 0
        %3149 = vmatprep.subr.bf16.mxu0 0
        %3150 = vmatpush2.bf16.msra.mxu0 0
        %3151 = vmatprep.mubr.bf16.mxu0 0
        %3152 = vmatmul.mubr.bf16.gmra.mxu0 %v2245
        %v3153 = vpop.f32.mrf.mxu0
        %v3154 = vadd.f32 %v3089, %v3153
        %v3155 = vpop.f32.mrf.mxu0
        %v3156 = vpop.f32.mrf.mxu0
        %v3157 = vadd.f32 %v3092, %v3156
        %v3158 = vpop.f32.mrf.mxu0
        %3159 = vmatprep.mubr.bf16.mxu0 0
        %3160 = vmatmul.mubr.bf16.gmra.mxu0 %v2248
        %v3161 = vpop.f32.mrf.mxu0
        %v3162 = vadd.f32 %v3097, %v3161
        %v3163 = vpop.f32.mrf.mxu0
        %v3164 = vpop.f32.mrf.mxu0
        %v3165 = vadd.f32 %v3100, %v3164
        %v3166 = vpop.f32.mrf.mxu0
        %3167 = vmatprep.mubr.bf16.mxu0 0
        %3168 = vmatmul.mubr.bf16.gmra.mxu0 %v2251
        %v3169 = vpop.f32.mrf.mxu0
        %v3170 = vadd.f32 %v3105, %v3169
        %v3171 = vpop.f32.mrf.mxu0
        %v3172 = vpop.f32.mrf.mxu0
        %v3173 = vadd.f32 %v3108, %v3172
        %v3174 = vpop.f32.mrf.mxu0
        %3175 = vmatprep.mubr.bf16.mxu0 0
        %3176 = vmatmul.mubr.bf16.gmra.mxu0 %v2254
        %v3177 = vpop.f32.mrf.mxu0
        %v3178 = vadd.f32 %v3113, %v3177
        %v3179 = vpop.f32.mrf.mxu0
        %v3180 = vpop.f32.mrf.mxu0
        %v3181 = vadd.f32 %v3116, %v3180
        %v3182 = vpop.f32.mrf.mxu0
        %3183 = vdwg.mxu0
        %s3184 = scalar_lea.vmem %s508, 64 [#allocation2]
        %3185 = vst [vmem:[%s3184] sm:$0xff] %v3154
        %3186 = vst [vmem:[%s3184 + $0x8] sm:$0xff] %v3157
        %3187 = vst [vmem:[%s3184 + $0x10] sm:$0xff] %v3162
        %3188 = vst [vmem:[%s3184 + $0x18] sm:$0xff] %v3165
        %3189 = vst [vmem:[%s3184 + $0x20] sm:$0xff] %v3170
        %3190 = vst [vmem:[%s3184 + $0x28] sm:$0xff] %v3173
        %3191 = vst [vmem:[%s3184 + $0x30] sm:$0xff] %v3178
        %3192 = vst [vmem:[%s3184 + $0x38] sm:$0xff] %v3181
        %s3193 = sand.u32 %s362, 1
        %s3194 = scalar_lea.sflag [#allocation3], %s3193
        %s3195 = sand.u32 %s362, 1
        %s3196 = smul.addr %s3195, 128
        %s3197 = scalar_lea.vmem [#allocation2], %s3196
        // Predicated region
        $region81: #{tpu_custom_call.1} parent=79 // pred_check
          %p3198 = pneg %p372
        $region82: #{tpu_custom_call.1} parent=79 // pred_check_branch
          %3200 = sbr.rel (%p3198) target = $region84
        $region83: #{tpu_custom_call.1} parent=79 // pred_region
          %s3201 = smul.u32 2, %s29
          %s3203 = ssub.s32 2048, 2048
          %3204 = vsyncadd %s3194, %s3203
          %s3205 = smul.addr %s3201, 8
          %s3206 = smul.addr %s3205, 128
          %s3207 = scalar_lea.hbm %s15, %s3206
          %s3208 = sshll.u32 %s3197, 4
          %s3209 = int_to_ptr.vmem [resolvable:$true] %s3208
          %3214 = dma.vmem_to_hbm [thread:$0]  %s3209, 2048, %s3207, %s3194, 128, 128, 8
        $region84: #{tpu_custom_call.1} parent=79 // pred_fallthru
          _
      $region80: #{tpu_custom_call.1} parent=5 // pred_fallthru
        _
      %p3215 = scmp.le.s32.totalorder 2, %s24
      // Predicated region
      $region85: #{tpu_custom_call.1} parent=5 // pred_check
        %p3216 = pneg %p3215
      $region86: #{tpu_custom_call.1} parent=5 // pred_check_branch
        %3218 = sbr.rel (%p3216) target = $region88
      $region87: #{tpu_custom_call.1} parent=5 // pred_region
        %s3219 = ssub.s32 %s24, 2
        // Predicated region
        $region89: #{tpu_custom_call.1} parent=87 // pred_check
          %p3220 = pneg %p378
        $region90: #{tpu_custom_call.1} parent=87 // pred_check_branch
          %3222 = sbr.rel (%p3220) target = $region92
        $region91: #{tpu_custom_call.1} parent=87 // pred_region
          %s3223 = sand.u32 %s363, 1
          %s3224 = scalar_lea.sflag [#allocation3], %s3223
          %s3225 = sand.u32 %s363, 1
          %s3226 = smul.addr %s3225, 128
          %s3227 = scalar_lea.vmem [#allocation2], %s3226
          %3228 = dma.done %s3224, 2048
        $region92: #{tpu_custom_call.1} parent=87 // pred_fallthru
          _
      $region88: #{tpu_custom_call.1} parent=5 // pred_fallthru
        _
    $region6: #{tpu_custom_call.1} parent=1 // loop_footer
      %s28 = sadd.s32 1, %s24
    $region7: #{tpu_custom_call.1} parent=1 // loop_footer_branch
      %23 = sbr.rel target = $region3
    $region8: #{tpu_custom_call.1} parent=1 // loop_exit
      _
    %3229 = vsyncpa [#allocation3], 1
    %s3230 = scalar_lea.sflag [#allocation3], 1
    %3231 = vsyncpa %s3230, 1

</llo_original>
